<compile_context>
chip_gen: v5e
topology: v5e:2x2
jax: 0.10.0
libtpu: 0.0.40
codegen_flags: <defaults>
</compile_context>

<pallas_src>
import functools
import math

import jax
import jax.numpy as jnp
from jax import lax
from jax.experimental import pallas as pl
from jax.experimental.pallas import tpu as pltpu

_EPS = 1e-5                      # nn.GroupNorm default eps
_INV_SQRT2 = 1.0 / math.sqrt(2.0)
_VMEM_LIMIT_BYTES = 48 * 1024 * 1024     # safe on v5e/v6e (128 MiB) and v7x (64 MiB)
_VMEM_TILE_BUDGET = 36 * 1024 * 1024     # target per-step footprint when auto-picking tile_d


# ---------------------------------------------------------------------------
# GELU (exact erf formulation, as nn.GELU() default)
# ---------------------------------------------------------------------------
def _erf_f32(x):
    # XLA's f32 rational erf approximation.  The divide is replaced with an EUP
    # approximate reciprocal + one Newton refinement (keeps ~f32 accuracy, frees VALU).
    # TODO(synk): switch to lax.erf once Mosaic exposes an erf lowering.
    alpha = (0.00022905065861350646, 0.0034082910107109506, 0.050955695062380861,
             0.18520832239976145, 1.128379143519084)
    beta = (-1.1791602954361697e-7, 0.000023547966471313185, 0.0010179625278914885,
            0.014070470171167667, 0.11098505178285362, 0.49746925110067538, 1.0)
    clamp = 3.832506856900711  # erfinv(1 - 2^-23)
    x = jnp.clip(x, -clamp, clamp)
    x2 = x * x
    num = alpha[0]
    for c in alpha[1:]:
        num = num * x2 + c
    den = beta[0]
    for c in beta[1:]:
        den = den * x2 + c
    r = pl.reciprocal(den, approx=True)
    r = r * (2.0 - den * r)          # one Newton step
    return (x * num) * r


def _gelu_exact(x):
    return 0.5 * x * (1.0 + _erf_f32(x * _INV_SQRT2))


# ---------------------------------------------------------------------------
# depthwise k x k x k conv over a lane-dense (rows = D*H, lanes = W*C) slab
# ---------------------------------------------------------------------------
def _make_dw_conv(*, k, p, C, W, H):
    """Returns conv_into(dw_ref, slab, wdw_ref):

    slab:    ((tile_d + 2p) * H, W*C) f32 value; D/H-major rows, (w, c) lanes; the D halo
             rows outside the volume are already zeroed by the caller.
    wdw_ref: (k^3, W*C) ref; per-tap per-channel weights tiled over W with the W
             zero-padding masks folded in (so wrapped lanes from the W roll hit a 0 tap).
    dw_ref:  (tile_d * H, W*C) VMEM scratch accumulator (overwritten).
    """
    WC = W * C

    def conv_into(dw_ref, slab, wdw_ref):
        rows = slab.shape[0]
        out_rows = dw_ref.shape[0]
        hh = lax.broadcasted_iota(jnp.int32, (rows, 1), 0) % H
        first = True
        for kh in range(k):
            dh = kh - p
            if dh == 0:
                rolled_h = slab
            else:
                # want rolled_h[r] = slab[r + dh]; rows crossing an H (plane) boundary
                # are exactly the h-out-of-range rows -> zero them.
                rolled_h = pltpu.roll(slab, shift=(-dh) % rows, axis=0)
                valid = jnp.logical_and(hh + dh >= 0, hh + dh < H)
                rolled_h = jnp.where(valid, rolled_h, 0.0)
            for kw in range(k):
                shift_w = ((p - kw) * C) % WC      # lane roll: access (w + kw - p)
                rolled = rolled_h if shift_w == 0 else pltpu.roll(
                    rolled_h, shift=shift_w, axis=1)
                contrib = None
                for kd in range(k):
                    idx = (kd * k + kh) * k + kw
                    tap = wdw_ref[idx:idx + 1, :]                       # (1, W*C)
                    term = rolled[kd * H:kd * H + out_rows, :] * tap    # aligned row slice
                    contrib = term if contrib is None else contrib + term
                if first:
                    dw_ref[...] = contrib
                    first = False
                else:
                    dw_ref[...] += contrib

    return conv_into


def _build_slab(x_ref, prev_ref, next_ref, *, p, H, WC):
    """Center tile + D halos (zero-masked at the volume boundary) as a 2-D slab."""
    d = pl.program_id(1)
    nd = pl.num_programs(1)
    t_rows = x_ref.shape[1] * H
    h_rows = p * H
    center = x_ref[...].reshape(t_rows, WC)
    prev = prev_ref[...].reshape(h_rows, WC) * (d > 0).astype(jnp.float32)
    nxt = next_ref[...].reshape(h_rows, WC) * (d < nd - 1).astype(jnp.float32)
    slab = jnp.concatenate([prev, center, nxt], axis=0)
    return center, slab


# ---------------------------------------------------------------------------
# pass 1: depthwise conv -> HBM intermediate + per-(sample, lane) sum / sum-of-squares
# ---------------------------------------------------------------------------
def _make_conv_stats_kernel(*, k, p, C, W, H):
    WC = W * C
    conv_into = _make_dw_conv(k=k, p=p, C=C, W=W, H=H)

    def kernel(x_ref, prev_ref, next_ref, wdw_ref, dw_out_ref, stats_ref, dw_ref):
        d = pl.program_id(1)
        _, slab = _build_slab(x_ref, prev_ref, next_ref, p=p, H=H, WC=WC)
        conv_into(dw_ref, slab, wdw_ref)
        dw = dw_ref[...]
        dw_out_ref[...] = dw.reshape(dw_out_ref.shape)      # reuse in pass 2 (no recompute)
        upd = jnp.concatenate(
            [jnp.sum(dw, axis=0, keepdims=True),
             jnp.sum(dw * dw, axis=0, keepdims=True)], axis=0).reshape(1, 2, WC)

        @pl.when(d == 0)
        def _():
            stats_ref[...] = upd

        @pl.when(d != 0)
        def _():
            stats_ref[...] += upd

    return kernel


# ---------------------------------------------------------------------------
# pass 2: GroupNorm affine + expansion (GELU) + compression + residual
# (pure streaming kernel: no conv recompute, no halos, no scratch)
# ---------------------------------------------------------------------------
def _make_main_kernel(*, C, W, H, wf, scale):
    WC = W * C
    WFC = wf * C

    def kernel(dw_ref, x_ref, a_ref, b_ref, wexp_ref, bexp_ref, wcmp_ref, bcmp_ref,
               out_ref):
        dw = dw_ref[...].reshape(-1, WC)                    # (tile_d*H, WC)

        # GroupNorm folded into a per-channel scale/shift (computed between the passes).
        xn = dw * a_ref[0] + b_ref[0]

        # 1x1x1 expansion + GELU + 1x1x1 compression as lane-dense bf16 MXU matmuls.
        xm = xn.reshape(-1, WFC).astype(jnp.bfloat16)
        h = jnp.dot(xm, wexp_ref[...], preferred_element_type=jnp.float32) + bexp_ref[...]
        h = _gelu_exact(h)
        y = jnp.dot(h.astype(jnp.bfloat16), wcmp_ref[...],
                    preferred_element_type=jnp.float32) + bcmp_ref[...]

        y = y.reshape(-1, WC) + x_ref[...].reshape(-1, WC)  # residual
        out_ref[...] = y.reshape(out_ref.shape)

    return kernel


# ---------------------------------------------------------------------------
# wrapper
# ---------------------------------------------------------------------------
def _pick_tile_d(D, H, WC, scale, p, budget_bytes=_VMEM_TILE_BUDGET):
    plane = H * WC * 4
    best = p
    for td in range(p, D + 1, p):
        if D % td:
            continue
        pass1 = (2 * (td + 2 * p) * plane        # x center + halos, double-buffered
                 + 2 * td * plane                # dw output block, double-buffered
                 + td * plane                    # conv scratch
                 + (td + 2 * p) * plane          # slab value
                 + 2 * td * plane)               # misc working values
        pass2 = (6 * td * plane                  # dw in / x in / out, double-buffered
                 + td * plane * (3 + 2 * scale)) # xn / h working values
        if max(pass1, pass2) <= budget_bytes:
            best = td
    return best


def conv_block_pallas(x, params, *, scale, k_size, num_groups=32, tile_d=None):
    """x: (N, D, H, W, C) float32 (channels-last view of the PyTorch NCDHW input)."""
    N, D, H, W, C = x.shape
    k = k_size
    p = (k - 1) // 2
    WC = W * C
    assert k % 2 == 1 and k >= 3, "specialised for odd k_size >= 3"
    assert C % num_groups == 0, "GroupNorm requires C % num_groups == 0"
    assert WC % 128 == 0, "lane-dense layout needs W*C to be a multiple of 128"
    assert H % 8 == 0, "keep sublane slices / reshapes aligned"
    assert D % p == 0

    if tile_d is None:
        tile_d = _pick_tile_d(D, H, WC, scale, p)
    assert D % tile_d == 0 and tile_d % p == 0
    n_tiles = D // tile_d
    blk_q = tile_d // p                       # halo offset in units of p-plane blocks

    # ---- lane-dense views and (tiny) weight preprocessing ----
    x2 = x.reshape(N, D, H, WC)

    # depthwise taps tiled over W with the W zero-pad mask folded in: (k^3, W*C)
    taps = params["w_dw"].astype(jnp.float32).reshape(k ** 3, 1, C)
    kw_of_tap = jnp.arange(k ** 3) % k
    wsrc = jnp.arange(W)[None, :] + (kw_of_tap[:, None] - p)
    wmask = ((wsrc >= 0) & (wsrc < W)).astype(jnp.float32)            # (k^3, W)
    w_dw_tiled = (jnp.broadcast_to(taps, (k ** 3, W, C)) * wmask[:, :, None]).reshape(k ** 3, WC)

    # fold `wf` W-positions into the 1x1x1 matmuls so the MXU contraction is lane-dense.
    # TODO(synk): for very large W*C*scale switch to a per-voxel matmul path instead of
    # growing the block-diagonal weight.
    wf = min(W, max(1, 512 // C))
    while W % wf:
        wf -= 1
    WFC = wf * C
    eye = jnp.eye(wf, dtype=jnp.float32)
    w_exp_bd = jnp.kron(eye, params["w_exp"].astype(jnp.float32)).astype(jnp.bfloat16)
    w_cmp_bd = jnp.kron(eye, params["w_cmp"].astype(jnp.float32)).astype(jnp.bfloat16)
    b_exp_t = jnp.tile(params["b_exp"].astype(jnp.float32), wf).reshape(1, WFC * scale)
    b_cmp_t = jnp.tile(params["b_cmp"].astype(jnp.float32), wf).reshape(1, WFC)

    center_spec = pl.BlockSpec((1, tile_d, H, WC), lambda n, d: (n, d, 0, 0))
    prev_spec = pl.BlockSpec(
        (1, p, H, WC), lambda n, d: (n, jnp.maximum(d * blk_q - 1, 0), 0, 0))
    next_spec = pl.BlockSpec(
        (1, p, H, WC), lambda n, d: (n, jnp.minimum((d + 1) * blk_q, D // p - 1), 0, 0))
    wdw_spec = pl.BlockSpec((k ** 3, WC), lambda n, d: (0, 0))

    # ---- pass 1: depthwise conv -> HBM + GroupNorm statistics per (sample, lane) ----
    dw_full, stats = pl.pallas_call(
        _make_conv_stats_kernel(k=k, p=p, C=C, W=W, H=H),
        out_shape=(jax.ShapeDtypeStruct((N, D, H, WC), jnp.float32),
                   jax.ShapeDtypeStruct((N, 2, WC), jnp.float32)),
        grid=(N, n_tiles),
        in_specs=[center_spec, prev_spec, next_spec, wdw_spec],
        out_specs=(pl.BlockSpec((1, tile_d, H, WC), lambda n, d: (n, d, 0, 0)),
                   pl.BlockSpec((1, 2, WC), lambda n, d: (n, 0, 0))),
        scratch_shapes=[pltpu.VMEM((tile_d * H, WC), jnp.float32)],
        compiler_params=pltpu.CompilerParams(
            dimension_semantics=("parallel", "arbitrary"),
            vmem_limit_bytes=_VMEM_LIMIT_BYTES),
    )(x2, x2, x2, w_dw_tiled)

    # ---- tiny glue: fold stats + gamma/beta into a per-channel scale/shift ----
    gsize = C // num_groups
    S = D * H * W
    ch_sum = stats[:, 0, :].reshape(N, W, C).sum(axis=1)              # (N, C)
    ch_sq = stats[:, 1, :].reshape(N, W, C).sum(axis=1)
    grp_sum = ch_sum.reshape(N, num_groups, gsize).sum(axis=-1)       # (N, G)
    grp_sq = ch_sq.reshape(N, num_groups, gsize).sum(axis=-1)
    cnt = float(S * gsize)
    mean = grp_sum / cnt
    # TODO(synk): single-pass E[x^2]-mean^2 in f32; switch to a Welford-style combine if
    # activations ever have mean >> std.
    var = jnp.maximum(grp_sq / cnt - mean * mean, 0.0)
    rstd = lax.rsqrt(var + _EPS)
    gamma = params["gamma"].astype(jnp.float32)[None, :]
    beta = params["beta"].astype(jnp.float32)[None, :]
    a_c = gamma * jnp.repeat(rstd, gsize, axis=1)                     # (N, C)
    b_c = beta - jnp.repeat(mean * rstd, gsize, axis=1) * gamma
    a_vec = jnp.tile(a_c, (1, W)).reshape(N, 1, WC)
    b_vec = jnp.tile(b_c, (1, W)).reshape(N, 1, WC)

    # ---- pass 2: norm + expansion(GELU) + compression + residual (streaming) ----
    y2 = pl.pallas_call(
        _make_main_kernel(C=C, W=W, H=H, wf=wf, scale=scale),
        out_shape=jax.ShapeDtypeStruct((N, D, H, WC), jnp.float32),
        grid=(N, n_tiles),
        in_specs=[
            center_spec,                                              # dw conv output
            center_spec,                                              # residual (x)
            pl.BlockSpec((1, 1, WC), lambda n, d: (n, 0, 0)),         # GN scale
            pl.BlockSpec((1, 1, WC), lambda n, d: (n, 0, 0)),         # GN shift
            pl.BlockSpec((WFC, WFC * scale), lambda n, d: (0, 0)),    # expansion (bf16)
            pl.BlockSpec((1, WFC * scale), lambda n, d: (0, 0)),
            pl.BlockSpec((WFC * scale, WFC), lambda n, d: (0, 0)),    # compression (bf16)
            pl.BlockSpec((1, WFC), lambda n, d: (0, 0)),
        ],
        out_specs=pl.BlockSpec((1, tile_d, H, WC), lambda n, d: (n, d, 0, 0)),
        compiler_params=pltpu.CompilerParams(
            dimension_semantics=("parallel", "parallel"),
            vmem_limit_bytes=_VMEM_LIMIT_BYTES),
    )(dw_full, x2, a_vec, b_vec, w_exp_bd, b_exp_t, w_cmp_bd, b_cmp_t)

    return y2.reshape(N, D, H, W, C)


# ---------------------------------------------------------------------------
# pure-JAX reference (matches the PyTorch module, channels-last layout)
# ---------------------------------------------------------------------------
def conv_block_ref(x, params, *, scale, k_size, num_groups=32):
    N, D, H, W, C = x.shape
    p = (k_size - 1) // 2
    rhs = params["w_dw"][:, :, :, None, :]          # (k,k,k,1,C) == DHWIO, depthwise
    dw = lax.conv_general_dilated(
        x, rhs, window_strides=(1, 1, 1), padding=[(p, p)] * 3,
        dimension_numbers=("NDHWC", "DHWIO", "NDHWC"),
        feature_group_count=C, precision=lax.Precision.HIGHEST)
    g = num_groups
    xg = dw.reshape(N, D * H * W, g, C // g)
    mean = xg.mean(axis=(1, 3), keepdims=True)
    var = ((xg - mean) ** 2).mean(axis=(1, 3), keepdims=True)
    xn = ((xg - mean) / jnp.sqrt(var + _EPS)).reshape(N, D, H, W, C)
    xn = xn * params["gamma"] + params["beta"]
    h = jnp.einsum("ndhwc,ce->ndhwe", xn, params["w_exp"],
                   precision=lax.Precision.HIGHEST) + params["b_exp"]
    h = jax.nn.gelu(h, approximate=False)
    y = jnp.einsum("ndhwe,ec->ndhwc", h, params["w_cmp"],
                   precision=lax.Precision.HIGHEST) + params["b_cmp"]
    return y + x


if __name__ == "__main__":
    # conv_block(c_in=32, scale=2, k_size=3); GroupNorm(32, c_in) requires c_in % 32 == 0.
    C, scale, k = 32, 2, 3
    N, D, H, W = 2, 8, 8, 8

    key = jax.random.PRNGKey(0)
    ks = jax.random.split(key, 8)
    params = {
        # dw_conv.weight (PyTorch (C,1,k,k,k)) stored as (k,k,k,C)
        "w_dw": 0.2 * jax.random.normal(ks[0], (k, k, k, C), jnp.float32),
        # GroupNorm affine
        "gamma": 1.0 + 0.1 * jax.random.normal(ks[1], (C,), jnp.float32),
        "beta": 0.1 * jax.random.normal(ks[2], (C,), jnp.float32),
        # expansion 1x1x1 conv (PyTorch (C*scale, C,1,1,1)) stored as (C, C*scale)
        "w_exp": 0.2 * jax.random.normal(ks[3], (C, C * scale), jnp.float32),
        "b_exp": 0.1 * jax.random.normal(ks[4], (C * scale,), jnp.float32),
        # compression 1x1x1 conv (PyTorch (C, C*scale,1,1,1)) stored as (C*scale, C)
        "w_cmp": 0.2 * jax.random.normal(ks[5], (C * scale, C), jnp.float32),
        "b_cmp": 0.1 * jax.random.normal(ks[6], (C,), jnp.float32),
    }
    x_ncdhw = jax.random.normal(ks[7], (N, C, D, H, W), jnp.float32)   # PyTorch layout
    x = jnp.transpose(x_ncdhw, (0, 2, 3, 4, 1))                        # -> NDHWC

    fwd = jax.jit(functools.partial(conv_block_pallas, scale=scale, k_size=k))
    out = jax.block_until_ready(fwd(x, params))

    ref = conv_block_ref(x, params, scale=scale, k_size=k)
    max_err = float(jnp.max(jnp.abs(out - ref)))
    assert out.shape == (N, D, H, W, C)
    assert jnp.allclose(out, ref, atol=3e-2, rtol=3e-2), f"max abs err = {max_err}"
    print("KERNEL_OK")
</pallas_src>

<mosaic_0001>
module attributes {stable_mosaic.version = 11 : i64} {
  func.func @kernel(%arg0: i32, %arg1: i32, %arg2: memref<1x8x8x256xf32, #tpu.memory_space<vmem>>, %arg3: memref<1x1x8x256xf32, #tpu.memory_space<vmem>>, %arg4: memref<1x1x8x256xf32, #tpu.memory_space<vmem>>, %arg5: memref<27x256xf32, #tpu.memory_space<vmem>>, %arg6: memref<1x8x8x256xf32, #tpu.memory_space<vmem>>, %arg7: memref<1x2x256xf32, #tpu.memory_space<vmem>>, %arg8: memref<64x256xf32, #tpu.memory_space<vmem>>) attributes {dimension_semantics = [#tpu.dimension_semantics<parallel>, #tpu.dimension_semantics<arbitrary>], iteration_bounds = array<i64: 2, 1>, scalar_prefetch = 0 : i64, scratch_operands = 1 : i64, tpu.core_type = #tpu.core_type<tc>, window_params = [{transform_indices = @transform_0, window_bounds = array<i64: 1, 8, 8, 256>}, {transform_indices = @transform_1, window_bounds = array<i64: 1, 1, 8, 256>}, {transform_indices = @transform_2, window_bounds = array<i64: 1, 1, 8, 256>}, {pipeline_mode = #tpu.pipeline_mode<synchronous>, transform_indices = @transform_3, window_bounds = array<i64: 27, 256>}, {transform_indices = @transform_4, window_bounds = array<i64: 1, 8, 8, 256>}, {transform_indices = @transform_5, window_bounds = array<i64: 1, 2, 256>}]} {
    %c0 = arith.constant 0 : index
    %c0_0 = arith.constant 0 : index
    %c0_1 = arith.constant 0 : index
    %c0_2 = arith.constant 0 : index
    %0 = vector.load %arg2[%c0, %c0_0, %c0_1, %c0_2] : memref<1x8x8x256xf32, #tpu.memory_space<vmem>>, vector<1x8x8x256xf32>
    %1 = vector.shape_cast %0 : vector<1x8x8x256xf32> to vector<64x256xf32>
    %c0_3 = arith.constant 0 : index
    %c0_4 = arith.constant 0 : index
    %c0_5 = arith.constant 0 : index
    %c0_6 = arith.constant 0 : index
    %2 = vector.load %arg3[%c0_3, %c0_4, %c0_5, %c0_6] : memref<1x1x8x256xf32, #tpu.memory_space<vmem>>, vector<1x1x8x256xf32>
    %3 = vector.shape_cast %2 : vector<1x1x8x256xf32> to vector<8x256xf32>
    %c0_i32 = arith.constant 0 : i32
    %4 = arith.cmpi sgt, %arg1, %c0_i32 : i32
    %5 = arith.extui %4 : i1 to i32
    %6 = arith.sitofp %5 : i32 to f32
    %7 = vector.broadcast %6 : f32 to vector<8x256xf32>
    %8 = arith.mulf %3, %7 : vector<8x256xf32>
    %c0_7 = arith.constant 0 : index
    %c0_8 = arith.constant 0 : index
    %c0_9 = arith.constant 0 : index
    %c0_10 = arith.constant 0 : index
    %9 = vector.load %arg4[%c0_7, %c0_8, %c0_9, %c0_10] : memref<1x1x8x256xf32, #tpu.memory_space<vmem>>, vector<1x1x8x256xf32>
    %10 = vector.shape_cast %9 : vector<1x1x8x256xf32> to vector<8x256xf32>
    %c0_i32_11 = arith.constant 0 : i32
    %11 = arith.cmpi slt, %arg1, %c0_i32_11 : i32
    %12 = arith.extui %11 : i1 to i32
    %13 = arith.sitofp %12 : i32 to f32
    %14 = vector.broadcast %13 : f32 to vector<8x256xf32>
    %15 = arith.mulf %10, %14 : vector<8x256xf32>
    %16 = tpu.concatenate %8, %1, %15 in 0 : vector<8x256xf32>, vector<64x256xf32>, vector<8x256xf32> -> vector<80x256xf32>
    %17 = tpu.iota {dimensions = array<i32: 0>} : vector<80x1xi32>
    %c8_i32 = arith.constant 8 : i32
    %c0_i32_12 = arith.constant 0 : i32
    %18 = arith.cmpi eq, %c8_i32, %c0_i32_12 : i32
    %c1_i32 = arith.constant 1 : i32
    %19 = arith.select %18, %c1_i32, %c8_i32 : i32
    %20 = vector.broadcast %19 : i32 to vector<80x1xi32>
    %21 = arith.remsi %17, %20 : vector<80x1xi32>
    %c0_i32_13 = arith.constant 0 : i32
    %22 = vector.broadcast %c0_i32_13 : i32 to vector<80x1xi32>
    %23 = arith.cmpi ne, %21, %22 : vector<80x1xi32>
    %c0_i32_14 = arith.constant 0 : i32
    %24 = vector.broadcast %c0_i32_14 : i32 to vector<80x1xi32>
    %25 = arith.cmpi slt, %21, %24 : vector<80x1xi32>
    %c0_i32_15 = arith.constant 0 : i32
    %26 = arith.cmpi slt, %19, %c0_i32_15 : i32
    %27 = vector.broadcast %26 : i1 to vector<80x1xi1>
    %28 = vector.broadcast %27 : vector<80x1xi1> to vector<80x1xi1>
    %29 = arith.xori %25, %28 : vector<80x1xi1>
    %30 = arith.andi %29, %23 : vector<80x1xi1>
    %31 = vector.broadcast %19 : i32 to vector<80x1xi32>
    %32 = arith.addi %21, %31 : vector<80x1xi32>
    %33 = arith.select %30, %32, %21 : vector<80x1xi1>, vector<80x1xi32>
    %c1_i32_16 = arith.constant 1 : i32
    %34 = tpu.dynamic_rotate %16 by %c1_i32_16 dim 0 : vector<80x256xf32>, i32 -> vector<80x256xf32>
    %c-1_i32 = arith.constant -1 : i32
    %35 = vector.broadcast %c-1_i32 : i32 to vector<80x1xi32>
    %36 = arith.addi %33, %35 : vector<80x1xi32>
    %c0_i32_17 = arith.constant 0 : i32
    %37 = vector.broadcast %c0_i32_17 : i32 to vector<80x1xi32>
    %38 = arith.cmpi sge, %36, %37 : vector<80x1xi32>
    %c-1_i32_18 = arith.constant -1 : i32
    %39 = vector.broadcast %c-1_i32_18 : i32 to vector<80x1xi32>
    %40 = arith.addi %33, %39 : vector<80x1xi32>
    %c8_i32_19 = arith.constant 8 : i32
    %41 = vector.broadcast %c8_i32_19 : i32 to vector<80x1xi32>
    %42 = arith.cmpi slt, %40, %41 : vector<80x1xi32>
    %43 = arith.andi %38, %42 : vector<80x1xi1>
    %cst = arith.constant 0.000000e+00 : f32
    %44 = vector.shape_cast %43 : vector<80x1xi1> to vector<80x1xi1>
    %45 = vector.broadcast %44 : vector<80x1xi1> to vector<80x256xi1>
    %46 = vector.broadcast %cst : f32 to vector<80x256xf32>
    %47 = arith.select %45, %34, %46 : vector<80x256xi1>, vector<80x256xf32>
    %c32_i32 = arith.constant 32 : i32
    %48 = tpu.dynamic_rotate %47 by %c32_i32 dim 1 : vector<80x256xf32>, i32 -> vector<80x256xf32>
    %c0_20 = arith.constant 0 : index
    %c0_21 = arith.constant 0 : index
    %49 = vector.load %arg5[%c0_20, %c0_21] : memref<27x256xf32, #tpu.memory_space<vmem>>, vector<1x256xf32>
    %50 = vector.extract_strided_slice %48 {offsets = [0, 0], sizes = [64, 256], strides = [1, 1]} : vector<80x256xf32> to vector<64x256xf32>
    %51 = vector.broadcast %49 : vector<1x256xf32> to vector<64x256xf32>
    %52 = arith.mulf %50, %51 : vector<64x256xf32>
    %c9 = arith.constant 9 : index
    %c0_22 = arith.constant 0 : index
    %53 = vector.load %arg5[%c9, %c0_22] : memref<27x256xf32, #tpu.memory_space<vmem>>, vector<1x256xf32>
    %54 = vector.extract_strided_slice %48 {offsets = [8, 0], sizes = [64, 256], strides = [1, 1]} : vector<80x256xf32> to vector<64x256xf32>
    %55 = vector.broadcast %53 : vector<1x256xf32> to vector<64x256xf32>
    %56 = arith.mulf %54, %55 : vector<64x256xf32>
    %57 = arith.addf %52, %56 : vector<64x256xf32>
    %c18 = arith.constant 18 : index
    %c0_23 = arith.constant 0 : index
    %58 = vector.load %arg5[%c18, %c0_23] : memref<27x256xf32, #tpu.memory_space<vmem>>, vector<1x256xf32>
    %59 = vector.extract_strided_slice %48 {offsets = [16, 0], sizes = [64, 256], strides = [1, 1]} : vector<80x256xf32> to vector<64x256xf32>
    %60 = vector.broadcast %58 : vector<1x256xf32> to vector<64x256xf32>
    %61 = arith.mulf %59, %60 : vector<64x256xf32>
    %62 = arith.addf %57, %61 : vector<64x256xf32>
    %c0_24 = arith.constant 0 : index
    %c0_25 = arith.constant 0 : index
    %63 = vector.load %arg8[%c0_24, %c0_25] : memref<64x256xf32, #tpu.memory_space<vmem>>, vector<64x256xf32>
    tpu.vector_store %arg8[%c0_24, %c0_25], %62 {strides = array<i32>} : memref<64x256xf32, #tpu.memory_space<vmem>>, vector<64x256xf32>,
    %c1 = arith.constant 1 : index
    %c0_26 = arith.constant 0 : index
    %64 = vector.load %arg5[%c1, %c0_26] : memref<27x256xf32, #tpu.memory_space<vmem>>, vector<1x256xf32>
    %65 = vector.extract_strided_slice %47 {offsets = [0, 0], sizes = [64, 256], strides = [1, 1]} : vector<80x256xf32> to vector<64x256xf32>
    %66 = vector.broadcast %64 : vector<1x256xf32> to vector<64x256xf32>
    %67 = arith.mulf %65, %66 : vector<64x256xf32>
    %c10 = arith.constant 10 : index
    %c0_27 = arith.constant 0 : index
    %68 = vector.load %arg5[%c10, %c0_27] : memref<27x256xf32, #tpu.memory_space<vmem>>, vector<1x256xf32>
    %69 = vector.extract_strided_slice %47 {offsets = [8, 0], sizes = [64, 256], strides = [1, 1]} : vector<80x256xf32> to vector<64x256xf32>
    %70 = vector.broadcast %68 : vector<1x256xf32> to vector<64x256xf32>
    %71 = arith.mulf %69, %70 : vector<64x256xf32>
    %72 = arith.addf %67, %71 : vector<64x256xf32>
    %c19 = arith.constant 19 : index
    %c0_28 = arith.constant 0 : index
    %73 = vector.load %arg5[%c19, %c0_28] : memref<27x256xf32, #tpu.memory_space<vmem>>, vector<1x256xf32>
    %74 = vector.extract_strided_slice %47 {offsets = [16, 0], sizes = [64, 256], strides = [1, 1]} : vector<80x256xf32> to vector<64x256xf32>
    %75 = vector.broadcast %73 : vector<1x256xf32> to vector<64x256xf32>
    %76 = arith.mulf %74, %75 : vector<64x256xf32>
    %77 = arith.addf %72, %76 : vector<64x256xf32>
    %c0_29 = arith.constant 0 : index
    %c0_30 = arith.constant 0 : index
    %78 = vector.load %arg8[%c0_29, %c0_30] : memref<64x256xf32, #tpu.memory_space<vmem>>, vector<64x256xf32>
    %79 = arith.addf %78, %77 : vector<64x256xf32>
    %c0_31 = arith.constant 0 : index
    %c0_32 = arith.constant 0 : index
    %80 = vector.load %arg8[%c0_31, %c0_32] : memref<64x256xf32, #tpu.memory_space<vmem>>, vector<64x256xf32>
    tpu.vector_store %arg8[%c0_31, %c0_32], %79 {strides = array<i32>} : memref<64x256xf32, #tpu.memory_space<vmem>>, vector<64x256xf32>,
    %c224_i32 = arith.constant 224 : i32
    %81 = tpu.dynamic_rotate %47 by %c224_i32 dim 1 : vector<80x256xf32>, i32 -> vector<80x256xf32>
    %c2 = arith.constant 2 : index
    %c0_33 = arith.constant 0 : index
    %82 = vector.load %arg5[%c2, %c0_33] : memref<27x256xf32, #tpu.memory_space<vmem>>, vector<1x256xf32>
    %83 = vector.extract_strided_slice %81 {offsets = [0, 0], sizes = [64, 256], strides = [1, 1]} : vector<80x256xf32> to vector<64x256xf32>
    %84 = vector.broadcast %82 : vector<1x256xf32> to vector<64x256xf32>
    %85 = arith.mulf %83, %84 : vector<64x256xf32>
    %c11 = arith.constant 11 : index
    %c0_34 = arith.constant 0 : index
    %86 = vector.load %arg5[%c11, %c0_34] : memref<27x256xf32, #tpu.memory_space<vmem>>, vector<1x256xf32>
    %87 = vector.extract_strided_slice %81 {offsets = [8, 0], sizes = [64, 256], strides = [1, 1]} : vector<80x256xf32> to vector<64x256xf32>
    %88 = vector.broadcast %86 : vector<1x256xf32> to vector<64x256xf32>
    %89 = arith.mulf %87, %88 : vector<64x256xf32>
    %90 = arith.addf %85, %89 : vector<64x256xf32>
    %c20 = arith.constant 20 : index
    %c0_35 = arith.constant 0 : index
    %91 = vector.load %arg5[%c20, %c0_35] : memref<27x256xf32, #tpu.memory_space<vmem>>, vector<1x256xf32>
    %92 = vector.extract_strided_slice %81 {offsets = [16, 0], sizes = [64, 256], strides = [1, 1]} : vector<80x256xf32> to vector<64x256xf32>
    %93 = vector.broadcast %91 : vector<1x256xf32> to vector<64x256xf32>
    %94 = arith.mulf %92, %93 : vector<64x256xf32>
    %95 = arith.addf %90, %94 : vector<64x256xf32>
    %c0_36 = arith.constant 0 : index
    %c0_37 = arith.constant 0 : index
    %96 = vector.load %arg8[%c0_36, %c0_37] : memref<64x256xf32, #tpu.memory_space<vmem>>, vector<64x256xf32>
    %97 = arith.addf %96, %95 : vector<64x256xf32>
    %c0_38 = arith.constant 0 : index
    %c0_39 = arith.constant 0 : index
    %98 = vector.load %arg8[%c0_38, %c0_39] : memref<64x256xf32, #tpu.memory_space<vmem>>, vector<64x256xf32>
    tpu.vector_store %arg8[%c0_38, %c0_39], %97 {strides = array<i32>} : memref<64x256xf32, #tpu.memory_space<vmem>>, vector<64x256xf32>,
    %c32_i32_40 = arith.constant 32 : i32
    %99 = tpu.dynamic_rotate %16 by %c32_i32_40 dim 1 : vector<80x256xf32>, i32 -> vector<80x256xf32>
    %c3 = arith.constant 3 : index
    %c0_41 = arith.constant 0 : index
    %100 = vector.load %arg5[%c3, %c0_41] : memref<27x256xf32, #tpu.memory_space<vmem>>, vector<1x256xf32>
    %101 = vector.extract_strided_slice %99 {offsets = [0, 0], sizes = [64, 256], strides = [1, 1]} : vector<80x256xf32> to vector<64x256xf32>
    %102 = vector.broadcast %100 : vector<1x256xf32> to vector<64x256xf32>
    %103 = arith.mulf %101, %102 : vector<64x256xf32>
    %c12 = arith.constant 12 : index
    %c0_42 = arith.constant 0 : index
    %104 = vector.load %arg5[%c12, %c0_42] : memref<27x256xf32, #tpu.memory_space<vmem>>, vector<1x256xf32>
    %105 = vector.extract_strided_slice %99 {offsets = [8, 0], sizes = [64, 256], strides = [1, 1]} : vector<80x256xf32> to vector<64x256xf32>
    %106 = vector.broadcast %104 : vector<1x256xf32> to vector<64x256xf32>
    %107 = arith.mulf %105, %106 : vector<64x256xf32>
    %108 = arith.addf %103, %107 : vector<64x256xf32>
    %c21 = arith.constant 21 : index
    %c0_43 = arith.constant 0 : index
    %109 = vector.load %arg5[%c21, %c0_43] : memref<27x256xf32, #tpu.memory_space<vmem>>, vector<1x256xf32>
    %110 = vector.extract_strided_slice %99 {offsets = [16, 0], sizes = [64, 256], strides = [1, 1]} : vector<80x256xf32> to vector<64x256xf32>
    %111 = vector.broadcast %109 : vector<1x256xf32> to vector<64x256xf32>
    %112 = arith.mulf %110, %111 : vector<64x256xf32>
    %113 = arith.addf %108, %112 : vector<64x256xf32>
    %c0_44 = arith.constant 0 : index
    %c0_45 = arith.constant 0 : index
    %114 = vector.load %arg8[%c0_44, %c0_45] : memref<64x256xf32, #tpu.memory_space<vmem>>, vector<64x256xf32>
    %115 = arith.addf %114, %113 : vector<64x256xf32>
    %c0_46 = arith.constant 0 : index
    %c0_47 = arith.constant 0 : index
    %116 = vector.load %arg8[%c0_46, %c0_47] : memref<64x256xf32, #tpu.memory_space<vmem>>, vector<64x256xf32>
    tpu.vector_store %arg8[%c0_46, %c0_47], %115 {strides = array<i32>} : memref<64x256xf32, #tpu.memory_space<vmem>>, vector<64x256xf32>,
    %c4 = arith.constant 4 : index
    %c0_48 = arith.constant 0 : index
    %117 = vector.load %arg5[%c4, %c0_48] : memref<27x256xf32, #tpu.memory_space<vmem>>, vector<1x256xf32>
    %118 = vector.extract_strided_slice %16 {offsets = [0, 0], sizes = [64, 256], strides = [1, 1]} : vector<80x256xf32> to vector<64x256xf32>
    %119 = vector.broadcast %117 : vector<1x256xf32> to vector<64x256xf32>
    %120 = arith.mulf %118, %119 : vector<64x256xf32>
    %c13 = arith.constant 13 : index
    %c0_49 = arith.constant 0 : index
    %121 = vector.load %arg5[%c13, %c0_49] : memref<27x256xf32, #tpu.memory_space<vmem>>, vector<1x256xf32>
    %122 = vector.extract_strided_slice %16 {offsets = [8, 0], sizes = [64, 256], strides = [1, 1]} : vector<80x256xf32> to vector<64x256xf32>
    %123 = vector.broadcast %121 : vector<1x256xf32> to vector<64x256xf32>
    %124 = arith.mulf %122, %123 : vector<64x256xf32>
    %125 = arith.addf %120, %124 : vector<64x256xf32>
    %c22 = arith.constant 22 : index
    %c0_50 = arith.constant 0 : index
    %126 = vector.load %arg5[%c22, %c0_50] : memref<27x256xf32, #tpu.memory_space<vmem>>, vector<1x256xf32>
    %127 = vector.extract_strided_slice %16 {offsets = [16, 0], sizes = [64, 256], strides = [1, 1]} : vector<80x256xf32> to vector<64x256xf32>
    %128 = vector.broadcast %126 : vector<1x256xf32> to vector<64x256xf32>
    %129 = arith.mulf %127, %128 : vector<64x256xf32>
    %130 = arith.addf %125, %129 : vector<64x256xf32>
    %c0_51 = arith.constant 0 : index
    %c0_52 = arith.constant 0 : index
    %131 = vector.load %arg8[%c0_51, %c0_52] : memref<64x256xf32, #tpu.memory_space<vmem>>, vector<64x256xf32>
    %132 = arith.addf %131, %130 : vector<64x256xf32>
    %c0_53 = arith.constant 0 : index
    %c0_54 = arith.constant 0 : index
    %133 = vector.load %arg8[%c0_53, %c0_54] : memref<64x256xf32, #tpu.memory_space<vmem>>, vector<64x256xf32>
    tpu.vector_store %arg8[%c0_53, %c0_54], %132 {strides = array<i32>} : memref<64x256xf32, #tpu.memory_space<vmem>>, vector<64x256xf32>,
    %c224_i32_55 = arith.constant 224 : i32
    %134 = tpu.dynamic_rotate %16 by %c224_i32_55 dim 1 : vector<80x256xf32>, i32 -> vector<80x256xf32>
    %c5 = arith.constant 5 : index
    %c0_56 = arith.constant 0 : index
    %135 = vector.load %arg5[%c5, %c0_56] : memref<27x256xf32, #tpu.memory_space<vmem>>, vector<1x256xf32>
    %136 = vector.extract_strided_slice %134 {offsets = [0, 0], sizes = [64, 256], strides = [1, 1]} : vector<80x256xf32> to vector<64x256xf32>
    %137 = vector.broadcast %135 : vector<1x256xf32> to vector<64x256xf32>
    %138 = arith.mulf %136, %137 : vector<64x256xf32>
    %c14 = arith.constant 14 : index
    %c0_57 = arith.constant 0 : index
    %139 = vector.load %arg5[%c14, %c0_57] : memref<27x256xf32, #tpu.memory_space<vmem>>, vector<1x256xf32>
    %140 = vector.extract_strided_slice %134 {offsets = [8, 0], sizes = [64, 256], strides = [1, 1]} : vector<80x256xf32> to vector<64x256xf32>
    %141 = vector.broadcast %139 : vector<1x256xf32> to vector<64x256xf32>
    %142 = arith.mulf %140, %141 : vector<64x256xf32>
    %143 = arith.addf %138, %142 : vector<64x256xf32>
    %c23 = arith.constant 23 : index
    %c0_58 = arith.constant 0 : index
    %144 = vector.load %arg5[%c23, %c0_58] : memref<27x256xf32, #tpu.memory_space<vmem>>, vector<1x256xf32>
    %145 = vector.extract_strided_slice %134 {offsets = [16, 0], sizes = [64, 256], strides = [1, 1]} : vector<80x256xf32> to vector<64x256xf32>
    %146 = vector.broadcast %144 : vector<1x256xf32> to vector<64x256xf32>
    %147 = arith.mulf %145, %146 : vector<64x256xf32>
    %148 = arith.addf %143, %147 : vector<64x256xf32>
    %c0_59 = arith.constant 0 : index
    %c0_60 = arith.constant 0 : index
    %149 = vector.load %arg8[%c0_59, %c0_60] : memref<64x256xf32, #tpu.memory_space<vmem>>, vector<64x256xf32>
    %150 = arith.addf %149, %148 : vector<64x256xf32>
    %c0_61 = arith.constant 0 : index
    %c0_62 = arith.constant 0 : index
    %151 = vector.load %arg8[%c0_61, %c0_62] : memref<64x256xf32, #tpu.memory_space<vmem>>, vector<64x256xf32>
    tpu.vector_store %arg8[%c0_61, %c0_62], %150 {strides = array<i32>} : memref<64x256xf32, #tpu.memory_space<vmem>>, vector<64x256xf32>,
    %c79_i32 = arith.constant 79 : i32
    %152 = tpu.dynamic_rotate %16 by %c79_i32 dim 0 : vector<80x256xf32>, i32 -> vector<80x256xf32>
    %c1_i32_63 = arith.constant 1 : i32
    %153 = vector.broadcast %c1_i32_63 : i32 to vector<80x1xi32>
    %154 = arith.addi %33, %153 : vector<80x1xi32>
    %c0_i32_64 = arith.constant 0 : i32
    %155 = vector.broadcast %c0_i32_64 : i32 to vector<80x1xi32>
    %156 = arith.cmpi sge, %154, %155 : vector<80x1xi32>
    %c1_i32_65 = arith.constant 1 : i32
    %157 = vector.broadcast %c1_i32_65 : i32 to vector<80x1xi32>
    %158 = arith.addi %33, %157 : vector<80x1xi32>
    %c8_i32_66 = arith.constant 8 : i32
    %159 = vector.broadcast %c8_i32_66 : i32 to vector<80x1xi32>
    %160 = arith.cmpi slt, %158, %159 : vector<80x1xi32>
    %161 = arith.andi %156, %160 : vector<80x1xi1>
    %cst_67 = arith.constant 0.000000e+00 : f32
    %162 = vector.shape_cast %161 : vector<80x1xi1> to vector<80x1xi1>
    %163 = vector.broadcast %162 : vector<80x1xi1> to vector<80x256xi1>
    %164 = vector.broadcast %cst_67 : f32 to vector<80x256xf32>
    %165 = arith.select %163, %152, %164 : vector<80x256xi1>, vector<80x256xf32>
    %c32_i32_68 = arith.constant 32 : i32
    %166 = tpu.dynamic_rotate %165 by %c32_i32_68 dim 1 : vector<80x256xf32>, i32 -> vector<80x256xf32>
    %c6 = arith.constant 6 : index
    %c0_69 = arith.constant 0 : index
    %167 = vector.load %arg5[%c6, %c0_69] : memref<27x256xf32, #tpu.memory_space<vmem>>, vector<1x256xf32>
    %168 = vector.extract_strided_slice %166 {offsets = [0, 0], sizes = [64, 256], strides = [1, 1]} : vector<80x256xf32> to vector<64x256xf32>
    %169 = vector.broadcast %167 : vector<1x256xf32> to vector<64x256xf32>
    %170 = arith.mulf %168, %169 : vector<64x256xf32>
    %c15 = arith.constant 15 : index
    %c0_70 = arith.constant 0 : index
    %171 = vector.load %arg5[%c15, %c0_70] : memref<27x256xf32, #tpu.memory_space<vmem>>, vector<1x256xf32>
    %172 = vector.extract_strided_slice %166 {offsets = [8, 0], sizes = [64, 256], strides = [1, 1]} : vector<80x256xf32> to vector<64x256xf32>
    %173 = vector.broadcast %171 : vector<1x256xf32> to vector<64x256xf32>
    %174 = arith.mulf %172, %173 : vector<64x256xf32>
    %175 = arith.addf %170, %174 : vector<64x256xf32>
    %c24 = arith.constant 24 : index
    %c0_71 = arith.constant 0 : index
    %176 = vector.load %arg5[%c24, %c0_71] : memref<27x256xf32, #tpu.memory_space<vmem>>, vector<1x256xf32>
    %177 = vector.extract_strided_slice %166 {offsets = [16, 0], sizes = [64, 256], strides = [1, 1]} : vector<80x256xf32> to vector<64x256xf32>
    %178 = vector.broadcast %176 : vector<1x256xf32> to vector<64x256xf32>
    %179 = arith.mulf %177, %178 : vector<64x256xf32>
    %180 = arith.addf %175, %179 : vector<64x256xf32>
    %c0_72 = arith.constant 0 : index
    %c0_73 = arith.constant 0 : index
    %181 = vector.load %arg8[%c0_72, %c0_73] : memref<64x256xf32, #tpu.memory_space<vmem>>, vector<64x256xf32>
    %182 = arith.addf %181, %180 : vector<64x256xf32>
    %c0_74 = arith.constant 0 : index
    %c0_75 = arith.constant 0 : index
    %183 = vector.load %arg8[%c0_74, %c0_75] : memref<64x256xf32, #tpu.memory_space<vmem>>, vector<64x256xf32>
    tpu.vector_store %arg8[%c0_74, %c0_75], %182 {strides = array<i32>} : memref<64x256xf32, #tpu.memory_space<vmem>>, vector<64x256xf32>,
    %c7 = arith.constant 7 : index
    %c0_76 = arith.constant 0 : index
    %184 = vector.load %arg5[%c7, %c0_76] : memref<27x256xf32, #tpu.memory_space<vmem>>, vector<1x256xf32>
    %185 = vector.extract_strided_slice %165 {offsets = [0, 0], sizes = [64, 256], strides = [1, 1]} : vector<80x256xf32> to vector<64x256xf32>
    %186 = vector.broadcast %184 : vector<1x256xf32> to vector<64x256xf32>
    %187 = arith.mulf %185, %186 : vector<64x256xf32>
    %c16 = arith.constant 16 : index
    %c0_77 = arith.constant 0 : index
    %188 = vector.load %arg5[%c16, %c0_77] : memref<27x256xf32, #tpu.memory_space<vmem>>, vector<1x256xf32>
    %189 = vector.extract_strided_slice %165 {offsets = [8, 0], sizes = [64, 256], strides = [1, 1]} : vector<80x256xf32> to vector<64x256xf32>
    %190 = vector.broadcast %188 : vector<1x256xf32> to vector<64x256xf32>
    %191 = arith.mulf %189, %190 : vector<64x256xf32>
    %192 = arith.addf %187, %191 : vector<64x256xf32>
    %c25 = arith.constant 25 : index
    %c0_78 = arith.constant 0 : index
    %193 = vector.load %arg5[%c25, %c0_78] : memref<27x256xf32, #tpu.memory_space<vmem>>, vector<1x256xf32>
    %194 = vector.extract_strided_slice %165 {offsets = [16, 0], sizes = [64, 256], strides = [1, 1]} : vector<80x256xf32> to vector<64x256xf32>
    %195 = vector.broadcast %193 : vector<1x256xf32> to vector<64x256xf32>
    %196 = arith.mulf %194, %195 : vector<64x256xf32>
    %197 = arith.addf %192, %196 : vector<64x256xf32>
    %c0_79 = arith.constant 0 : index
    %c0_80 = arith.constant 0 : index
    %198 = vector.load %arg8[%c0_79, %c0_80] : memref<64x256xf32, #tpu.memory_space<vmem>>, vector<64x256xf32>
    %199 = arith.addf %198, %197 : vector<64x256xf32>
    %c0_81 = arith.constant 0 : index
    %c0_82 = arith.constant 0 : index
    %200 = vector.load %arg8[%c0_81, %c0_82] : memref<64x256xf32, #tpu.memory_space<vmem>>, vector<64x256xf32>
    tpu.vector_store %arg8[%c0_81, %c0_82], %199 {strides = array<i32>} : memref<64x256xf32, #tpu.memory_space<vmem>>, vector<64x256xf32>,
    %c224_i32_83 = arith.constant 224 : i32
    %201 = tpu.dynamic_rotate %165 by %c224_i32_83 dim 1 : vector<80x256xf32>, i32 -> vector<80x256xf32>
    %c8 = arith.constant 8 : index
    %c0_84 = arith.constant 0 : index
    %202 = vector.load %arg5[%c8, %c0_84] : memref<27x256xf32, #tpu.memory_space<vmem>>, vector<1x256xf32>
    %203 = vector.extract_strided_slice %201 {offsets = [0, 0], sizes = [64, 256], strides = [1, 1]} : vector<80x256xf32> to vector<64x256xf32>
    %204 = vector.broadcast %202 : vector<1x256xf32> to vector<64x256xf32>
    %205 = arith.mulf %203, %204 : vector<64x256xf32>
    %c17 = arith.constant 17 : index
    %c0_85 = arith.constant 0 : index
    %206 = vector.load %arg5[%c17, %c0_85] : memref<27x256xf32, #tpu.memory_space<vmem>>, vector<1x256xf32>
    %207 = vector.extract_strided_slice %201 {offsets = [8, 0], sizes = [64, 256], strides = [1, 1]} : vector<80x256xf32> to vector<64x256xf32>
    %208 = vector.broadcast %206 : vector<1x256xf32> to vector<64x256xf32>
    %209 = arith.mulf %207, %208 : vector<64x256xf32>
    %210 = arith.addf %205, %209 : vector<64x256xf32>
    %c26 = arith.constant 26 : index
    %c0_86 = arith.constant 0 : index
    %211 = vector.load %arg5[%c26, %c0_86] : memref<27x256xf32, #tpu.memory_space<vmem>>, vector<1x256xf32>
    %212 = vector.extract_strided_slice %201 {offsets = [16, 0], sizes = [64, 256], strides = [1, 1]} : vector<80x256xf32> to vector<64x256xf32>
    %213 = vector.broadcast %211 : vector<1x256xf32> to vector<64x256xf32>
    %214 = arith.mulf %212, %213 : vector<64x256xf32>
    %215 = arith.addf %210, %214 : vector<64x256xf32>
    %c0_87 = arith.constant 0 : index
    %c0_88 = arith.constant 0 : index
    %216 = vector.load %arg8[%c0_87, %c0_88] : memref<64x256xf32, #tpu.memory_space<vmem>>, vector<64x256xf32>
    %217 = arith.addf %216, %215 : vector<64x256xf32>
    %c0_89 = arith.constant 0 : index
    %c0_90 = arith.constant 0 : index
    %218 = vector.load %arg8[%c0_89, %c0_90] : memref<64x256xf32, #tpu.memory_space<vmem>>, vector<64x256xf32>
    tpu.vector_store %arg8[%c0_89, %c0_90], %217 {strides = array<i32>} : memref<64x256xf32, #tpu.memory_space<vmem>>, vector<64x256xf32>,
    %c0_91 = arith.constant 0 : index
    %c0_92 = arith.constant 0 : index
    %219 = vector.load %arg8[%c0_91, %c0_92] : memref<64x256xf32, #tpu.memory_space<vmem>>, vector<64x256xf32>
    %220 = vector.shape_cast %219 : vector<64x256xf32> to vector<1x8x8x256xf32>
    %c0_93 = arith.constant 0 : index
    %c0_94 = arith.constant 0 : index
    %c0_95 = arith.constant 0 : index
    %c0_96 = arith.constant 0 : index
    %221 = vector.load %arg6[%c0_93, %c0_94, %c0_95, %c0_96] : memref<1x8x8x256xf32, #tpu.memory_space<vmem>>, vector<1x8x8x256xf32>
    tpu.vector_store %arg6[%c0_93, %c0_94, %c0_95, %c0_96], %220 {strides = array<i32>} : memref<1x8x8x256xf32, #tpu.memory_space<vmem>>, vector<1x8x8x256xf32>,
    %cst_97 = arith.constant dense<0.000000e+00> : vector<256xf32>
    %222 = vector.multi_reduction <add>, %219, %cst_97 [0] : vector<64x256xf32> to vector<256xf32>
    %223 = vector.shape_cast %222 : vector<256xf32> to vector<1x256xf32>
    %224 = arith.mulf %219, %219 : vector<64x256xf32>
    %cst_98 = arith.constant dense<0.000000e+00> : vector<256xf32>
    %225 = vector.multi_reduction <add>, %224, %cst_98 [0] : vector<64x256xf32> to vector<256xf32>
    %226 = vector.shape_cast %225 : vector<256xf32> to vector<1x256xf32>
    %227 = tpu.concatenate %223, %226 in 0 : vector<1x256xf32>, vector<1x256xf32> -> vector<2x256xf32>
    %228 = vector.shape_cast %227 : vector<2x256xf32> to vector<1x2x256xf32>
    %c0_i32_99 = arith.constant 0 : i32
    %229 = arith.cmpi eq, %arg1, %c0_i32_99 : i32
    %230 = arith.extui %229 : i1 to i32
    %c0_i32_100 = arith.constant 0 : i32
    %231 = arith.cmpi ne, %230, %c0_i32_100 : i32
    scf.if %231 {
      %c0_103 = arith.constant 0 : index
      %c0_104 = arith.constant 0 : index
      %c0_105 = arith.constant 0 : index
      %235 = vector.load %arg7[%c0_103, %c0_104, %c0_105] : memref<1x2x256xf32, #tpu.memory_space<vmem>>, vector<1x2x256xf32>
      tpu.vector_store %arg7[%c0_103, %c0_104, %c0_105], %228 {strides = array<i32>} : memref<1x2x256xf32, #tpu.memory_space<vmem>>, vector<1x2x256xf32>,
    } else {
    }
    %c0_i32_101 = arith.constant 0 : i32
    %232 = arith.cmpi ne, %arg1, %c0_i32_101 : i32
    %233 = arith.extui %232 : i1 to i32
    %c0_i32_102 = arith.constant 0 : i32
    %234 = arith.cmpi ne, %233, %c0_i32_102 : i32
    scf.if %234 {
      %c0_103 = arith.constant 0 : index
      %c0_104 = arith.constant 0 : index
      %c0_105 = arith.constant 0 : index
      %235 = vector.load %arg7[%c0_103, %c0_104, %c0_105] : memref<1x2x256xf32, #tpu.memory_space<vmem>>, vector<1x2x256xf32>
      %236 = arith.addf %235, %228 : vector<1x2x256xf32>
      %c0_106 = arith.constant 0 : index
      %c0_107 = arith.constant 0 : index
      %c0_108 = arith.constant 0 : index
      %237 = vector.load %arg7[%c0_106, %c0_107, %c0_108] : memref<1x2x256xf32, #tpu.memory_space<vmem>>, vector<1x2x256xf32>
      tpu.vector_store %arg7[%c0_106, %c0_107, %c0_108], %236 {strides = array<i32>} : memref<1x2x256xf32, #tpu.memory_space<vmem>>, vector<1x2x256xf32>,
    } else {
    }
    return
  }
  func.func @transform_0(%arg0: i32, %arg1: i32) -> (i32, i32, i32, i32) {
    %c0_i32 = arith.constant 0 : i32
    %c0_i32_0 = arith.constant 0 : i32
    %c0_i32_1 = arith.constant 0 : i32
    return %arg0, %arg1, %c0_i32, %c0_i32_0 : i32, i32, i32, i32
  }
  func.func @transform_1(%arg0: i32, %arg1: i32) -> (i32, i32, i32, i32) {
    %c8_i32 = arith.constant 8 : i32
    %0 = arith.muli %arg1, %c8_i32 : i32
    %c1_i32 = arith.constant 1 : i32
    %1 = arith.subi %0, %c1_i32 : i32
    %c0_i32 = arith.constant 0 : i32
    %2 = arith.maxsi %1, %c0_i32 : i32
    %c0_i32_0 = arith.constant 0 : i32
    %c0_i32_1 = arith.constant 0 : i32
    %c0_i32_2 = arith.constant 0 : i32
    return %arg0, %2, %c0_i32_0, %c0_i32_1 : i32, i32, i32, i32
  }
  func.func @transform_2(%arg0: i32, %arg1: i32) -> (i32, i32, i32, i32) {
    %c1_i32 = arith.constant 1 : i32
    %0 = arith.addi %arg1, %c1_i32 : i32
    %c8_i32 = arith.constant 8 : i32
    %1 = arith.muli %0, %c8_i32 : i32
    %c7_i32 = arith.constant 7 : i32
    %2 = arith.minsi %1, %c7_i32 : i32
    %c0_i32 = arith.constant 0 : i32
    %c0_i32_0 = arith.constant 0 : i32
    %c0_i32_1 = arith.constant 0 : i32
    return %arg0, %2, %c0_i32, %c0_i32_0 : i32, i32, i32, i32
  }
  func.func @transform_3(%arg0: i32, %arg1: i32) -> (i32, i32) {
    %c0_i32 = arith.constant 0 : i32
    %c0_i32_0 = arith.constant 0 : i32
    %c0_i32_1 = arith.constant 0 : i32
    return %c0_i32, %c0_i32_0 : i32, i32
  }
  func.func @transform_4(%arg0: i32, %arg1: i32) -> (i32, i32, i32, i32) {
    %c0_i32 = arith.constant 0 : i32
    %c0_i32_0 = arith.constant 0 : i32
    %c0_i32_1 = arith.constant 0 : i32
    return %arg0, %arg1, %c0_i32, %c0_i32_0 : i32, i32, i32, i32
  }
  func.func @transform_5(%arg0: i32, %arg1: i32) -> (i32, i32, i32) {
    %c0_i32 = arith.constant 0 : i32
    %c0_i32_0 = arith.constant 0 : i32
    %c0_i32_1 = arith.constant 0 : i32
    return %arg0, %c0_i32, %c0_i32_0 : i32, i32, i32
  }
}

module attributes {stable_mosaic.version = 11 : i64} {
  func.func @kernel(%arg0: i32, %arg1: i32, %arg2: memref<1x8x8x256xf32, #tpu.memory_space<vmem>>, %arg3: memref<1x8x8x256xf32, #tpu.memory_space<vmem>>, %arg4: memref<1x1x256xf32, #tpu.memory_space<vmem>>, %arg5: memref<1x1x256xf32, #tpu.memory_space<vmem>>, %arg6: memref<256x512xbf16, #tpu.memory_space<vmem>>, %arg7: memref<1x512xf32, #tpu.memory_space<vmem>>, %arg8: memref<512x256xbf16, #tpu.memory_space<vmem>>, %arg9: memref<1x256xf32, #tpu.memory_space<vmem>>, %arg10: memref<1x8x8x256xf32, #tpu.memory_space<vmem>>) attributes {dimension_semantics = [#tpu.dimension_semantics<parallel>, #tpu.dimension_semantics<parallel>], iteration_bounds = array<i64: 2, 1>, scalar_prefetch = 0 : i64, scratch_operands = 0 : i64, tpu.core_type = #tpu.core_type<tc>, window_params = [{transform_indices = @transform_0, window_bounds = array<i64: 1, 8, 8, 256>}, {transform_indices = @transform_1, window_bounds = array<i64: 1, 8, 8, 256>}, {transform_indices = @transform_2, window_bounds = array<i64: 1, 1, 256>}, {transform_indices = @transform_3, window_bounds = array<i64: 1, 1, 256>}, {pipeline_mode = #tpu.pipeline_mode<synchronous>, transform_indices = @transform_4, window_bounds = array<i64: 256, 512>}, {pipeline_mode = #tpu.pipeline_mode<synchronous>, transform_indices = @transform_5, window_bounds = array<i64: 1, 512>}, {pipeline_mode = #tpu.pipeline_mode<synchronous>, transform_indices = @transform_6, window_bounds = array<i64: 512, 256>}, {pipeline_mode = #tpu.pipeline_mode<synchronous>, transform_indices = @transform_7, window_bounds = array<i64: 1, 256>}, {transform_indices = @transform_8, window_bounds = array<i64: 1, 8, 8, 256>}]} {
    %c0 = arith.constant 0 : index
    %c0_0 = arith.constant 0 : index
    %c0_1 = arith.constant 0 : index
    %c0_2 = arith.constant 0 : index
    %0 = vector.load %arg2[%c0, %c0_0, %c0_1, %c0_2] : memref<1x8x8x256xf32, #tpu.memory_space<vmem>>, vector<1x8x8x256xf32>
    %1 = vector.shape_cast %0 : vector<1x8x8x256xf32> to vector<64x256xf32>
    %c0_3 = arith.constant 0 : index
    %c0_4 = arith.constant 0 : index
    %c0_5 = arith.constant 0 : index
    %2 = vector.load %arg4[%c0_3, %c0_4, %c0_5] : memref<1x1x256xf32, #tpu.memory_space<vmem>>, vector<1x1x256xf32>
    %3 = vector.shape_cast %2 : vector<1x1x256xf32> to vector<1x256xf32>
    %4 = vector.broadcast %3 : vector<1x256xf32> to vector<64x256xf32>
    %5 = arith.mulf %1, %4 : vector<64x256xf32>
    %c0_6 = arith.constant 0 : index
    %c0_7 = arith.constant 0 : index
    %c0_8 = arith.constant 0 : index
    %6 = vector.load %arg5[%c0_6, %c0_7, %c0_8] : memref<1x1x256xf32, #tpu.memory_space<vmem>>, vector<1x1x256xf32>
    %7 = vector.shape_cast %6 : vector<1x1x256xf32> to vector<1x256xf32>
    %8 = vector.broadcast %7 : vector<1x256xf32> to vector<64x256xf32>
    %9 = arith.addf %5, %8 : vector<64x256xf32>
    %10 = arith.truncf %9 : vector<64x256xf32> to vector<64x256xbf16>
    %c0_9 = arith.constant 0 : index
    %c0_10 = arith.constant 0 : index
    %11 = vector.load %arg6[%c0_9, %c0_10] : memref<256x512xbf16, #tpu.memory_space<vmem>>, vector<256x512xbf16>
    %cst = arith.constant dense<0.000000e+00> : vector<64x512xf32>
    %12 = tpu.matmul %10, %11, %cst {dimension_numbers = #tpu.dot_dimension_numbers<[1], [0], [0], [1], [0, 0, 1, 1], [], []>} : vector<64x256xbf16>, vector<256x512xbf16>, vector<64x512xf32> -> vector<64x512xf32>
    %c0_11 = arith.constant 0 : index
    %c0_12 = arith.constant 0 : index
    %13 = vector.load %arg7[%c0_11, %c0_12] : memref<1x512xf32, #tpu.memory_space<vmem>>, vector<1x512xf32>
    %14 = vector.broadcast %13 : vector<1x512xf32> to vector<64x512xf32>
    %15 = arith.addf %12, %14 : vector<64x512xf32>
    %cst_13 = arith.constant 5.000000e-01 : f32
    %16 = vector.broadcast %cst_13 : f32 to vector<64x512xf32>
    %17 = arith.mulf %16, %15 : vector<64x512xf32>
    %cst_14 = arith.constant 0.707106769 : f32
    %18 = vector.broadcast %cst_14 : f32 to vector<64x512xf32>
    %19 = arith.mulf %15, %18 : vector<64x512xf32>
    %cst_15 = arith.constant -3.8325069 : f32
    %cst_16 = arith.constant 3.8325069 : f32
    %20 = vector.broadcast %cst_15 : f32 to vector<64x512xf32>
    %21 = arith.maximumf %20, %19 : vector<64x512xf32>
    %22 = vector.broadcast %cst_16 : f32 to vector<64x512xf32>
    %23 = arith.minimumf %22, %21 : vector<64x512xf32>
    %24 = arith.mulf %23, %23 : vector<64x512xf32>
    %cst_17 = arith.constant 2.29050653E-4 : f32
    %25 = vector.broadcast %cst_17 : f32 to vector<64x512xf32>
    %26 = arith.mulf %25, %24 : vector<64x512xf32>
    %cst_18 = arith.constant 0.00340829091 : f32
    %27 = vector.broadcast %cst_18 : f32 to vector<64x512xf32>
    %28 = arith.addf %26, %27 : vector<64x512xf32>
    %29 = arith.mulf %28, %24 : vector<64x512xf32>
    %cst_19 = arith.constant 0.0509556942 : f32
    %30 = vector.broadcast %cst_19 : f32 to vector<64x512xf32>
    %31 = arith.addf %29, %30 : vector<64x512xf32>
    %32 = arith.mulf %31, %24 : vector<64x512xf32>
    %cst_20 = arith.constant 0.185208321 : f32
    %33 = vector.broadcast %cst_20 : f32 to vector<64x512xf32>
    %34 = arith.addf %32, %33 : vector<64x512xf32>
    %35 = arith.mulf %34, %24 : vector<64x512xf32>
    %cst_21 = arith.constant 1.12837911 : f32
    %36 = vector.broadcast %cst_21 : f32 to vector<64x512xf32>
    %37 = arith.addf %35, %36 : vector<64x512xf32>
    %cst_22 = arith.constant -1.17916031E-7 : f32
    %38 = vector.broadcast %cst_22 : f32 to vector<64x512xf32>
    %39 = arith.mulf %38, %24 : vector<64x512xf32>
    %cst_23 = arith.constant 2.35479656E-5 : f32
    %40 = vector.broadcast %cst_23 : f32 to vector<64x512xf32>
    %41 = arith.addf %39, %40 : vector<64x512xf32>
    %42 = arith.mulf %41, %24 : vector<64x512xf32>
    %cst_24 = arith.constant 0.00101796258 : f32
    %43 = vector.broadcast %cst_24 : f32 to vector<64x512xf32>
    %44 = arith.addf %42, %43 : vector<64x512xf32>
    %45 = arith.mulf %44, %24 : vector<64x512xf32>
    %cst_25 = arith.constant 0.0140704699 : f32
    %46 = vector.broadcast %cst_25 : f32 to vector<64x512xf32>
    %47 = arith.addf %45, %46 : vector<64x512xf32>
    %48 = arith.mulf %47, %24 : vector<64x512xf32>
    %cst_26 = arith.constant 0.110985048 : f32
    %49 = vector.broadcast %cst_26 : f32 to vector<64x512xf32>
    %50 = arith.addf %48, %49 : vector<64x512xf32>
    %51 = arith.mulf %50, %24 : vector<64x512xf32>
    %cst_27 = arith.constant 0.497469246 : f32
    %52 = vector.broadcast %cst_27 : f32 to vector<64x512xf32>
    %53 = arith.addf %51, %52 : vector<64x512xf32>
    %54 = arith.mulf %53, %24 : vector<64x512xf32>
    %cst_28 = arith.constant 1.000000e+00 : f32
    %55 = vector.broadcast %cst_28 : f32 to vector<64x512xf32>
    %56 = arith.addf %54, %55 : vector<64x512xf32>
    %57 = tpu.reciprocal %56 {approx = true} : vector<64x512xf32> -> vector<64x512xf32>
    %58 = arith.mulf %56, %57 : vector<64x512xf32>
    %cst_29 = arith.constant 2.000000e+00 : f32
    %59 = vector.broadcast %cst_29 : f32 to vector<64x512xf32>
    %60 = arith.subf %59, %58 : vector<64x512xf32>
    %61 = arith.mulf %57, %60 : vector<64x512xf32>
    %62 = arith.mulf %23, %37 : vector<64x512xf32>
    %63 = arith.mulf %62, %61 : vector<64x512xf32>
    %cst_30 = arith.constant 1.000000e+00 : f32
    %64 = vector.broadcast %cst_30 : f32 to vector<64x512xf32>
    %65 = arith.addf %64, %63 : vector<64x512xf32>
    %66 = arith.mulf %17, %65 : vector<64x512xf32>
    %67 = arith.truncf %66 : vector<64x512xf32> to vector<64x512xbf16>
    %c0_31 = arith.constant 0 : index
    %c0_32 = arith.constant 0 : index
    %68 = vector.load %arg8[%c0_31, %c0_32] : memref<512x256xbf16, #tpu.memory_space<vmem>>, vector<512x256xbf16>
    %cst_33 = arith.constant dense<0.000000e+00> : vector<64x256xf32>
    %69 = tpu.matmul %67, %68, %cst_33 {dimension_numbers = #tpu.dot_dimension_numbers<[1], [0], [0], [1], [0, 0, 1, 1], [], []>} : vector<64x512xbf16>, vector<512x256xbf16>, vector<64x256xf32> -> vector<64x256xf32>
    %c0_34 = arith.constant 0 : index
    %c0_35 = arith.constant 0 : index
    %70 = vector.load %arg9[%c0_34, %c0_35] : memref<1x256xf32, #tpu.memory_space<vmem>>, vector<1x256xf32>
    %71 = vector.broadcast %70 : vector<1x256xf32> to vector<64x256xf32>
    %72 = arith.addf %69, %71 : vector<64x256xf32>
    %c0_36 = arith.constant 0 : index
    %c0_37 = arith.constant 0 : index
    %c0_38 = arith.constant 0 : index
    %c0_39 = arith.constant 0 : index
    %73 = vector.load %arg3[%c0_36, %c0_37, %c0_38, %c0_39] : memref<1x8x8x256xf32, #tpu.memory_space<vmem>>, vector<1x8x8x256xf32>
    %74 = vector.shape_cast %73 : vector<1x8x8x256xf32> to vector<64x256xf32>
    %75 = arith.addf %72, %74 : vector<64x256xf32>
    %76 = vector.shape_cast %75 : vector<64x256xf32> to vector<1x8x8x256xf32>
    %c0_40 = arith.constant 0 : index
    %c0_41 = arith.constant 0 : index
    %c0_42 = arith.constant 0 : index
    %c0_43 = arith.constant 0 : index
    %77 = vector.load %arg10[%c0_40, %c0_41, %c0_42, %c0_43] : memref<1x8x8x256xf32, #tpu.memory_space<vmem>>, vector<1x8x8x256xf32>
    tpu.vector_store %arg10[%c0_40, %c0_41, %c0_42, %c0_43], %76 {strides = array<i32>} : memref<1x8x8x256xf32, #tpu.memory_space<vmem>>, vector<1x8x8x256xf32>,
    return
  }
  func.func @transform_0(%arg0: i32, %arg1: i32) -> (i32, i32, i32, i32) {
    %c0_i32 = arith.constant 0 : i32
    %c0_i32_0 = arith.constant 0 : i32
    %c0_i32_1 = arith.constant 0 : i32
    return %arg0, %arg1, %c0_i32, %c0_i32_0 : i32, i32, i32, i32
  }
  func.func @transform_1(%arg0: i32, %arg1: i32) -> (i32, i32, i32, i32) {
    %c0_i32 = arith.constant 0 : i32
    %c0_i32_0 = arith.constant 0 : i32
    %c0_i32_1 = arith.constant 0 : i32
    return %arg0, %arg1, %c0_i32, %c0_i32_0 : i32, i32, i32, i32
  }
  func.func @transform_2(%arg0: i32, %arg1: i32) -> (i32, i32, i32) {
    %c0_i32 = arith.constant 0 : i32
    %c0_i32_0 = arith.constant 0 : i32
    %c0_i32_1 = arith.constant 0 : i32
    return %arg0, %c0_i32, %c0_i32_0 : i32, i32, i32
  }
  func.func @transform_3(%arg0: i32, %arg1: i32) -> (i32, i32, i32) {
    %c0_i32 = arith.constant 0 : i32
    %c0_i32_0 = arith.constant 0 : i32
    %c0_i32_1 = arith.constant 0 : i32
    return %arg0, %c0_i32, %c0_i32_0 : i32, i32, i32
  }
  func.func @transform_4(%arg0: i32, %arg1: i32) -> (i32, i32) {
    %c0_i32 = arith.constant 0 : i32
    %c0_i32_0 = arith.constant 0 : i32
    %c0_i32_1 = arith.constant 0 : i32
    return %c0_i32, %c0_i32_0 : i32, i32
  }
  func.func @transform_5(%arg0: i32, %arg1: i32) -> (i32, i32) {
    %c0_i32 = arith.constant 0 : i32
    %c0_i32_0 = arith.constant 0 : i32
    %c0_i32_1 = arith.constant 0 : i32
    return %c0_i32, %c0_i32_0 : i32, i32
  }
  func.func @transform_6(%arg0: i32, %arg1: i32) -> (i32, i32) {
    %c0_i32 = arith.constant 0 : i32
    %c0_i32_0 = arith.constant 0 : i32
    %c0_i32_1 = arith.constant 0 : i32
    return %c0_i32, %c0_i32_0 : i32, i32
  }
  func.func @transform_7(%arg0: i32, %arg1: i32) -> (i32, i32) {
    %c0_i32 = arith.constant 0 : i32
    %c0_i32_0 = arith.constant 0 : i32
    %c0_i32_1 = arith.constant 0 : i32
    return %c0_i32, %c0_i32_0 : i32, i32
  }
  func.func @transform_8(%arg0: i32, %arg1: i32) -> (i32, i32, i32, i32) {
    %c0_i32 = arith.constant 0 : i32
    %c0_i32_0 = arith.constant 0 : i32
    %c0_i32_1 = arith.constant 0 : i32
    return %arg0, %arg1, %c0_i32, %c0_i32_0 : i32, i32, i32, i32
  }
}

</mosaic_0001>

<llo_original>
// kernel: squeeze.2
$region0: #{squeeze.2}
  %s0 = inlined_call_operand.vmem [shape: f32[2,256], index: 0, kind: input, shape index: {}]
  %s1 = inlined_call_operand.vmem [shape: f32[2,8,32], index: 1, kind: output, shape index: {}]
  $region1: #{squeeze.2} parent=0
    #allocation0 [shape = 'u8[8192]{0}', space=vmem, size = 0x2000, scoped, tag = 'scoped mem for input reshape']
    %s3 = ssub.s32 4, 1
    %s4 = scalar_lea.vmem %s0, 2
    %v5 = vld [vmem:[%s4] sm:%s3]
    %s6 = scalar_lea.vmem [#allocation0], 8
    %7 = vst [vmem:[%s6] sm:%s3] %v5
    %v8 = vld [vmem:[%s0] sm:%s3]
    %9 = vst [vmem:[#allocation0] sm:%s3] %v8
    %v10 = vld [vmem:[#allocation0] sm:$0x3]
    %vm11 = vcmask 261120
    %12 = vst.msk [vmem:[%s1] ss:$8 sm:$0x3] %vm11, %v10
    %s13 = scalar_lea.vmem [#allocation0], 8
    %v14 = vld [vmem:[%s13] sm:$0x3]
    %vm15 = vcmask 261120
    %s16 = scalar_lea.vmem %s1, 4
    %17 = vst.msk [vmem:[%s16] ss:$8 sm:$0x3] %vm15, %v14
    %v18 = vld.sshfl [vmem:[#allocation0] sm:$0xff pattern:$0x99999180]
    %19 = vrot.lane.b32.xlu0 %v18, 96
    %v20 = vpop.permute.xlu0 %19
    %vm21 = vcmask 261120
    %s22 = scalar_lea.vmem %s1, 1
    %23 = vst.msk [vmem:[%s22] ss:$4 sm:$0xf] %vm21, %v20
    %v24 = vld.sshfl [vmem:[#allocation0] sm:$0xff pattern:$0x99999180]
    %25 = vrot.lane.b32.xlu0 %v24, 64
    %v26 = vpop.permute.xlu0 %25
    %vm27 = vcmask 261120
    %s28 = scalar_lea.vmem %s1, 2
    %29 = vst.msk [vmem:[%s28] ss:$4 sm:$0xf] %vm27, %v26
    %v30 = vld.sshfl [vmem:[#allocation0] sm:$0xff pattern:$0x99999180]
    %31 = vrot.lane.b32.xlu0 %v30, 32
    %v32 = vpop.permute.xlu0 %31
    %vm33 = vcmask 261120
    %s34 = scalar_lea.vmem %s1, 3
    %35 = vst.msk [vmem:[%s34] ss:$4 sm:$0xf] %vm33, %v32

// kernel: tile.23
$region0: #{tile.23}
  #allocation0 [shape = 's32[1]{0}', space=sflag, size = 0x4, scoped, tag = 'scoped memory for tile.23']
  %s0 = inlined_call_operand.vmem [shape: f32[64], index: 0, kind: input, shape index: {}]
  %s1 = inlined_call_operand.vmem [shape: f32[8,64], index: 1, kind: output, shape index: {}]
  // Predicated region
  $region2: #{tile.23} parent=0 // pred_check
    _
  $region3: #{tile.23} parent=0 // pred_check_branch
    %3 = sbr.rel (0) target = $region5
  $region4: #{tile.23} parent=0 // pred_region
    _
  $region5: #{tile.23} parent=0 // pred_fallthru
    _
  %v4 = vld [vmem:[%s0] ss:$0 sm:$0xff]
  %5 = vst [vmem:[%s1] sm:$0xff] %v4

// kernel: tile.24
$region0: #{tile.24}
  %s0 = inlined_call_operand.vmem [shape: f32[8,64], index: 0, kind: input, shape index: {}]
  %s1 = inlined_call_operand.vmem [shape: f32[1,512], index: 1, kind: output, shape index: {}]
  $region1: #{tile.24} parent=0
    #allocation0 [shape = 'u8[16384]{0}', space=vmem, size = 0x4000, scoped, tag = 'scoped mem for output reshape']
    %v2 = vld [vmem:[%s0] ss:$2 sm:$0xf]
    %vm3 = vcmask 523264
    %4 = vst.msk [vmem:[#allocation0] ss:$8 sm:$0xf] %vm3, %v2
    %s5 = scalar_lea.vmem %s0, 1
    %v6 = vld [vmem:[%s5] ss:$2 sm:$0xf]
    %7 = vrot.lane.b32.xlu0 %v6, 64
    %v8 = vpop.permute.xlu0 %7
    %vm9 = vcmask 1048064
    %10 = vst.msk [vmem:[#allocation0] ss:$8 sm:$0xf] %vm9, %v8
    %s12 = ssub.s32 2, 1
    %v13 = vld [vmem:[#allocation0] sm:%s12]
    %s15 = ssub.s32 2, 1
    %16 = vst [vmem:[%s1] sm:%s15] %v13
    %s17 = scalar_lea.vmem [#allocation0], 8
    %v18 = vld [vmem:[%s17] sm:%s12]
    %s20 = ssub.s32 2, 1
    %s21 = scalar_lea.vmem %s1, 1
    %22 = vst [vmem:[%s21] sm:%s20] %v18
    %s23 = scalar_lea.vmem [#allocation0], 16
    %v24 = vld [vmem:[%s23] sm:%s12]
    %s26 = ssub.s32 2, 1
    %s27 = scalar_lea.vmem %s1, 2
    %28 = vst [vmem:[%s27] sm:%s26] %v24
    %s29 = scalar_lea.vmem [#allocation0], 24
    %v30 = vld [vmem:[%s29] sm:%s12]
    %s32 = ssub.s32 2, 1
    %s33 = scalar_lea.vmem %s1, 3
    %34 = vst [vmem:[%s33] sm:%s32] %v30

// kernel: tile.28
$region0: #{tile.28}
  #allocation0 [shape = 's32[1]{0}', space=sflag, size = 0x4, scoped, tag = 'scoped memory for tile.28']
  %s0 = inlined_call_operand.vmem [shape: f32[32], index: 0, kind: input, shape index: {}]
  %s1 = inlined_call_operand.vmem [shape: f32[8,32], index: 1, kind: output, shape index: {}]
  // Predicated region
  $region2: #{tile.28} parent=0 // pred_check
    _
  $region3: #{tile.28} parent=0 // pred_check_branch
    %3 = sbr.rel (0) target = $region5
  $region4: #{tile.28} parent=0 // pred_region
    _
  $region5: #{tile.28} parent=0 // pred_fallthru
    _
  %v4 = vld [vmem:[%s0] ss:$0 sm:$0xff]
  %5 = vst [vmem:[%s1] sm:$0xff] %v4

// kernel: tile.29
$region0: #{tile.29}
  %s0 = inlined_call_operand.vmem [shape: f32[8,32], index: 0, kind: input, shape index: {}]
  %s1 = inlined_call_operand.vmem [shape: f32[1,256], index: 1, kind: output, shape index: {}]
  $region1: #{tile.29} parent=0
    #allocation0 [shape = 'u8[8192]{0}', space=vmem, size = 0x2000, scoped, tag = 'scoped mem for output reshape']
    %s2 = smov 3
    %v3 = vld [vmem:[%s0] ss:$4 sm:%s2]
    %vm4 = vcmask 261120
    %5 = vst.msk [vmem:[#allocation0] ss:$8 sm:$0x3] %vm4, %v3
    %s6 = scalar_lea.vmem %s0, 3
    %s7 = smov 3
    %v8 = vld [vmem:[%s6] ss:$4 sm:%s7]
    %9 = vrot.lane.b32.xlu0 %v8, 96
    %v10 = vpop.permute.xlu0 %9
    %vm11 = vcmask 1048320
    %12 = vst.msk [vmem:[#allocation0] ss:$8 sm:$0x3] %vm11, %v10
    %s13 = scalar_lea.vmem %s0, 2
    %s14 = smov 3
    %v15 = vld [vmem:[%s13] ss:$4 sm:%s14]
    %16 = vrot.lane.b32.xlu0 %v15, 64
    %v17 = vpop.permute.xlu0 %16
    %vm18 = vcmask 785920
    %19 = vst.msk [vmem:[#allocation0] ss:$8 sm:$0x3] %vm18, %v17
    %s20 = scalar_lea.vmem %s0, 1
    %s21 = smov 3
    %v22 = vld [vmem:[%s20] ss:$4 sm:%s21]
    %23 = vrot.lane.b32.xlu0 %v22, 32
    %v24 = vpop.permute.xlu0 %23
    %vm25 = vcmask 523520
    %26 = vst.msk [vmem:[#allocation0] ss:$8 sm:$0x3] %vm25, %v24
    %s28 = ssub.s32 2, 1
    %v29 = vld [vmem:[#allocation0] sm:%s28]
    %s31 = ssub.s32 2, 1
    %32 = vst [vmem:[%s1] sm:%s31] %v29
    %s33 = scalar_lea.vmem [#allocation0], 8
    %v34 = vld [vmem:[%s33] sm:%s28]
    %s36 = ssub.s32 2, 1
    %s37 = scalar_lea.vmem %s1, 1
    %38 = vst [vmem:[%s37] sm:%s36] %v34

// kernel: conv_block_pallas.2
$region0: #{conv_block_pallas.2}
  #allocation0 [shape = 'u32[]', space=smem, size = 0x4, offset = 0x4, fixed_abs, tag = 'smem constant byte address 0x4 - core index']
  #allocation1 [shape = 'u32[72,128]{1,0:T(1,128)}', space=vmem, size = 0x9000, scoped, tag = 'internal scratch']
  #allocation2 [shape = 'f32[64,256]{1,0:T(8,128)}', space=vmem, size = 0x10000, scoped, tag = 'scratch operand']
  %s0 = inlined_call_operand.vmem [shape: f32[2,8,8,256], index: 0, kind: input, shape index: {}, may-alias: {0,1,2}]
  %s1 = inlined_call_operand.vmem [shape: f32[2,8,8,256], index: 1, kind: input, shape index: {}, may-alias: {0,1,2}]
  %s2 = inlined_call_operand.vmem [shape: f32[2,8,8,256], index: 2, kind: input, shape index: {}, may-alias: {0,1,2}]
  %s3 = inlined_call_operand.vmem [shape: f32[27,256], index: 3, kind: input, shape index: {}]
  %s4 = inlined_call_operand.vmem [shape: f32[2,8,8,256], index: 4, kind: output, shape index: {0}]
  %s5 = inlined_call_operand.vmem [shape: f32[2,2,256], index: 5, kind: output, shape index: {1}]
  %6 = xla_tuple %s4, %s5
  %s7 = sld [smem:[#allocation0]]
  $region65: #{conv_block_pallas.2} parent=0
    _
  %s9 = ssub.s32 1, %s7
  %s10 = scalar_select 0, %s9, %s7
  loop: start=0, step=1, limit=4
  $region2: #{conv_block_pallas.2} parent=0 // loop_pre_header
    _
  $region3: #{conv_block_pallas.2} parent=0 // loop_header
    %s12 = sphi 0, %s16
    %p13 = scmp.ge.s32.totalorder %s12, 4
    %s19 = sphi 0, %s31
    %s20 = sphi 0, %s27
    %s21 = sphi 0, %s19
    %s22 = sphi 0, %s20
    %s23 = sphi 0, %s21
    %s24 = sphi 0, %s22
    %s36 = sphi 0, %s38
    %s39 = sphi 0, %s36
    %s40 = sphi 0, %s39
    %s56 = sphi 0, %s40
    %s72 = sphi 0, %s74
    %s75 = sphi 0, %s72
    %s76 = sphi 0, %s75
    %s92 = sphi 0, %s76
    %s108 = sphi 0, %s110
    %s111 = sphi 0, %s108
    %s112 = sphi 0, %s111
    %s128 = sphi 0, %s112
    %s132 = sphi 0, %s132
    %s134 = sphi 0, %s132
    %s135 = sphi 0, %s134
    %s149 = sphi 0, %s135
    %s157 = sphi 0, %s159
    %s160 = sphi 0, %s157
    %s161 = sphi 0, %s160
    %s177 = sphi 0, %s161
    %s183 = sphi 0, %s185
    %s186 = sphi 0, %s183
    %s187 = sphi 0, %s186
    %s203 = sphi 0, %s187
  $region4: #{conv_block_pallas.2} parent=0 // loop_header_branch
    %15 = sbr.rel (%p13) target = $region8
  $region5: #{conv_block_pallas.2} parent=0 // loop_body
    %s17 = ssub.s32 %s12, 1
    %s18 = ssub.s32 %s12, 2
    %s25 = sadd.s32 1, %s20
    %p26 = scmp.ge.s32.totalorder %s25, 1
    %s27 = scalar_select %p26, 0, %s25
    %s28 = sadd.s32 1, %s19
    %s29 = scalar_select %p26, %s28, %s19
    %p30 = scmp.ge.s32.totalorder %s29, 2
    %s31 = scalar_select %p30, 0, %s29
    %s32 = ssub.s32 %s19, %s31
    %s33 = ssub.s32 %s20, %s27
    %s34 = sor.u32 %s32, %s33
    %p35 = scmp.eq.s32.totalorder %s34, 0
    %s37 = sadd.s32 %s36, 1
    %s38 = scalar_select %p35, %s36, %s37
    %p41 = pneg %p35
    %p42 = scmp.eq.s32.totalorder %s12, 1
    %p43 = por %p41, %p42
    %p44 = scmp.ne.s32.totalorder %s36, %s39
    %p45 = scmp.eq.s32.totalorder %s12, 0
    %p46 = por %p44, %p45
    %p47 = scmp.ne.s32.totalorder %s36, %s39
    %p48 = scmp.eq.s32.totalorder %s17, 1
    %p49 = por %p47, %p48
    %p50 = scmp.ne.s32.totalorder %s39, %s40
    %p51 = scmp.eq.s32.totalorder %s17, 0
    %p52 = por %p50, %p51
    %p53 = scmp.ne.s32.totalorder %s39, %s40
    %p54 = scmp.eq.s32.totalorder %s18, 1
    %p55 = por %p53, %p54
    %p57 = scmp.ne.s32.totalorder %s40, %s56
    %p58 = scmp.eq.s32.totalorder %s18, 0
    %p59 = por %p57, %p58
    %s60 = smul.u32 %s20, 8
    %s61 = ssub.s32 %s60, 1
    %p62 = scmp.gt.s32.totalorder %s61, 0
    %s63 = scalar_select %p62, %s61, 0
    %s64 = smul.u32 %s27, 8
    %s65 = ssub.s32 %s64, 1
    %p66 = scmp.gt.s32.totalorder %s65, 0
    %s67 = scalar_select %p66, %s65, 0
    %s68 = ssub.s32 %s19, %s31
    %s69 = ssub.s32 %s63, %s67
    %s70 = sor.u32 %s68, %s69
    %p71 = scmp.eq.s32.totalorder %s70, 0
    %s73 = sadd.s32 %s72, 1
    %s74 = scalar_select %p71, %s72, %s73
    %p77 = pneg %p71
    %p78 = scmp.eq.s32.totalorder %s12, 1
    %p79 = por %p77, %p78
    %p80 = scmp.ne.s32.totalorder %s72, %s75
    %p81 = scmp.eq.s32.totalorder %s12, 0
    %p82 = por %p80, %p81
    %p83 = scmp.ne.s32.totalorder %s72, %s75
    %p84 = scmp.eq.s32.totalorder %s17, 1
    %p85 = por %p83, %p84
    %p86 = scmp.ne.s32.totalorder %s75, %s76
    %p87 = scmp.eq.s32.totalorder %s17, 0
    %p88 = por %p86, %p87
    %p89 = scmp.ne.s32.totalorder %s75, %s76
    %p90 = scmp.eq.s32.totalorder %s18, 1
    %p91 = por %p89, %p90
    %p93 = scmp.ne.s32.totalorder %s76, %s92
    %p94 = scmp.eq.s32.totalorder %s18, 0
    %p95 = por %p93, %p94
    %s96 = sadd.s32 %s20, 1
    %s97 = smul.u32 %s96, 8
    %p98 = scmp.lt.s32.totalorder %s97, 7
    %s99 = scalar_select %p98, %s97, 7
    %s100 = sadd.s32 %s27, 1
    %s101 = smul.u32 %s100, 8
    %p102 = scmp.lt.s32.totalorder %s101, 7
    %s103 = scalar_select %p102, %s101, 7
    %s104 = ssub.s32 %s19, %s31
    %s105 = ssub.s32 %s99, %s103
    %s106 = sor.u32 %s104, %s105
    %p107 = scmp.eq.s32.totalorder %s106, 0
    %s109 = sadd.s32 %s108, 1
    %s110 = scalar_select %p107, %s108, %s109
    %p113 = pneg %p107
    %p114 = scmp.eq.s32.totalorder %s12, 1
    %p115 = por %p113, %p114
    %p116 = scmp.ne.s32.totalorder %s108, %s111
    %p117 = scmp.eq.s32.totalorder %s12, 0
    %p118 = por %p116, %p117
    %p119 = scmp.ne.s32.totalorder %s108, %s111
    %p120 = scmp.eq.s32.totalorder %s17, 1
    %p121 = por %p119, %p120
    %p122 = scmp.ne.s32.totalorder %s111, %s112
    %p123 = scmp.eq.s32.totalorder %s17, 0
    %p124 = por %p122, %p123
    %p125 = scmp.ne.s32.totalorder %s111, %s112
    %p126 = scmp.eq.s32.totalorder %s18, 1
    %p127 = por %p125, %p126
    %p129 = scmp.ne.s32.totalorder %s112, %s128
    %p130 = scmp.eq.s32.totalorder %s18, 0
    %p131 = por %p129, %p130
    %s133 = sadd.s32 %s132, 1
    %p136 = scmp.eq.s32.totalorder %s12, 1
    %p137 = scmp.ne.s32.totalorder %s132, %s134
    %p138 = scmp.eq.s32.totalorder %s12, 0
    %p139 = por %p137, %p138
    %p140 = scmp.ne.s32.totalorder %s132, %s134
    %p141 = scmp.eq.s32.totalorder %s17, 1
    %p142 = por %p140, %p141
    %p143 = scmp.ne.s32.totalorder %s134, %s135
    %p144 = scmp.eq.s32.totalorder %s17, 0
    %p145 = por %p143, %p144
    %p146 = scmp.ne.s32.totalorder %s134, %s135
    %p147 = scmp.eq.s32.totalorder %s18, 1
    %p148 = por %p146, %p147
    %p150 = scmp.ne.s32.totalorder %s135, %s149
    %p151 = scmp.eq.s32.totalorder %s18, 0
    %p152 = por %p150, %p151
    %s153 = ssub.s32 %s19, %s31
    %s154 = ssub.s32 %s20, %s27
    %s155 = sor.u32 %s153, %s154
    %p156 = scmp.eq.s32.totalorder %s155, 0
    %s158 = sadd.s32 %s157, 1
    %s159 = scalar_select %p156, %s157, %s158
    %p162 = pneg %p156
    %p163 = scmp.eq.s32.totalorder %s12, 1
    %p164 = por %p162, %p163
    %p165 = scmp.ne.s32.totalorder %s157, %s160
    %p166 = scmp.eq.s32.totalorder %s12, 0
    %p167 = por %p165, %p166
    %p168 = scmp.ne.s32.totalorder %s157, %s160
    %p169 = scmp.eq.s32.totalorder %s17, 1
    %p170 = por %p168, %p169
    %p171 = scmp.ne.s32.totalorder %s160, %s161
    %p172 = scmp.eq.s32.totalorder %s17, 0
    %p173 = por %p171, %p172
    %p174 = scmp.ne.s32.totalorder %s160, %s161
    %p175 = scmp.eq.s32.totalorder %s18, 1
    %p176 = por %p174, %p175
    %p178 = scmp.ne.s32.totalorder %s161, %s177
    %p179 = scmp.eq.s32.totalorder %s18, 0
    %p180 = por %p178, %p179
    %s181 = ssub.s32 %s19, %s31
    %p182 = scmp.eq.s32.totalorder %s181, 0
    %s184 = sadd.s32 %s183, 1
    %s185 = scalar_select %p182, %s183, %s184
    %p188 = pneg %p182
    %p189 = scmp.eq.s32.totalorder %s12, 1
    %p190 = por %p188, %p189
    %p191 = scmp.ne.s32.totalorder %s183, %s186
    %p192 = scmp.eq.s32.totalorder %s12, 0
    %p193 = por %p191, %p192
    %p194 = scmp.ne.s32.totalorder %s183, %s186
    %p195 = scmp.eq.s32.totalorder %s17, 1
    %p196 = por %p194, %p195
    %p197 = scmp.ne.s32.totalorder %s186, %s187
    %p198 = scmp.eq.s32.totalorder %s17, 0
    %p199 = por %p197, %p198
    %p200 = scmp.ne.s32.totalorder %s186, %s187
    %p201 = scmp.eq.s32.totalorder %s18, 1
    %p202 = por %p200, %p201
    %p204 = scmp.ne.s32.totalorder %s187, %s203
    %p205 = scmp.eq.s32.totalorder %s18, 0
    %p206 = por %p204, %p205
    %p207 = scmp.le.s32.totalorder 1, %s12
    %p208 = scmp.lt.s32.totalorder %s12, 3
    %p209 = pnand %p207, %p208
    %p210 = pneg %p209
    // Predicated region
    $region9: #{conv_block_pallas.2} parent=5 // pred_check
      _
    $region10: #{conv_block_pallas.2} parent=5 // pred_check_branch
      %212 = sbr.rel (%p209) target = $region12
    $region11: #{conv_block_pallas.2} parent=5 // pred_region
      %s213 = ssub.s32 %s12, 1
      // Predicated region
      $region13: #{conv_block_pallas.2} parent=11 // pred_check
        %p214 = pneg %p145
      $region14: #{conv_block_pallas.2} parent=11 // pred_check_branch
        %216 = sbr.rel (%p214) target = $region16
      $region15: #{conv_block_pallas.2} parent=11 // pred_region
        _
      $region16: #{conv_block_pallas.2} parent=11 // pred_fallthru
        _
    $region12: #{conv_block_pallas.2} parent=5 // pred_fallthru
      _
    %p217 = scmp.lt.s32.totalorder %s12, 2
    // Predicated region
    $region17: #{conv_block_pallas.2} parent=5 // pred_check
      %p218 = pneg %p217
    $region18: #{conv_block_pallas.2} parent=5 // pred_check_branch
      %220 = sbr.rel (%p218) target = $region20
    $region19: #{conv_block_pallas.2} parent=5 // pred_region
      // Predicated region
      $region21: #{conv_block_pallas.2} parent=19 // pred_check
        %p221 = pneg %p46
      $region22: #{conv_block_pallas.2} parent=19 // pred_check_branch
        %223 = sbr.rel (%p221) target = $region24
      $region23: #{conv_block_pallas.2} parent=19 // pred_region
        %s224 = smul.u32 8, %s20
        %p225 = scmp.lt.s32.totalorder %s19, 1
        %s226 = scalar_select %p225, %s19, 1
        %p227 = scmp.lt.s32.totalorder %s224, 7
        %s228 = scalar_select %p227, %s224, 7
        %s229 = smul.addr %s228, 2
        %s230 = smul.addr %s226, 16
        %s231 = sadd.s32 %s229, %s230
        %s232 = smul.addr %s231, 8
        %s233 = scalar_lea.vmem %s0, %s232
        %s234 = smul.u32 8, %s20
      $region24: #{conv_block_pallas.2} parent=19 // pred_fallthru
        _
      // Predicated region
      $region25: #{conv_block_pallas.2} parent=19 // pred_check
        %p235 = pneg %p82
      $region26: #{conv_block_pallas.2} parent=19 // pred_check_branch
        %237 = sbr.rel (%p235) target = $region28
      $region27: #{conv_block_pallas.2} parent=19 // pred_region
        %s238 = smul.u32 %s20, 8
        %s239 = ssub.s32 %s238, 1
        %p240 = scmp.gt.s32.totalorder %s239, 0
        %s241 = scalar_select %p240, %s239, 0
        %p242 = scmp.lt.s32.totalorder %s19, 1
        %s243 = scalar_select %p242, %s19, 1
        %p244 = scmp.lt.s32.totalorder %s241, 7
        %s245 = scalar_select %p244, %s241, 7
        %s246 = smul.addr %s245, 2
        %s247 = smul.addr %s243, 16
        %s248 = sadd.s32 %s246, %s247
        %s249 = smul.addr %s248, 8
        %s250 = scalar_lea.vmem %s1, %s249
        %s251 = smul.u32 %s20, 8
        %s252 = ssub.s32 %s251, 1
        %p253 = scmp.gt.s32.totalorder %s252, 0
        %s254 = scalar_select %p253, %s252, 0
      $region28: #{conv_block_pallas.2} parent=19 // pred_fallthru
        _
      // Predicated region
      $region29: #{conv_block_pallas.2} parent=19 // pred_check
        %p255 = pneg %p118
      $region30: #{conv_block_pallas.2} parent=19 // pred_check_branch
        %257 = sbr.rel (%p255) target = $region32
      $region31: #{conv_block_pallas.2} parent=19 // pred_region
        %s258 = sadd.s32 %s20, 1
        %s259 = smul.u32 %s258, 8
        %p260 = scmp.lt.s32.totalorder %s259, 7
        %s261 = scalar_select %p260, %s259, 7
        %p262 = scmp.lt.s32.totalorder %s19, 1
        %s263 = scalar_select %p262, %s19, 1
        %p264 = scmp.lt.s32.totalorder %s261, 7
        %s265 = scalar_select %p264, %s261, 7
        %s266 = smul.addr %s265, 2
        %s267 = smul.addr %s263, 16
        %s268 = sadd.s32 %s266, %s267
        %s269 = smul.addr %s268, 8
        %s270 = scalar_lea.vmem %s2, %s269
        %s271 = sadd.s32 %s20, 1
        %s272 = smul.u32 %s271, 8
        %p273 = scmp.lt.s32.totalorder %s272, 7
        %s274 = scalar_select %p273, %s272, 7
      $region32: #{conv_block_pallas.2} parent=19 // pred_fallthru
        _
    $region20: #{conv_block_pallas.2} parent=5 // pred_fallthru
      _
    %p275 = scmp.le.s32.totalorder 1, %s12
    %p276 = scmp.lt.s32.totalorder %s12, 3
    %p277 = pnand %p275, %p276
    %p278 = pneg %p277
    // Predicated region
    $region33: #{conv_block_pallas.2} parent=5 // pred_check
      _
    $region34: #{conv_block_pallas.2} parent=5 // pred_check_branch
      %280 = sbr.rel (%p277) target = $region36
    $region35: #{conv_block_pallas.2} parent=5 // pred_region
      %s281 = ssub.s32 %s12, 1
      %s282 = smul.u32 8, %s22
      %p283 = scmp.lt.s32.totalorder %s21, 1
      %s284 = scalar_select %p283, %s21, 1
      %p285 = scmp.lt.s32.totalorder %s282, 7
      %s286 = scalar_select %p285, %s282, 7
      %s287 = smul.addr %s286, 2
      %s288 = smul.addr %s284, 16
      %s289 = sadd.s32 %s287, %s288
      %s290 = smul.addr %s289, 8
      %s291 = scalar_lea.vmem %s0, %s290
      %p292 = pneg %p52
      %p293 = pneg %p49
      %s294 = smul.u32 %s22, 8
      %s295 = ssub.s32 %s294, 1
      %p296 = scmp.gt.s32.totalorder %s295, 0
      %s297 = scalar_select %p296, %s295, 0
      %p298 = scmp.lt.s32.totalorder %s21, 1
      %s299 = scalar_select %p298, %s21, 1
      %p300 = scmp.lt.s32.totalorder %s297, 7
      %s301 = scalar_select %p300, %s297, 7
      %s302 = smul.addr %s301, 2
      %s303 = smul.addr %s299, 16
      %s304 = sadd.s32 %s302, %s303
      %s305 = smul.addr %s304, 8
      %s306 = scalar_lea.vmem %s1, %s305
      %p307 = pneg %p88
      %p308 = pneg %p85
      %s309 = sadd.s32 %s22, 1
      %s310 = smul.u32 %s309, 8
      %p311 = scmp.lt.s32.totalorder %s310, 7
      %s312 = scalar_select %p311, %s310, 7
      %p313 = scmp.lt.s32.totalorder %s21, 1
      %s314 = scalar_select %p313, %s21, 1
      %p315 = scmp.lt.s32.totalorder %s312, 7
      %s316 = scalar_select %p315, %s312, 7
      %s317 = smul.addr %s316, 2
      %s318 = smul.addr %s314, 16
      %s319 = sadd.s32 %s317, %s318
      %s320 = smul.addr %s319, 8
      %s321 = scalar_lea.vmem %s2, %s320
      %p322 = pneg %p124
      %p323 = pneg %p121
      %p324 = pneg %p145
      %p325 = pneg %p142
      %p326 = pneg %p173
      %p327 = pneg %p170
      %s328 = smul.u32 8, %s22
      %p329 = scmp.lt.s32.totalorder %s21, 1
      %s330 = scalar_select %p329, %s21, 1
      %p331 = scmp.lt.s32.totalorder %s328, 7
      %s332 = scalar_select %p331, %s328, 7
      %s333 = smul.addr %s332, 2
      %s334 = smul.addr %s330, 16
      %s335 = sadd.s32 %s333, %s334
      %s336 = smul.addr %s335, 8
      %s337 = scalar_lea.vmem %s4, %s336
      %p338 = pneg %p199
      %p339 = pneg %p196
      %p340 = scmp.lt.s32.totalorder %s21, 1
      %s341 = scalar_select %p340, %s21, 1
      %s342 = smul.addr %s341, 2
      %s343 = smul.addr %s342, 2
      %s344 = scalar_lea.vmem %s5, %s343
      %s345 = smul.u32 8, %s22
      %p346 = scmp.lt.s32.totalorder %s21, 1
      %s347 = scalar_select %p346, %s21, 1
      %p348 = scmp.lt.s32.totalorder %s345, 7
      %s349 = scalar_select %p348, %s345, 7
      %s350 = smul.addr %s349, 2
      %s351 = smul.addr %s347, 16
      %s352 = sadd.s32 %s350, %s351
      %s353 = smul.addr %s352, 8
      %s354 = scalar_lea.vmem %s0, %s353
      %s355 = smul.u32 8, %s22
      %s356 = smul.u32 %s22, 8
      %s357 = ssub.s32 %s356, 1
      %p358 = scmp.gt.s32.totalorder %s357, 0
      %s359 = scalar_select %p358, %s357, 0
      %p360 = scmp.lt.s32.totalorder %s21, 1
      %s361 = scalar_select %p360, %s21, 1
      %p362 = scmp.lt.s32.totalorder %s359, 7
      %s363 = scalar_select %p362, %s359, 7
      %s364 = smul.addr %s363, 2
      %s365 = smul.addr %s361, 16
      %s366 = sadd.s32 %s364, %s365
      %s367 = smul.addr %s366, 8
      %s368 = scalar_lea.vmem %s1, %s367
      %s369 = smul.u32 %s22, 8
      %s370 = ssub.s32 %s369, 1
      %p371 = scmp.gt.s32.totalorder %s370, 0
      %s372 = scalar_select %p371, %s370, 0
      %s373 = sadd.s32 %s22, 1
      %s374 = smul.u32 %s373, 8
      %p375 = scmp.lt.s32.totalorder %s374, 7
      %s376 = scalar_select %p375, %s374, 7
      %p377 = scmp.lt.s32.totalorder %s21, 1
      %s378 = scalar_select %p377, %s21, 1
      %p379 = scmp.lt.s32.totalorder %s376, 7
      %s380 = scalar_select %p379, %s376, 7
      %s381 = smul.addr %s380, 2
      %s382 = smul.addr %s378, 16
      %s383 = sadd.s32 %s381, %s382
      %s384 = smul.addr %s383, 8
      %s385 = scalar_lea.vmem %s2, %s384
      %s386 = sadd.s32 %s22, 1
      %s387 = smul.u32 %s386, 8
      %p388 = scmp.lt.s32.totalorder %s387, 7
      %s389 = scalar_select %p388, %s387, 7
      %s390 = smul.u32 8, %s22
      %p391 = scmp.lt.s32.totalorder %s21, 1
      %s392 = scalar_select %p391, %s21, 1
      %p393 = scmp.lt.s32.totalorder %s390, 7
      %s394 = scalar_select %p393, %s390, 7
      %s395 = smul.addr %s394, 2
      %s396 = smul.addr %s392, 16
      %s397 = sadd.s32 %s395, %s396
      %s398 = smul.addr %s397, 8
      %s399 = scalar_lea.vmem %s4, %s398
      %s400 = smul.u32 8, %s22
      %p401 = scmp.lt.s32.totalorder %s21, 1
      %s402 = scalar_select %p401, %s21, 1
      %s403 = smul.addr %s402, 2
      %s404 = smul.addr %s403, 2
      %s405 = scalar_lea.vmem %s5, %s404
      %v406 = vld [vmem:[%s354] sm:$0xff]
      %v407 = vld [vmem:[%s354 + $0x8] sm:$0xff]
      %v408 = vld [vmem:[%s354 + $0x10] sm:$0xff]
      %v409 = vld [vmem:[%s354 + $0x18] sm:$0xff]
      %v410 = vld [vmem:[%s354 + $0x20] sm:$0xff]
      %v411 = vld [vmem:[%s354 + $0x28] sm:$0xff]
      %v412 = vld [vmem:[%s354 + $0x30] sm:$0xff]
      %v413 = vld [vmem:[%s354 + $0x38] sm:$0xff]
      %v414 = vld [vmem:[%s354 + $0x40] sm:$0xff]
      %v415 = vld [vmem:[%s354 + $0x48] sm:$0xff]
      %v416 = vld [vmem:[%s354 + $0x50] sm:$0xff]
      %v417 = vld [vmem:[%s354 + $0x58] sm:$0xff]
      %v418 = vld [vmem:[%s354 + $0x60] sm:$0xff]
      %v419 = vld [vmem:[%s354 + $0x68] sm:$0xff]
      %v420 = vld [vmem:[%s354 + $0x70] sm:$0xff]
      %v421 = vld [vmem:[%s354 + $0x78] sm:$0xff]
      %v422 = vld [vmem:[%s368] sm:$0xff]
      %v423 = vld [vmem:[%s368 + $0x8] sm:$0xff]
      %p424 = scmp.gt.s32.totalorder %s22, 0
      %s425 = scalar_select %p424, 1, 0
      %s426 = scvt.s32.f32 %s425
      %v427 = vstv %s426
      %v428 = vmul.f32 %v422, %v427
      %v429 = vmul.f32 %v423, %v427
      %v430 = vld [vmem:[%s385] sm:$0xff]
      %v431 = vld [vmem:[%s385 + $0x8] sm:$0xff]
      %p432 = scmp.lt.s32.totalorder %s22, 0
      %s433 = scalar_select %p432, 1, 0
      %s434 = scvt.s32.f32 %s433
      %v435 = vstv %s434
      %v436 = vmul.f32 %v430, %v435
      %v437 = vmul.f32 %v431, %v435
      %v438 = vlaneseq
      %v439 = vshrl.u32 %v438, 7
      %v440 = vadd.s32 %v439, 8
      %v441 = vadd.s32 %v439, 16
      %v442 = vadd.s32 %v439, 24
      %v443 = vadd.s32 %v439, 32
      %v444 = vadd.s32 %v439, 40
      %v445 = vadd.s32 %v439, 48
      %v446 = vadd.s32 %v439, 56
      %v447 = vadd.s32 %v439, 64
      %v448 = vadd.s32 %v439, 72
      %vm449 = vcmp.lt.s32.totalorder %v439, 0
      %v450 = vsub.s32 0, %v439
      %v451 = vsel %vm449, %v450, %v439
      %v452 = vshrl.u32 %v451, 3
      %v453 = vand.u32 %v451, 7
      %v454 = vsub.s32 0, %v453
      %v455 = vsel %vm449, %v454, %v453
      %vm456 = vcmp.lt.s32.totalorder %v440, 0
      %v457 = vsub.s32 0, %v440
      %v458 = vsel %vm456, %v457, %v440
      %v459 = vshrl.u32 %v458, 3
      %v460 = vand.u32 %v458, 7
      %v461 = vsub.s32 0, %v460
      %v462 = vsel %vm456, %v461, %v460
      %vm463 = vcmp.lt.s32.totalorder %v441, 0
      %v464 = vsub.s32 0, %v441
      %v465 = vsel %vm463, %v464, %v441
      %v466 = vshrl.u32 %v465, 3
      %v467 = vand.u32 %v465, 7
      %v468 = vsub.s32 0, %v467
      %v469 = vsel %vm463, %v468, %v467
      %vm470 = vcmp.lt.s32.totalorder %v442, 0
      %v471 = vsub.s32 0, %v442
      %v472 = vsel %vm470, %v471, %v442
      %v473 = vshrl.u32 %v472, 3
      %v474 = vand.u32 %v472, 7
      %v475 = vsub.s32 0, %v474
      %v476 = vsel %vm470, %v475, %v474
      %vm477 = vcmp.lt.s32.totalorder %v443, 0
      %v478 = vsub.s32 0, %v443
      %v479 = vsel %vm477, %v478, %v443
      %v480 = vshrl.u32 %v479, 3
      %v481 = vand.u32 %v479, 7
      %v482 = vsub.s32 0, %v481
      %v483 = vsel %vm477, %v482, %v481
      %vm484 = vcmp.lt.s32.totalorder %v444, 0
      %v485 = vsub.s32 0, %v444
      %v486 = vsel %vm484, %v485, %v444
      %v487 = vshrl.u32 %v486, 3
      %v488 = vand.u32 %v486, 7
      %v489 = vsub.s32 0, %v488
      %v490 = vsel %vm484, %v489, %v488
      %vm491 = vcmp.lt.s32.totalorder %v445, 0
      %v492 = vsub.s32 0, %v445
      %v493 = vsel %vm491, %v492, %v445
      %v494 = vshrl.u32 %v493, 3
      %v495 = vand.u32 %v493, 7
      %v496 = vsub.s32 0, %v495
      %v497 = vsel %vm491, %v496, %v495
      %vm498 = vcmp.lt.s32.totalorder %v446, 0
      %v499 = vsub.s32 0, %v446
      %v500 = vsel %vm498, %v499, %v446
      %v501 = vshrl.u32 %v500, 3
      %v502 = vand.u32 %v500, 7
      %v503 = vsub.s32 0, %v502
      %v504 = vsel %vm498, %v503, %v502
      %vm505 = vcmp.lt.s32.totalorder %v447, 0
      %v506 = vsub.s32 0, %v447
      %v507 = vsel %vm505, %v506, %v447
      %v508 = vshrl.u32 %v507, 3
      %v509 = vand.u32 %v507, 7
      %v510 = vsub.s32 0, %v509
      %v511 = vsel %vm505, %v510, %v509
      %vm512 = vcmp.lt.s32.totalorder %v448, 0
      %v513 = vsub.s32 0, %v448
      %v514 = vsel %vm512, %v513, %v448
      %v515 = vshrl.u32 %v514, 3
      %v516 = vand.u32 %v514, 7
      %v517 = vsub.s32 0, %v516
      %v518 = vsel %vm512, %v517, %v516
      %vm519 = vcmp.ne.s32.totalorder %v455, 0
      %vm520 = vcmp.ne.s32.totalorder %v462, 0
      %vm521 = vcmp.ne.s32.totalorder %v469, 0
      %vm522 = vcmp.ne.s32.totalorder %v476, 0
      %vm523 = vcmp.ne.s32.totalorder %v483, 0
      %vm524 = vcmp.ne.s32.totalorder %v490, 0
      %vm525 = vcmp.ne.s32.totalorder %v497, 0
      %vm526 = vcmp.ne.s32.totalorder %v504, 0
      %vm527 = vcmp.ne.s32.totalorder %v511, 0
      %vm528 = vcmp.ne.s32.totalorder %v518, 0
      %vm529 = vcmp.lt.s32.totalorder %v455, 0
      %vm530 = vcmp.lt.s32.totalorder %v462, 0
      %vm531 = vcmp.lt.s32.totalorder %v469, 0
      %vm532 = vcmp.lt.s32.totalorder %v476, 0
      %vm533 = vcmp.lt.s32.totalorder %v483, 0
      %vm534 = vcmp.lt.s32.totalorder %v490, 0
      %vm535 = vcmp.lt.s32.totalorder %v497, 0
      %vm536 = vcmp.lt.s32.totalorder %v504, 0
      %vm537 = vcmp.lt.s32.totalorder %v511, 0
      %vm538 = vcmp.lt.s32.totalorder %v518, 0
      %vm539 = vmand %vm529, %vm519
      %vm540 = vmand %vm530, %vm520
      %vm541 = vmand %vm531, %vm521
      %vm542 = vmand %vm532, %vm522
      %vm543 = vmand %vm533, %vm523
      %vm544 = vmand %vm534, %vm524
      %vm545 = vmand %vm535, %vm525
      %vm546 = vmand %vm536, %vm526
      %vm547 = vmand %vm537, %vm527
      %vm548 = vmand %vm538, %vm528
      %v549 = vadd.s32 %v455, 8
      %v550 = vadd.s32 %v462, 8
      %v551 = vadd.s32 %v469, 8
      %v552 = vadd.s32 %v476, 8
      %v553 = vadd.s32 %v483, 8
      %v554 = vadd.s32 %v490, 8
      %v555 = vadd.s32 %v497, 8
      %v556 = vadd.s32 %v504, 8
      %v557 = vadd.s32 %v511, 8
      %v558 = vadd.s32 %v518, 8
      %v559 = vsel %vm539, %v549, %v455
      %v560 = vsel %vm540, %v550, %v462
      %v561 = vsel %vm541, %v551, %v469
      %v562 = vsel %vm542, %v552, %v476
      %v563 = vsel %vm543, %v553, %v483
      %v564 = vsel %vm544, %v554, %v490
      %v565 = vsel %vm545, %v555, %v497
      %v566 = vsel %vm546, %v556, %v504
      %v567 = vsel %vm547, %v557, %v511
      %v568 = vsel %vm548, %v558, %v518
      %v569 = vrot.slane %v428, 7
      %v570 = vrot.slane %v429, 7
      %v571 = vrot.slane %v406, 7
      %v572 = vrot.slane %v407, 7
      %v573 = vrot.slane %v408, 7
      %v574 = vrot.slane %v409, 7
      %v575 = vrot.slane %v410, 7
      %v576 = vrot.slane %v411, 7
      %v577 = vrot.slane %v412, 7
      %v578 = vrot.slane %v413, 7
      %v579 = vrot.slane %v414, 7
      %v580 = vrot.slane %v415, 7
      %v581 = vrot.slane %v416, 7
      %v582 = vrot.slane %v417, 7
      %v583 = vrot.slane %v418, 7
      %v584 = vrot.slane %v419, 7
      %v585 = vrot.slane %v420, 7
      %v586 = vrot.slane %v421, 7
      %v587 = vrot.slane %v436, 7
      %v588 = vrot.slane %v437, 7
      %vm589 = vcmp.lt.s32.totalorder %v439, 1
      %v590 = vsel %vm589, %v585, %v587
      %v591 = vsel %vm589, %v586, %v588
      %v592 = vsel %vm589, %v583, %v585
      %v593 = vsel %vm589, %v584, %v586
      %v594 = vsel %vm589, %v581, %v583
      %v595 = vsel %vm589, %v582, %v584
      %v596 = vsel %vm589, %v579, %v581
      %v597 = vsel %vm589, %v580, %v582
      %v598 = vsel %vm589, %v577, %v579
      %v599 = vsel %vm589, %v578, %v580
      %v600 = vsel %vm589, %v575, %v577
      %v601 = vsel %vm589, %v576, %v578
      %v602 = vsel %vm589, %v573, %v575
      %v603 = vsel %vm589, %v574, %v576
      %v604 = vsel %vm589, %v571, %v573
      %v605 = vsel %vm589, %v572, %v574
      %v606 = vsel %vm589, %v569, %v571
      %v607 = vsel %vm589, %v570, %v572
      %v608 = vsel %vm589, %v587, %v569
      %v609 = vsel %vm589, %v588, %v570
      %v610 = vadd.s32 %v559, 4294967295
      %v611 = vadd.s32 %v560, 4294967295
      %v612 = vadd.s32 %v561, 4294967295
      %v613 = vadd.s32 %v562, 4294967295
      %v614 = vadd.s32 %v563, 4294967295
      %v615 = vadd.s32 %v564, 4294967295
      %v616 = vadd.s32 %v565, 4294967295
      %v617 = vadd.s32 %v566, 4294967295
      %v618 = vadd.s32 %v567, 4294967295
      %v619 = vadd.s32 %v568, 4294967295
      %vm620 = vcmp.ge.s32.totalorder %v610, 0
      %vm621 = vcmp.ge.s32.totalorder %v611, 0
      %vm622 = vcmp.ge.s32.totalorder %v612, 0
      %vm623 = vcmp.ge.s32.totalorder %v613, 0
      %vm624 = vcmp.ge.s32.totalorder %v614, 0
      %vm625 = vcmp.ge.s32.totalorder %v615, 0
      %vm626 = vcmp.ge.s32.totalorder %v616, 0
      %vm627 = vcmp.ge.s32.totalorder %v617, 0
      %vm628 = vcmp.ge.s32.totalorder %v618, 0
      %vm629 = vcmp.ge.s32.totalorder %v619, 0
      %vm630 = vcmp.lt.s32.totalorder %v610, 8
      %vm631 = vcmp.lt.s32.totalorder %v611, 8
      %vm632 = vcmp.lt.s32.totalorder %v612, 8
      %vm633 = vcmp.lt.s32.totalorder %v613, 8
      %vm634 = vcmp.lt.s32.totalorder %v614, 8
      %vm635 = vcmp.lt.s32.totalorder %v615, 8
      %vm636 = vcmp.lt.s32.totalorder %v616, 8
      %vm637 = vcmp.lt.s32.totalorder %v617, 8
      %vm638 = vcmp.lt.s32.totalorder %v618, 8
      %vm639 = vcmp.lt.s32.totalorder %v619, 8
      %vm640 = vmand %vm620, %vm630
      %vm641 = vmand %vm621, %vm631
      %vm642 = vmand %vm622, %vm632
      %vm643 = vmand %vm623, %vm633
      %vm644 = vmand %vm624, %vm634
      %vm645 = vmand %vm625, %vm635
      %vm646 = vmand %vm626, %vm636
      %vm647 = vmand %vm627, %vm637
      %vm648 = vmand %vm628, %vm638
      %vm649 = vmand %vm629, %vm639
      %v650 = vsel %vm640, 1, 0
      %v651 = vsel %vm641, 1, 0
      %v652 = vsel %vm642, 1, 0
      %v653 = vsel %vm643, 1, 0
      %v654 = vsel %vm644, 1, 0
      %v655 = vsel %vm645, 1, 0
      %v656 = vsel %vm646, 1, 0
      %v657 = vsel %vm647, 1, 0
      %v658 = vsel %vm648, 1, 0
      %v659 = vsel %vm649, 1, 0
      %vm660 = vcmp.eq.s32.totalorder %v650, 1
      %vm661 = vcmp.eq.s32.totalorder %v651, 1
      %vm662 = vcmp.eq.s32.totalorder %v652, 1
      %vm663 = vcmp.eq.s32.totalorder %v653, 1
      %vm664 = vcmp.eq.s32.totalorder %v654, 1
      %vm665 = vcmp.eq.s32.totalorder %v655, 1
      %vm666 = vcmp.eq.s32.totalorder %v656, 1
      %vm667 = vcmp.eq.s32.totalorder %v657, 1
      %vm668 = vcmp.eq.s32.totalorder %v658, 1
      %vm669 = vcmp.eq.s32.totalorder %v659, 1
      %v670 = vsel %vm660, %v608, 0.0
      %v671 = vsel %vm660, %v609, 0.0
      %v672 = vsel %vm661, %v606, 0.0
      %v673 = vsel %vm661, %v607, 0.0
      %v674 = vsel %vm662, %v604, 0.0
      %v675 = vsel %vm662, %v605, 0.0
      %v676 = vsel %vm663, %v602, 0.0
      %v677 = vsel %vm663, %v603, 0.0
      %v678 = vsel %vm664, %v600, 0.0
      %v679 = vsel %vm664, %v601, 0.0
      %v680 = vsel %vm665, %v598, 0.0
      %v681 = vsel %vm665, %v599, 0.0
      %v682 = vsel %vm666, %v596, 0.0
      %v683 = vsel %vm666, %v597, 0.0
      %v684 = vsel %vm667, %v594, 0.0
      %v685 = vsel %vm667, %v595, 0.0
      %v686 = vsel %vm668, %v592, 0.0
      %v687 = vsel %vm668, %v593, 0.0
      %v688 = vsel %vm669, %v590, 0.0
      %v689 = vsel %vm669, %v591, 0.0
      %690 = vrot.lane.b32.xlu0 %v670, 32
      %v691 = vpop.permute.xlu0 %690
      %692 = vrot.lane.b32.xlu0 %v672, 32
      %v693 = vpop.permute.xlu0 %692
      %694 = vrot.lane.b32.xlu0 %v674, 32
      %v695 = vpop.permute.xlu0 %694
      %696 = vrot.lane.b32.xlu0 %v676, 32
      %v697 = vpop.permute.xlu0 %696
      %698 = vrot.lane.b32.xlu0 %v678, 32
      %v699 = vpop.permute.xlu0 %698
      %700 = vrot.lane.b32.xlu0 %v680, 32
      %v701 = vpop.permute.xlu0 %700
      %702 = vrot.lane.b32.xlu0 %v682, 32
      %v703 = vpop.permute.xlu0 %702
      %704 = vrot.lane.b32.xlu0 %v684, 32
      %v705 = vpop.permute.xlu0 %704
      %706 = vrot.lane.b32.xlu0 %v686, 32
      %v707 = vpop.permute.xlu0 %706
      %708 = vrot.lane.b32.xlu0 %v688, 32
      %v709 = vpop.permute.xlu0 %708
      %710 = vrot.lane.b32.xlu0 %v671, 32
      %v711 = vpop.permute.xlu0 %710
      %712 = vrot.lane.b32.xlu0 %v673, 32
      %v713 = vpop.permute.xlu0 %712
      %714 = vrot.lane.b32.xlu0 %v675, 32
      %v715 = vpop.permute.xlu0 %714
      %716 = vrot.lane.b32.xlu0 %v677, 32
      %v717 = vpop.permute.xlu0 %716
      %718 = vrot.lane.b32.xlu0 %v679, 32
      %v719 = vpop.permute.xlu0 %718
      %720 = vrot.lane.b32.xlu0 %v681, 32
      %v721 = vpop.permute.xlu0 %720
      %722 = vrot.lane.b32.xlu0 %v683, 32
      %v723 = vpop.permute.xlu0 %722
      %724 = vrot.lane.b32.xlu0 %v685, 32
      %v725 = vpop.permute.xlu0 %724
      %726 = vrot.lane.b32.xlu0 %v687, 32
      %v727 = vpop.permute.xlu0 %726
      %728 = vrot.lane.b32.xlu0 %v689, 32
      %v729 = vpop.permute.xlu0 %728
      %v730 = vlaneseq
      %v731 = vand.u32 %v730, 127
      %vm732 = vcmp.lt.s32.totalorder %v731, 32
      %v733 = vsel %vm732, %v691, %v711
      %v734 = vsel %vm732, %v693, %v713
      %v735 = vsel %vm732, %v695, %v715
      %v736 = vsel %vm732, %v697, %v717
      %v737 = vsel %vm732, %v699, %v719
      %v738 = vsel %vm732, %v701, %v721
      %v739 = vsel %vm732, %v703, %v723
      %v740 = vsel %vm732, %v705, %v725
      %v741 = vsel %vm732, %v707, %v727
      %v742 = vsel %vm732, %v709, %v729
      %v743 = vsel %vm732, %v711, %v691
      %v744 = vsel %vm732, %v713, %v693
      %v745 = vsel %vm732, %v715, %v695
      %v746 = vsel %vm732, %v717, %v697
      %v747 = vsel %vm732, %v719, %v699
      %v748 = vsel %vm732, %v721, %v701
      %v749 = vsel %vm732, %v723, %v703
      %v750 = vsel %vm732, %v725, %v705
      %v751 = vsel %vm732, %v727, %v707
      %v752 = vsel %vm732, %v729, %v709
      %v753 = vld [vmem:[%s3] ss:$8 sm:$0x3]
      %v755 = vperm.slane %v753, 0
      %v756 = vperm.slane %v753, 1
      %v759 = vmul.f32 %v743, %v755
      %v760 = vmul.f32 %v733, %v756
      %v761 = vmul.f32 %v744, %v755
      %v762 = vmul.f32 %v734, %v756
      %v763 = vmul.f32 %v745, %v755
      %v764 = vmul.f32 %v735, %v756
      %v765 = vmul.f32 %v746, %v755
      %v766 = vmul.f32 %v736, %v756
      %v767 = vmul.f32 %v747, %v755
      %v768 = vmul.f32 %v737, %v756
      %v769 = vmul.f32 %v748, %v755
      %v770 = vmul.f32 %v738, %v756
      %v771 = vmul.f32 %v749, %v755
      %v772 = vmul.f32 %v739, %v756
      %v773 = vmul.f32 %v750, %v755
      %v774 = vmul.f32 %v740, %v756
      %s775 = scalar_lea.vmem %s3, 17
      %v776 = vld [vmem:[%s775] ss:$8 sm:$0x3]
      %v778 = vperm.slane %v776, 0
      %v779 = vperm.slane %v776, 1
      %v782 = vmul.f32 %v744, %v778
      %v783 = vmul.f32 %v734, %v779
      %v784 = vmul.f32 %v745, %v778
      %v785 = vmul.f32 %v735, %v779
      %v786 = vmul.f32 %v746, %v778
      %v787 = vmul.f32 %v736, %v779
      %v788 = vmul.f32 %v747, %v778
      %v789 = vmul.f32 %v737, %v779
      %v790 = vmul.f32 %v748, %v778
      %v791 = vmul.f32 %v738, %v779
      %v792 = vmul.f32 %v749, %v778
      %v793 = vmul.f32 %v739, %v779
      %v794 = vmul.f32 %v750, %v778
      %v795 = vmul.f32 %v740, %v779
      %v796 = vmul.f32 %v751, %v778
      %v797 = vmul.f32 %v741, %v779
      %v798 = vadd.f32 %v759, %v782
      %v799 = vadd.f32 %v760, %v783
      %v800 = vadd.f32 %v761, %v784
      %v801 = vadd.f32 %v762, %v785
      %v802 = vadd.f32 %v763, %v786
      %v803 = vadd.f32 %v764, %v787
      %v804 = vadd.f32 %v765, %v788
      %v805 = vadd.f32 %v766, %v789
      %v806 = vadd.f32 %v767, %v790
      %v807 = vadd.f32 %v768, %v791
      %v808 = vadd.f32 %v769, %v792
      %v809 = vadd.f32 %v770, %v793
      %v810 = vadd.f32 %v771, %v794
      %v811 = vadd.f32 %v772, %v795
      %v812 = vadd.f32 %v773, %v796
      %v813 = vadd.f32 %v774, %v797
      %s814 = scalar_lea.vmem %s3, 34
      %v815 = vld [vmem:[%s814] ss:$8 sm:$0x3]
      %v817 = vperm.slane %v815, 0
      %v818 = vperm.slane %v815, 1
      %v821 = vmul.f32 %v745, %v817
      %v822 = vmul.f32 %v735, %v818
      %v823 = vmul.f32 %v746, %v817
      %v824 = vmul.f32 %v736, %v818
      %v825 = vmul.f32 %v747, %v817
      %v826 = vmul.f32 %v737, %v818
      %v827 = vmul.f32 %v748, %v817
      %v828 = vmul.f32 %v738, %v818
      %v829 = vmul.f32 %v749, %v817
      %v830 = vmul.f32 %v739, %v818
      %v831 = vmul.f32 %v750, %v817
      %v832 = vmul.f32 %v740, %v818
      %v833 = vmul.f32 %v751, %v817
      %v834 = vmul.f32 %v741, %v818
      %v835 = vmul.f32 %v752, %v817
      %v836 = vmul.f32 %v742, %v818
      %v837 = vadd.f32 %v798, %v821
      %v838 = vadd.f32 %v799, %v822
      %v839 = vadd.f32 %v800, %v823
      %v840 = vadd.f32 %v801, %v824
      %v841 = vadd.f32 %v802, %v825
      %v842 = vadd.f32 %v803, %v826
      %v843 = vadd.f32 %v804, %v827
      %v844 = vadd.f32 %v805, %v828
      %v845 = vadd.f32 %v806, %v829
      %v846 = vadd.f32 %v807, %v830
      %v847 = vadd.f32 %v808, %v831
      %v848 = vadd.f32 %v809, %v832
      %v849 = vadd.f32 %v810, %v833
      %v850 = vadd.f32 %v811, %v834
      %v851 = vadd.f32 %v812, %v835
      %v852 = vadd.f32 %v813, %v836
      %853 = vst [vmem:[#allocation2] sm:$0xff] %v837
      %854 = vst [vmem:[#allocation2 + $0x8] sm:$0xff] %v838
      %855 = vst [vmem:[#allocation2 + $0x10] sm:$0xff] %v839
      %856 = vst [vmem:[#allocation2 + $0x18] sm:$0xff] %v840
      %857 = vst [vmem:[#allocation2 + $0x20] sm:$0xff] %v841
      %858 = vst [vmem:[#allocation2 + $0x28] sm:$0xff] %v842
      %859 = vst [vmem:[#allocation2 + $0x30] sm:$0xff] %v843
      %860 = vst [vmem:[#allocation2 + $0x38] sm:$0xff] %v844
      %861 = vst [vmem:[#allocation2 + $0x40] sm:$0xff] %v845
      %862 = vst [vmem:[#allocation2 + $0x48] sm:$0xff] %v846
      %863 = vst [vmem:[#allocation2 + $0x50] sm:$0xff] %v847
      %864 = vst [vmem:[#allocation2 + $0x58] sm:$0xff] %v848
      %865 = vst [vmem:[#allocation2 + $0x60] sm:$0xff] %v849
      %866 = vst [vmem:[#allocation2 + $0x68] sm:$0xff] %v850
      %867 = vst [vmem:[#allocation2 + $0x70] sm:$0xff] %v851
      %868 = vst [vmem:[#allocation2 + $0x78] sm:$0xff] %v852
      %s869 = scalar_lea.vmem %s3, 1
      %v870 = vld [vmem:[%s869] ss:$8 sm:$0x3]
      %v872 = vperm.slane %v870, 0
      %v873 = vperm.slane %v870, 1
      %v876 = vmul.f32 %v670, %v872
      %v877 = vmul.f32 %v671, %v873
      %v878 = vmul.f32 %v672, %v872
      %v879 = vmul.f32 %v673, %v873
      %v880 = vmul.f32 %v674, %v872
      %v881 = vmul.f32 %v675, %v873
      %v882 = vmul.f32 %v676, %v872
      %v883 = vmul.f32 %v677, %v873
      %v884 = vmul.f32 %v678, %v872
      %v885 = vmul.f32 %v679, %v873
      %v886 = vmul.f32 %v680, %v872
      %v887 = vmul.f32 %v681, %v873
      %v888 = vmul.f32 %v682, %v872
      %v889 = vmul.f32 %v683, %v873
      %v890 = vmul.f32 %v684, %v872
      %v891 = vmul.f32 %v685, %v873
      %s892 = scalar_lea.vmem %s3, 18
      %v893 = vld [vmem:[%s892] ss:$8 sm:$0x3]
      %v895 = vperm.slane %v893, 0
      %v896 = vperm.slane %v893, 1
      %v899 = vmul.f32 %v672, %v895
      %v900 = vmul.f32 %v673, %v896
      %v901 = vmul.f32 %v674, %v895
      %v902 = vmul.f32 %v675, %v896
      %v903 = vmul.f32 %v676, %v895
      %v904 = vmul.f32 %v677, %v896
      %v905 = vmul.f32 %v678, %v895
      %v906 = vmul.f32 %v679, %v896
      %v907 = vmul.f32 %v680, %v895
      %v908 = vmul.f32 %v681, %v896
      %v909 = vmul.f32 %v682, %v895
      %v910 = vmul.f32 %v683, %v896
      %v911 = vmul.f32 %v684, %v895
      %v912 = vmul.f32 %v685, %v896
      %v913 = vmul.f32 %v686, %v895
      %v914 = vmul.f32 %v687, %v896
      %v915 = vadd.f32 %v876, %v899
      %v916 = vadd.f32 %v877, %v900
      %v917 = vadd.f32 %v878, %v901
      %v918 = vadd.f32 %v879, %v902
      %v919 = vadd.f32 %v880, %v903
      %v920 = vadd.f32 %v881, %v904
      %v921 = vadd.f32 %v882, %v905
      %v922 = vadd.f32 %v883, %v906
      %v923 = vadd.f32 %v884, %v907
      %v924 = vadd.f32 %v885, %v908
      %v925 = vadd.f32 %v886, %v909
      %v926 = vadd.f32 %v887, %v910
      %v927 = vadd.f32 %v888, %v911
      %v928 = vadd.f32 %v889, %v912
      %v929 = vadd.f32 %v890, %v913
      %v930 = vadd.f32 %v891, %v914
      %s931 = scalar_lea.vmem %s3, 35
      %v932 = vld [vmem:[%s931] ss:$8 sm:$0x3]
      %v934 = vperm.slane %v932, 0
      %v935 = vperm.slane %v932, 1
      %v938 = vmul.f32 %v674, %v934
      %v939 = vmul.f32 %v675, %v935
      %v940 = vmul.f32 %v676, %v934
      %v941 = vmul.f32 %v677, %v935
      %v942 = vmul.f32 %v678, %v934
      %v943 = vmul.f32 %v679, %v935
      %v944 = vmul.f32 %v680, %v934
      %v945 = vmul.f32 %v681, %v935
      %v946 = vmul.f32 %v682, %v934
      %v947 = vmul.f32 %v683, %v935
      %v948 = vmul.f32 %v684, %v934
      %v949 = vmul.f32 %v685, %v935
      %v950 = vmul.f32 %v686, %v934
      %v951 = vmul.f32 %v687, %v935
      %v952 = vmul.f32 %v688, %v934
      %v953 = vmul.f32 %v689, %v935
      %v954 = vadd.f32 %v915, %v938
      %v955 = vadd.f32 %v916, %v939
      %v956 = vadd.f32 %v917, %v940
      %v957 = vadd.f32 %v918, %v941
      %v958 = vadd.f32 %v919, %v942
      %v959 = vadd.f32 %v920, %v943
      %v960 = vadd.f32 %v921, %v944
      %v961 = vadd.f32 %v922, %v945
      %v962 = vadd.f32 %v923, %v946
      %v963 = vadd.f32 %v924, %v947
      %v964 = vadd.f32 %v925, %v948
      %v965 = vadd.f32 %v926, %v949
      %v966 = vadd.f32 %v927, %v950
      %v967 = vadd.f32 %v928, %v951
      %v968 = vadd.f32 %v929, %v952
      %v969 = vadd.f32 %v930, %v953
      %v970 = vld [vmem:[#allocation2] sm:$0xff]
      %v971 = vld [vmem:[#allocation2 + $0x8] sm:$0xff]
      %v972 = vld [vmem:[#allocation2 + $0x10] sm:$0xff]
      %v973 = vld [vmem:[#allocation2 + $0x18] sm:$0xff]
      %v974 = vld [vmem:[#allocation2 + $0x20] sm:$0xff]
      %v975 = vld [vmem:[#allocation2 + $0x28] sm:$0xff]
      %v976 = vld [vmem:[#allocation2 + $0x30] sm:$0xff]
      %v977 = vld [vmem:[#allocation2 + $0x38] sm:$0xff]
      %v978 = vld [vmem:[#allocation2 + $0x40] sm:$0xff]
      %v979 = vld [vmem:[#allocation2 + $0x48] sm:$0xff]
      %v980 = vld [vmem:[#allocation2 + $0x50] sm:$0xff]
      %v981 = vld [vmem:[#allocation2 + $0x58] sm:$0xff]
      %v982 = vld [vmem:[#allocation2 + $0x60] sm:$0xff]
      %v983 = vld [vmem:[#allocation2 + $0x68] sm:$0xff]
      %v984 = vld [vmem:[#allocation2 + $0x70] sm:$0xff]
      %v985 = vld [vmem:[#allocation2 + $0x78] sm:$0xff]
      %v986 = vadd.f32 %v970, %v954
      %v987 = vadd.f32 %v971, %v955
      %v988 = vadd.f32 %v972, %v956
      %v989 = vadd.f32 %v973, %v957
      %v990 = vadd.f32 %v974, %v958
      %v991 = vadd.f32 %v975, %v959
      %v992 = vadd.f32 %v976, %v960
      %v993 = vadd.f32 %v977, %v961
      %v994 = vadd.f32 %v978, %v962
      %v995 = vadd.f32 %v979, %v963
      %v996 = vadd.f32 %v980, %v964
      %v997 = vadd.f32 %v981, %v965
      %v998 = vadd.f32 %v982, %v966
      %v999 = vadd.f32 %v983, %v967
      %v1000 = vadd.f32 %v984, %v968
      %v1001 = vadd.f32 %v985, %v969
      %1002 = vst [vmem:[#allocation2] sm:$0xff] %v986
      %1003 = vst [vmem:[#allocation2 + $0x8] sm:$0xff] %v987
      %1004 = vst [vmem:[#allocation2 + $0x10] sm:$0xff] %v988
      %1005 = vst [vmem:[#allocation2 + $0x18] sm:$0xff] %v989
      %1006 = vst [vmem:[#allocation2 + $0x20] sm:$0xff] %v990
      %1007 = vst [vmem:[#allocation2 + $0x28] sm:$0xff] %v991
      %1008 = vst [vmem:[#allocation2 + $0x30] sm:$0xff] %v992
      %1009 = vst [vmem:[#allocation2 + $0x38] sm:$0xff] %v993
      %1010 = vst [vmem:[#allocation2 + $0x40] sm:$0xff] %v994
      %1011 = vst [vmem:[#allocation2 + $0x48] sm:$0xff] %v995
      %1012 = vst [vmem:[#allocation2 + $0x50] sm:$0xff] %v996
      %1013 = vst [vmem:[#allocation2 + $0x58] sm:$0xff] %v997
      %1014 = vst [vmem:[#allocation2 + $0x60] sm:$0xff] %v998
      %1015 = vst [vmem:[#allocation2 + $0x68] sm:$0xff] %v999
      %1016 = vst [vmem:[#allocation2 + $0x70] sm:$0xff] %v1000
      %1017 = vst [vmem:[#allocation2 + $0x78] sm:$0xff] %v1001
      %1018 = vrot.lane.b32.xlu0 %v670, 96
      %v1019 = vpop.permute.xlu0 %1018
      %1020 = vrot.lane.b32.xlu0 %v672, 96
      %v1021 = vpop.permute.xlu0 %1020
      %1022 = vrot.lane.b32.xlu0 %v674, 96
      %v1023 = vpop.permute.xlu0 %1022
      %1024 = vrot.lane.b32.xlu0 %v676, 96
      %v1025 = vpop.permute.xlu0 %1024
      %1026 = vrot.lane.b32.xlu0 %v678, 96
      %v1027 = vpop.permute.xlu0 %1026
      %1028 = vrot.lane.b32.xlu0 %v680, 96
      %v1029 = vpop.permute.xlu0 %1028
      %1030 = vrot.lane.b32.xlu0 %v682, 96
      %v1031 = vpop.permute.xlu0 %1030
      %1032 = vrot.lane.b32.xlu0 %v684, 96
      %v1033 = vpop.permute.xlu0 %1032
      %1034 = vrot.lane.b32.xlu0 %v686, 96
      %v1035 = vpop.permute.xlu0 %1034
      %1036 = vrot.lane.b32.xlu0 %v688, 96
      %v1037 = vpop.permute.xlu0 %1036
      %1038 = vrot.lane.b32.xlu0 %v671, 96
      %v1039 = vpop.permute.xlu0 %1038
      %1040 = vrot.lane.b32.xlu0 %v673, 96
      %v1041 = vpop.permute.xlu0 %1040
      %1042 = vrot.lane.b32.xlu0 %v675, 96
      %v1043 = vpop.permute.xlu0 %1042
      %1044 = vrot.lane.b32.xlu0 %v677, 96
      %v1045 = vpop.permute.xlu0 %1044
      %1046 = vrot.lane.b32.xlu0 %v679, 96
      %v1047 = vpop.permute.xlu0 %1046
      %1048 = vrot.lane.b32.xlu0 %v681, 96
      %v1049 = vpop.permute.xlu0 %1048
      %1050 = vrot.lane.b32.xlu0 %v683, 96
      %v1051 = vpop.permute.xlu0 %1050
      %1052 = vrot.lane.b32.xlu0 %v685, 96
      %v1053 = vpop.permute.xlu0 %1052
      %1054 = vrot.lane.b32.xlu0 %v687, 96
      %v1055 = vpop.permute.xlu0 %1054
      %1056 = vrot.lane.b32.xlu0 %v689, 96
      %v1057 = vpop.permute.xlu0 %1056
      %vm1058 = vcmp.lt.s32.totalorder %v731, 96
      %v1059 = vsel %vm1058, %v1019, %v1039
      %v1060 = vsel %vm1058, %v1021, %v1041
      %v1061 = vsel %vm1058, %v1023, %v1043
      %v1062 = vsel %vm1058, %v1025, %v1045
      %v1063 = vsel %vm1058, %v1027, %v1047
      %v1064 = vsel %vm1058, %v1029, %v1049
      %v1065 = vsel %vm1058, %v1031, %v1051
      %v1066 = vsel %vm1058, %v1033, %v1053
      %v1067 = vsel %vm1058, %v1035, %v1055
      %v1068 = vsel %vm1058, %v1037, %v1057
      %v1069 = vsel %vm1058, %v1039, %v1019
      %v1070 = vsel %vm1058, %v1041, %v1021
      %v1071 = vsel %vm1058, %v1043, %v1023
      %v1072 = vsel %vm1058, %v1045, %v1025
      %v1073 = vsel %vm1058, %v1047, %v1027
      %v1074 = vsel %vm1058, %v1049, %v1029
      %v1075 = vsel %vm1058, %v1051, %v1031
      %v1076 = vsel %vm1058, %v1053, %v1033
      %v1077 = vsel %vm1058, %v1055, %v1035
      %v1078 = vsel %vm1058, %v1057, %v1037
      %s1079 = scalar_lea.vmem %s3, 2
      %v1080 = vld [vmem:[%s1079] ss:$8 sm:$0x3]
      %v1082 = vperm.slane %v1080, 0
      %v1083 = vperm.slane %v1080, 1
      %v1086 = vmul.f32 %v1059, %v1082
      %v1087 = vmul.f32 %v1069, %v1083
      %v1088 = vmul.f32 %v1060, %v1082
      %v1089 = vmul.f32 %v1070, %v1083
      %v1090 = vmul.f32 %v1061, %v1082
      %v1091 = vmul.f32 %v1071, %v1083
      %v1092 = vmul.f32 %v1062, %v1082
      %v1093 = vmul.f32 %v1072, %v1083
      %v1094 = vmul.f32 %v1063, %v1082
      %v1095 = vmul.f32 %v1073, %v1083
      %v1096 = vmul.f32 %v1064, %v1082
      %v1097 = vmul.f32 %v1074, %v1083
      %v1098 = vmul.f32 %v1065, %v1082
      %v1099 = vmul.f32 %v1075, %v1083
      %v1100 = vmul.f32 %v1066, %v1082
      %v1101 = vmul.f32 %v1076, %v1083
      %s1102 = scalar_lea.vmem %s3, 19
      %v1103 = vld [vmem:[%s1102] ss:$8 sm:$0x3]
      %v1105 = vperm.slane %v1103, 0
      %v1106 = vperm.slane %v1103, 1
      %v1109 = vmul.f32 %v1060, %v1105
      %v1110 = vmul.f32 %v1070, %v1106
      %v1111 = vmul.f32 %v1061, %v1105
      %v1112 = vmul.f32 %v1071, %v1106
      %v1113 = vmul.f32 %v1062, %v1105
      %v1114 = vmul.f32 %v1072, %v1106
      %v1115 = vmul.f32 %v1063, %v1105
      %v1116 = vmul.f32 %v1073, %v1106
      %v1117 = vmul.f32 %v1064, %v1105
      %v1118 = vmul.f32 %v1074, %v1106
      %v1119 = vmul.f32 %v1065, %v1105
      %v1120 = vmul.f32 %v1075, %v1106
      %v1121 = vmul.f32 %v1066, %v1105
      %v1122 = vmul.f32 %v1076, %v1106
      %v1123 = vmul.f32 %v1067, %v1105
      %v1124 = vmul.f32 %v1077, %v1106
      %v1125 = vadd.f32 %v1086, %v1109
      %v1126 = vadd.f32 %v1087, %v1110
      %v1127 = vadd.f32 %v1088, %v1111
      %v1128 = vadd.f32 %v1089, %v1112
      %v1129 = vadd.f32 %v1090, %v1113
      %v1130 = vadd.f32 %v1091, %v1114
      %v1131 = vadd.f32 %v1092, %v1115
      %v1132 = vadd.f32 %v1093, %v1116
      %v1133 = vadd.f32 %v1094, %v1117
      %v1134 = vadd.f32 %v1095, %v1118
      %v1135 = vadd.f32 %v1096, %v1119
      %v1136 = vadd.f32 %v1097, %v1120
      %v1137 = vadd.f32 %v1098, %v1121
      %v1138 = vadd.f32 %v1099, %v1122
      %v1139 = vadd.f32 %v1100, %v1123
      %v1140 = vadd.f32 %v1101, %v1124
      %s1141 = scalar_lea.vmem %s3, 36
      %v1142 = vld [vmem:[%s1141] ss:$8 sm:$0x3]
      %v1144 = vperm.slane %v1142, 0
      %v1145 = vperm.slane %v1142, 1
      %v1148 = vmul.f32 %v1061, %v1144
      %v1149 = vmul.f32 %v1071, %v1145
      %v1150 = vmul.f32 %v1062, %v1144
      %v1151 = vmul.f32 %v1072, %v1145
      %v1152 = vmul.f32 %v1063, %v1144
      %v1153 = vmul.f32 %v1073, %v1145
      %v1154 = vmul.f32 %v1064, %v1144
      %v1155 = vmul.f32 %v1074, %v1145
      %v1156 = vmul.f32 %v1065, %v1144
      %v1157 = vmul.f32 %v1075, %v1145
      %v1158 = vmul.f32 %v1066, %v1144
      %v1159 = vmul.f32 %v1076, %v1145
      %v1160 = vmul.f32 %v1067, %v1144
      %v1161 = vmul.f32 %v1077, %v1145
      %v1162 = vmul.f32 %v1068, %v1144
      %v1163 = vmul.f32 %v1078, %v1145
      %v1164 = vadd.f32 %v1125, %v1148
      %v1165 = vadd.f32 %v1126, %v1149
      %v1166 = vadd.f32 %v1127, %v1150
      %v1167 = vadd.f32 %v1128, %v1151
      %v1168 = vadd.f32 %v1129, %v1152
      %v1169 = vadd.f32 %v1130, %v1153
      %v1170 = vadd.f32 %v1131, %v1154
      %v1171 = vadd.f32 %v1132, %v1155
      %v1172 = vadd.f32 %v1133, %v1156
      %v1173 = vadd.f32 %v1134, %v1157
      %v1174 = vadd.f32 %v1135, %v1158
      %v1175 = vadd.f32 %v1136, %v1159
      %v1176 = vadd.f32 %v1137, %v1160
      %v1177 = vadd.f32 %v1138, %v1161
      %v1178 = vadd.f32 %v1139, %v1162
      %v1179 = vadd.f32 %v1140, %v1163
      %v1180 = vld [vmem:[#allocation2] sm:$0xff]
      %v1181 = vld [vmem:[#allocation2 + $0x8] sm:$0xff]
      %v1182 = vld [vmem:[#allocation2 + $0x10] sm:$0xff]
      %v1183 = vld [vmem:[#allocation2 + $0x18] sm:$0xff]
      %v1184 = vld [vmem:[#allocation2 + $0x20] sm:$0xff]
      %v1185 = vld [vmem:[#allocation2 + $0x28] sm:$0xff]
      %v1186 = vld [vmem:[#allocation2 + $0x30] sm:$0xff]
      %v1187 = vld [vmem:[#allocation2 + $0x38] sm:$0xff]
      %v1188 = vld [vmem:[#allocation2 + $0x40] sm:$0xff]
      %v1189 = vld [vmem:[#allocation2 + $0x48] sm:$0xff]
      %v1190 = vld [vmem:[#allocation2 + $0x50] sm:$0xff]
      %v1191 = vld [vmem:[#allocation2 + $0x58] sm:$0xff]
      %v1192 = vld [vmem:[#allocation2 + $0x60] sm:$0xff]
      %v1193 = vld [vmem:[#allocation2 + $0x68] sm:$0xff]
      %v1194 = vld [vmem:[#allocation2 + $0x70] sm:$0xff]
      %v1195 = vld [vmem:[#allocation2 + $0x78] sm:$0xff]
      %v1196 = vadd.f32 %v1180, %v1164
      %v1197 = vadd.f32 %v1181, %v1165
      %v1198 = vadd.f32 %v1182, %v1166
      %v1199 = vadd.f32 %v1183, %v1167
      %v1200 = vadd.f32 %v1184, %v1168
      %v1201 = vadd.f32 %v1185, %v1169
      %v1202 = vadd.f32 %v1186, %v1170
      %v1203 = vadd.f32 %v1187, %v1171
      %v1204 = vadd.f32 %v1188, %v1172
      %v1205 = vadd.f32 %v1189, %v1173
      %v1206 = vadd.f32 %v1190, %v1174
      %v1207 = vadd.f32 %v1191, %v1175
      %v1208 = vadd.f32 %v1192, %v1176
      %v1209 = vadd.f32 %v1193, %v1177
      %v1210 = vadd.f32 %v1194, %v1178
      %v1211 = vadd.f32 %v1195, %v1179
      %1212 = vst [vmem:[#allocation2] sm:$0xff] %v1196
      %1213 = vst [vmem:[#allocation2 + $0x8] sm:$0xff] %v1197
      %1214 = vst [vmem:[#allocation2 + $0x10] sm:$0xff] %v1198
      %1215 = vst [vmem:[#allocation2 + $0x18] sm:$0xff] %v1199
      %1216 = vst [vmem:[#allocation2 + $0x20] sm:$0xff] %v1200
      %1217 = vst [vmem:[#allocation2 + $0x28] sm:$0xff] %v1201
      %1218 = vst [vmem:[#allocation2 + $0x30] sm:$0xff] %v1202
      %1219 = vst [vmem:[#allocation2 + $0x38] sm:$0xff] %v1203
      %1220 = vst [vmem:[#allocation2 + $0x40] sm:$0xff] %v1204
      %1221 = vst [vmem:[#allocation2 + $0x48] sm:$0xff] %v1205
      %1222 = vst [vmem:[#allocation2 + $0x50] sm:$0xff] %v1206
      %1223 = vst [vmem:[#allocation2 + $0x58] sm:$0xff] %v1207
      %1224 = vst [vmem:[#allocation2 + $0x60] sm:$0xff] %v1208
      %1225 = vst [vmem:[#allocation2 + $0x68] sm:$0xff] %v1209
      %1226 = vst [vmem:[#allocation2 + $0x70] sm:$0xff] %v1210
      %1227 = vst [vmem:[#allocation2 + $0x78] sm:$0xff] %v1211
      %1228 = vrot.lane.b32.xlu0 %v428, 32
      %v1229 = vpop.permute.xlu0 %1228
      %1230 = vrot.lane.b32.xlu0 %v406, 32
      %v1231 = vpop.permute.xlu0 %1230
      %1232 = vrot.lane.b32.xlu0 %v408, 32
      %v1233 = vpop.permute.xlu0 %1232
      %1234 = vrot.lane.b32.xlu0 %v410, 32
      %v1235 = vpop.permute.xlu0 %1234
      %1236 = vrot.lane.b32.xlu0 %v412, 32
      %v1237 = vpop.permute.xlu0 %1236
      %1238 = vrot.lane.b32.xlu0 %v414, 32
      %v1239 = vpop.permute.xlu0 %1238
      %1240 = vrot.lane.b32.xlu0 %v416, 32
      %v1241 = vpop.permute.xlu0 %1240
      %1242 = vrot.lane.b32.xlu0 %v418, 32
      %v1243 = vpop.permute.xlu0 %1242
      %1244 = vrot.lane.b32.xlu0 %v420, 32
      %v1245 = vpop.permute.xlu0 %1244
      %1246 = vrot.lane.b32.xlu0 %v436, 32
      %v1247 = vpop.permute.xlu0 %1246
      %1248 = vrot.lane.b32.xlu0 %v429, 32
      %v1249 = vpop.permute.xlu0 %1248
      %1250 = vrot.lane.b32.xlu0 %v407, 32
      %v1251 = vpop.permute.xlu0 %1250
      %1252 = vrot.lane.b32.xlu0 %v409, 32
      %v1253 = vpop.permute.xlu0 %1252
      %1254 = vrot.lane.b32.xlu0 %v411, 32
      %v1255 = vpop.permute.xlu0 %1254
      %1256 = vrot.lane.b32.xlu0 %v413, 32
      %v1257 = vpop.permute.xlu0 %1256
      %1258 = vrot.lane.b32.xlu0 %v415, 32
      %v1259 = vpop.permute.xlu0 %1258
      %1260 = vrot.lane.b32.xlu0 %v417, 32
      %v1261 = vpop.permute.xlu0 %1260
      %1262 = vrot.lane.b32.xlu0 %v419, 32
      %v1263 = vpop.permute.xlu0 %1262
      %1264 = vrot.lane.b32.xlu0 %v421, 32
      %v1265 = vpop.permute.xlu0 %1264
      %1266 = vrot.lane.b32.xlu0 %v437, 32
      %v1267 = vpop.permute.xlu0 %1266
      %v1268 = vsel %vm732, %v1229, %v1249
      %v1269 = vsel %vm732, %v1231, %v1251
      %v1270 = vsel %vm732, %v1233, %v1253
      %v1271 = vsel %vm732, %v1235, %v1255
      %v1272 = vsel %vm732, %v1237, %v1257
      %v1273 = vsel %vm732, %v1239, %v1259
      %v1274 = vsel %vm732, %v1241, %v1261
      %v1275 = vsel %vm732, %v1243, %v1263
      %v1276 = vsel %vm732, %v1245, %v1265
      %v1277 = vsel %vm732, %v1247, %v1267
      %v1278 = vsel %vm732, %v1249, %v1229
      %v1279 = vsel %vm732, %v1251, %v1231
      %v1280 = vsel %vm732, %v1253, %v1233
      %v1281 = vsel %vm732, %v1255, %v1235
      %v1282 = vsel %vm732, %v1257, %v1237
      %v1283 = vsel %vm732, %v1259, %v1239
      %v1284 = vsel %vm732, %v1261, %v1241
      %v1285 = vsel %vm732, %v1263, %v1243
      %v1286 = vsel %vm732, %v1265, %v1245
      %v1287 = vsel %vm732, %v1267, %v1247
      %s1288 = scalar_lea.vmem %s3, 3
      %v1289 = vld [vmem:[%s1288] ss:$8 sm:$0x3]
      %v1291 = vperm.slane %v1289, 0
      %v1292 = vperm.slane %v1289, 1
      %v1295 = vmul.f32 %v1278, %v1291
      %v1296 = vmul.f32 %v1268, %v1292
      %v1297 = vmul.f32 %v1279, %v1291
      %v1298 = vmul.f32 %v1269, %v1292
      %v1299 = vmul.f32 %v1280, %v1291
      %v1300 = vmul.f32 %v1270, %v1292
      %v1301 = vmul.f32 %v1281, %v1291
      %v1302 = vmul.f32 %v1271, %v1292
      %v1303 = vmul.f32 %v1282, %v1291
      %v1304 = vmul.f32 %v1272, %v1292
      %v1305 = vmul.f32 %v1283, %v1291
      %v1306 = vmul.f32 %v1273, %v1292
      %v1307 = vmul.f32 %v1284, %v1291
      %v1308 = vmul.f32 %v1274, %v1292
      %v1309 = vmul.f32 %v1285, %v1291
      %v1310 = vmul.f32 %v1275, %v1292
      %s1311 = scalar_lea.vmem %s3, 20
      %v1312 = vld [vmem:[%s1311] ss:$8 sm:$0x3]
      %v1314 = vperm.slane %v1312, 0
      %v1315 = vperm.slane %v1312, 1
      %v1318 = vmul.f32 %v1279, %v1314
      %v1319 = vmul.f32 %v1269, %v1315
      %v1320 = vmul.f32 %v1280, %v1314
      %v1321 = vmul.f32 %v1270, %v1315
      %v1322 = vmul.f32 %v1281, %v1314
      %v1323 = vmul.f32 %v1271, %v1315
      %v1324 = vmul.f32 %v1282, %v1314
      %v1325 = vmul.f32 %v1272, %v1315
      %v1326 = vmul.f32 %v1283, %v1314
      %v1327 = vmul.f32 %v1273, %v1315
      %v1328 = vmul.f32 %v1284, %v1314
      %v1329 = vmul.f32 %v1274, %v1315
      %v1330 = vmul.f32 %v1285, %v1314
      %v1331 = vmul.f32 %v1275, %v1315
      %v1332 = vmul.f32 %v1286, %v1314
      %v1333 = vmul.f32 %v1276, %v1315
      %v1334 = vadd.f32 %v1295, %v1318
      %v1335 = vadd.f32 %v1296, %v1319
      %v1336 = vadd.f32 %v1297, %v1320
      %v1337 = vadd.f32 %v1298, %v1321
      %v1338 = vadd.f32 %v1299, %v1322
      %v1339 = vadd.f32 %v1300, %v1323
      %v1340 = vadd.f32 %v1301, %v1324
      %v1341 = vadd.f32 %v1302, %v1325
      %v1342 = vadd.f32 %v1303, %v1326
      %v1343 = vadd.f32 %v1304, %v1327
      %v1344 = vadd.f32 %v1305, %v1328
      %v1345 = vadd.f32 %v1306, %v1329
      %v1346 = vadd.f32 %v1307, %v1330
      %v1347 = vadd.f32 %v1308, %v1331
      %v1348 = vadd.f32 %v1309, %v1332
      %v1349 = vadd.f32 %v1310, %v1333
      %s1350 = scalar_lea.vmem %s3, 37
      %v1351 = vld [vmem:[%s1350] ss:$8 sm:$0x3]
      %v1353 = vperm.slane %v1351, 0
      %v1354 = vperm.slane %v1351, 1
      %v1357 = vmul.f32 %v1280, %v1353
      %v1358 = vmul.f32 %v1270, %v1354
      %v1359 = vmul.f32 %v1281, %v1353
      %v1360 = vmul.f32 %v1271, %v1354
      %v1361 = vmul.f32 %v1282, %v1353
      %v1362 = vmul.f32 %v1272, %v1354
      %v1363 = vmul.f32 %v1283, %v1353
      %v1364 = vmul.f32 %v1273, %v1354
      %v1365 = vmul.f32 %v1284, %v1353
      %v1366 = vmul.f32 %v1274, %v1354
      %v1367 = vmul.f32 %v1285, %v1353
      %v1368 = vmul.f32 %v1275, %v1354
      %v1369 = vmul.f32 %v1286, %v1353
      %v1370 = vmul.f32 %v1276, %v1354
      %v1371 = vmul.f32 %v1287, %v1353
      %v1372 = vmul.f32 %v1277, %v1354
      %v1373 = vadd.f32 %v1334, %v1357
      %v1374 = vadd.f32 %v1335, %v1358
      %v1375 = vadd.f32 %v1336, %v1359
      %v1376 = vadd.f32 %v1337, %v1360
      %v1377 = vadd.f32 %v1338, %v1361
      %v1378 = vadd.f32 %v1339, %v1362
      %v1379 = vadd.f32 %v1340, %v1363
      %v1380 = vadd.f32 %v1341, %v1364
      %v1381 = vadd.f32 %v1342, %v1365
      %v1382 = vadd.f32 %v1343, %v1366
      %v1383 = vadd.f32 %v1344, %v1367
      %v1384 = vadd.f32 %v1345, %v1368
      %v1385 = vadd.f32 %v1346, %v1369
      %v1386 = vadd.f32 %v1347, %v1370
      %v1387 = vadd.f32 %v1348, %v1371
      %v1388 = vadd.f32 %v1349, %v1372
      %v1389 = vld [vmem:[#allocation2] sm:$0xff]
      %v1390 = vld [vmem:[#allocation2 + $0x8] sm:$0xff]
      %v1391 = vld [vmem:[#allocation2 + $0x10] sm:$0xff]
      %v1392 = vld [vmem:[#allocation2 + $0x18] sm:$0xff]
      %v1393 = vld [vmem:[#allocation2 + $0x20] sm:$0xff]
      %v1394 = vld [vmem:[#allocation2 + $0x28] sm:$0xff]
      %v1395 = vld [vmem:[#allocation2 + $0x30] sm:$0xff]
      %v1396 = vld [vmem:[#allocation2 + $0x38] sm:$0xff]
      %v1397 = vld [vmem:[#allocation2 + $0x40] sm:$0xff]
      %v1398 = vld [vmem:[#allocation2 + $0x48] sm:$0xff]
      %v1399 = vld [vmem:[#allocation2 + $0x50] sm:$0xff]
      %v1400 = vld [vmem:[#allocation2 + $0x58] sm:$0xff]
      %v1401 = vld [vmem:[#allocation2 + $0x60] sm:$0xff]
      %v1402 = vld [vmem:[#allocation2 + $0x68] sm:$0xff]
      %v1403 = vld [vmem:[#allocation2 + $0x70] sm:$0xff]
      %v1404 = vld [vmem:[#allocation2 + $0x78] sm:$0xff]
      %v1405 = vadd.f32 %v1389, %v1373
      %v1406 = vadd.f32 %v1390, %v1374
      %v1407 = vadd.f32 %v1391, %v1375
      %v1408 = vadd.f32 %v1392, %v1376
      %v1409 = vadd.f32 %v1393, %v1377
      %v1410 = vadd.f32 %v1394, %v1378
      %v1411 = vadd.f32 %v1395, %v1379
      %v1412 = vadd.f32 %v1396, %v1380
      %v1413 = vadd.f32 %v1397, %v1381
      %v1414 = vadd.f32 %v1398, %v1382
      %v1415 = vadd.f32 %v1399, %v1383
      %v1416 = vadd.f32 %v1400, %v1384
      %v1417 = vadd.f32 %v1401, %v1385
      %v1418 = vadd.f32 %v1402, %v1386
      %v1419 = vadd.f32 %v1403, %v1387
      %v1420 = vadd.f32 %v1404, %v1388
      %1421 = vst [vmem:[#allocation2] sm:$0xff] %v1405
      %1422 = vst [vmem:[#allocation2 + $0x8] sm:$0xff] %v1406
      %1423 = vst [vmem:[#allocation2 + $0x10] sm:$0xff] %v1407
      %1424 = vst [vmem:[#allocation2 + $0x18] sm:$0xff] %v1408
      %1425 = vst [vmem:[#allocation2 + $0x20] sm:$0xff] %v1409
      %1426 = vst [vmem:[#allocation2 + $0x28] sm:$0xff] %v1410
      %1427 = vst [vmem:[#allocation2 + $0x30] sm:$0xff] %v1411
      %1428 = vst [vmem:[#allocation2 + $0x38] sm:$0xff] %v1412
      %1429 = vst [vmem:[#allocation2 + $0x40] sm:$0xff] %v1413
      %1430 = vst [vmem:[#allocation2 + $0x48] sm:$0xff] %v1414
      %1431 = vst [vmem:[#allocation2 + $0x50] sm:$0xff] %v1415
      %1432 = vst [vmem:[#allocation2 + $0x58] sm:$0xff] %v1416
      %1433 = vst [vmem:[#allocation2 + $0x60] sm:$0xff] %v1417
      %1434 = vst [vmem:[#allocation2 + $0x68] sm:$0xff] %v1418
      %1435 = vst [vmem:[#allocation2 + $0x70] sm:$0xff] %v1419
      %1436 = vst [vmem:[#allocation2 + $0x78] sm:$0xff] %v1420
      %s1437 = scalar_lea.vmem %s3, 4
      %v1438 = vld [vmem:[%s1437] ss:$8 sm:$0x3]
      %v1440 = vperm.slane %v1438, 0
      %v1441 = vperm.slane %v1438, 1
      %v1444 = vmul.f32 %v428, %v1440
      %v1445 = vmul.f32 %v429, %v1441
      %v1446 = vmul.f32 %v406, %v1440
      %v1447 = vmul.f32 %v407, %v1441
      %v1448 = vmul.f32 %v408, %v1440
      %v1449 = vmul.f32 %v409, %v1441
      %v1450 = vmul.f32 %v410, %v1440
      %v1451 = vmul.f32 %v411, %v1441
      %v1452 = vmul.f32 %v412, %v1440
      %v1453 = vmul.f32 %v413, %v1441
      %v1454 = vmul.f32 %v414, %v1440
      %v1455 = vmul.f32 %v415, %v1441
      %v1456 = vmul.f32 %v416, %v1440
      %v1457 = vmul.f32 %v417, %v1441
      %v1458 = vmul.f32 %v418, %v1440
      %v1459 = vmul.f32 %v419, %v1441
      %s1460 = scalar_lea.vmem %s3, 21
      %v1461 = vld [vmem:[%s1460] ss:$8 sm:$0x3]
      %v1463 = vperm.slane %v1461, 0
      %v1464 = vperm.slane %v1461, 1
      %v1467 = vmul.f32 %v406, %v1463
      %v1468 = vmul.f32 %v407, %v1464
      %v1469 = vmul.f32 %v408, %v1463
      %v1470 = vmul.f32 %v409, %v1464
      %v1471 = vmul.f32 %v410, %v1463
      %v1472 = vmul.f32 %v411, %v1464
      %v1473 = vmul.f32 %v412, %v1463
      %v1474 = vmul.f32 %v413, %v1464
      %v1475 = vmul.f32 %v414, %v1463
      %v1476 = vmul.f32 %v415, %v1464
      %v1477 = vmul.f32 %v416, %v1463
      %v1478 = vmul.f32 %v417, %v1464
      %v1479 = vmul.f32 %v418, %v1463
      %v1480 = vmul.f32 %v419, %v1464
      %v1481 = vmul.f32 %v420, %v1463
      %v1482 = vmul.f32 %v421, %v1464
      %v1483 = vadd.f32 %v1444, %v1467
      %v1484 = vadd.f32 %v1445, %v1468
      %v1485 = vadd.f32 %v1446, %v1469
      %v1486 = vadd.f32 %v1447, %v1470
      %v1487 = vadd.f32 %v1448, %v1471
      %v1488 = vadd.f32 %v1449, %v1472
      %v1489 = vadd.f32 %v1450, %v1473
      %v1490 = vadd.f32 %v1451, %v1474
      %v1491 = vadd.f32 %v1452, %v1475
      %v1492 = vadd.f32 %v1453, %v1476
      %v1493 = vadd.f32 %v1454, %v1477
      %v1494 = vadd.f32 %v1455, %v1478
      %v1495 = vadd.f32 %v1456, %v1479
      %v1496 = vadd.f32 %v1457, %v1480
      %v1497 = vadd.f32 %v1458, %v1481
      %v1498 = vadd.f32 %v1459, %v1482
      %s1499 = scalar_lea.vmem %s3, 38
      %v1500 = vld [vmem:[%s1499] ss:$8 sm:$0x3]
      %v1502 = vperm.slane %v1500, 0
      %v1503 = vperm.slane %v1500, 1
      %v1506 = vmul.f32 %v408, %v1502
      %v1507 = vmul.f32 %v409, %v1503
      %v1508 = vmul.f32 %v410, %v1502
      %v1509 = vmul.f32 %v411, %v1503
      %v1510 = vmul.f32 %v412, %v1502
      %v1511 = vmul.f32 %v413, %v1503
      %v1512 = vmul.f32 %v414, %v1502
      %v1513 = vmul.f32 %v415, %v1503
      %v1514 = vmul.f32 %v416, %v1502
      %v1515 = vmul.f32 %v417, %v1503
      %v1516 = vmul.f32 %v418, %v1502
      %v1517 = vmul.f32 %v419, %v1503
      %v1518 = vmul.f32 %v420, %v1502
      %v1519 = vmul.f32 %v421, %v1503
      %v1520 = vmul.f32 %v436, %v1502
      %v1521 = vmul.f32 %v437, %v1503
      %v1522 = vadd.f32 %v1483, %v1506
      %v1523 = vadd.f32 %v1484, %v1507
      %v1524 = vadd.f32 %v1485, %v1508
      %v1525 = vadd.f32 %v1486, %v1509
      %v1526 = vadd.f32 %v1487, %v1510
      %v1527 = vadd.f32 %v1488, %v1511
      %v1528 = vadd.f32 %v1489, %v1512
      %v1529 = vadd.f32 %v1490, %v1513
      %v1530 = vadd.f32 %v1491, %v1514
      %v1531 = vadd.f32 %v1492, %v1515
      %v1532 = vadd.f32 %v1493, %v1516
      %v1533 = vadd.f32 %v1494, %v1517
      %v1534 = vadd.f32 %v1495, %v1518
      %v1535 = vadd.f32 %v1496, %v1519
      %v1536 = vadd.f32 %v1497, %v1520
      %v1537 = vadd.f32 %v1498, %v1521
      %v1538 = vld [vmem:[#allocation2] sm:$0xff]
      %v1539 = vld [vmem:[#allocation2 + $0x8] sm:$0xff]
      %v1540 = vld [vmem:[#allocation2 + $0x10] sm:$0xff]
      %v1541 = vld [vmem:[#allocation2 + $0x18] sm:$0xff]
      %v1542 = vld [vmem:[#allocation2 + $0x20] sm:$0xff]
      %v1543 = vld [vmem:[#allocation2 + $0x28] sm:$0xff]
      %v1544 = vld [vmem:[#allocation2 + $0x30] sm:$0xff]
      %v1545 = vld [vmem:[#allocation2 + $0x38] sm:$0xff]
      %v1546 = vld [vmem:[#allocation2 + $0x40] sm:$0xff]
      %v1547 = vld [vmem:[#allocation2 + $0x48] sm:$0xff]
      %v1548 = vld [vmem:[#allocation2 + $0x50] sm:$0xff]
      %v1549 = vld [vmem:[#allocation2 + $0x58] sm:$0xff]
      %v1550 = vld [vmem:[#allocation2 + $0x60] sm:$0xff]
      %v1551 = vld [vmem:[#allocation2 + $0x68] sm:$0xff]
      %v1552 = vld [vmem:[#allocation2 + $0x70] sm:$0xff]
      %v1553 = vld [vmem:[#allocation2 + $0x78] sm:$0xff]
      %v1554 = vadd.f32 %v1538, %v1522
      %v1555 = vadd.f32 %v1539, %v1523
      %v1556 = vadd.f32 %v1540, %v1524
      %v1557 = vadd.f32 %v1541, %v1525
      %v1558 = vadd.f32 %v1542, %v1526
      %v1559 = vadd.f32 %v1543, %v1527
      %v1560 = vadd.f32 %v1544, %v1528
      %v1561 = vadd.f32 %v1545, %v1529
      %v1562 = vadd.f32 %v1546, %v1530
      %v1563 = vadd.f32 %v1547, %v1531
      %v1564 = vadd.f32 %v1548, %v1532
      %v1565 = vadd.f32 %v1549, %v1533
      %v1566 = vadd.f32 %v1550, %v1534
      %v1567 = vadd.f32 %v1551, %v1535
      %v1568 = vadd.f32 %v1552, %v1536
      %v1569 = vadd.f32 %v1553, %v1537
      %1570 = vst [vmem:[#allocation2] sm:$0xff] %v1554
      %1571 = vst [vmem:[#allocation2 + $0x8] sm:$0xff] %v1555
      %1572 = vst [vmem:[#allocation2 + $0x10] sm:$0xff] %v1556
      %1573 = vst [vmem:[#allocation2 + $0x18] sm:$0xff] %v1557
      %1574 = vst [vmem:[#allocation2 + $0x20] sm:$0xff] %v1558
      %1575 = vst [vmem:[#allocation2 + $0x28] sm:$0xff] %v1559
      %1576 = vst [vmem:[#allocation2 + $0x30] sm:$0xff] %v1560
      %1577 = vst [vmem:[#allocation2 + $0x38] sm:$0xff] %v1561
      %1578 = vst [vmem:[#allocation2 + $0x40] sm:$0xff] %v1562
      %1579 = vst [vmem:[#allocation2 + $0x48] sm:$0xff] %v1563
      %1580 = vst [vmem:[#allocation2 + $0x50] sm:$0xff] %v1564
      %1581 = vst [vmem:[#allocation2 + $0x58] sm:$0xff] %v1565
      %1582 = vst [vmem:[#allocation2 + $0x60] sm:$0xff] %v1566
      %1583 = vst [vmem:[#allocation2 + $0x68] sm:$0xff] %v1567
      %1584 = vst [vmem:[#allocation2 + $0x70] sm:$0xff] %v1568
      %1585 = vst [vmem:[#allocation2 + $0x78] sm:$0xff] %v1569
      %1586 = vrot.lane.b32.xlu0 %v428, 96
      %v1587 = vpop.permute.xlu0 %1586
      %1588 = vrot.lane.b32.xlu0 %v406, 96
      %v1589 = vpop.permute.xlu0 %1588
      %1590 = vrot.lane.b32.xlu0 %v408, 96
      %v1591 = vpop.permute.xlu0 %1590
      %1592 = vrot.lane.b32.xlu0 %v410, 96
      %v1593 = vpop.permute.xlu0 %1592
      %1594 = vrot.lane.b32.xlu0 %v412, 96
      %v1595 = vpop.permute.xlu0 %1594
      %1596 = vrot.lane.b32.xlu0 %v414, 96
      %v1597 = vpop.permute.xlu0 %1596
      %1598 = vrot.lane.b32.xlu0 %v416, 96
      %v1599 = vpop.permute.xlu0 %1598
      %1600 = vrot.lane.b32.xlu0 %v418, 96
      %v1601 = vpop.permute.xlu0 %1600
      %1602 = vrot.lane.b32.xlu0 %v420, 96
      %v1603 = vpop.permute.xlu0 %1602
      %1604 = vrot.lane.b32.xlu0 %v436, 96
      %v1605 = vpop.permute.xlu0 %1604
      %1606 = vrot.lane.b32.xlu0 %v429, 96
      %v1607 = vpop.permute.xlu0 %1606
      %1608 = vrot.lane.b32.xlu0 %v407, 96
      %v1609 = vpop.permute.xlu0 %1608
      %1610 = vrot.lane.b32.xlu0 %v409, 96
      %v1611 = vpop.permute.xlu0 %1610
      %1612 = vrot.lane.b32.xlu0 %v411, 96
      %v1613 = vpop.permute.xlu0 %1612
      %1614 = vrot.lane.b32.xlu0 %v413, 96
      %v1615 = vpop.permute.xlu0 %1614
      %1616 = vrot.lane.b32.xlu0 %v415, 96
      %v1617 = vpop.permute.xlu0 %1616
      %1618 = vrot.lane.b32.xlu0 %v417, 96
      %v1619 = vpop.permute.xlu0 %1618
      %1620 = vrot.lane.b32.xlu0 %v419, 96
      %v1621 = vpop.permute.xlu0 %1620
      %1622 = vrot.lane.b32.xlu0 %v421, 96
      %v1623 = vpop.permute.xlu0 %1622
      %1624 = vrot.lane.b32.xlu0 %v437, 96
      %v1625 = vpop.permute.xlu0 %1624
      %v1626 = vsel %vm1058, %v1587, %v1607
      %v1627 = vsel %vm1058, %v1589, %v1609
      %v1628 = vsel %vm1058, %v1591, %v1611
      %v1629 = vsel %vm1058, %v1593, %v1613
      %v1630 = vsel %vm1058, %v1595, %v1615
      %v1631 = vsel %vm1058, %v1597, %v1617
      %v1632 = vsel %vm1058, %v1599, %v1619
      %v1633 = vsel %vm1058, %v1601, %v1621
      %v1634 = vsel %vm1058, %v1603, %v1623
      %v1635 = vsel %vm1058, %v1605, %v1625
      %v1636 = vsel %vm1058, %v1607, %v1587
      %v1637 = vsel %vm1058, %v1609, %v1589
      %v1638 = vsel %vm1058, %v1611, %v1591
      %v1639 = vsel %vm1058, %v1613, %v1593
      %v1640 = vsel %vm1058, %v1615, %v1595
      %v1641 = vsel %vm1058, %v1617, %v1597
      %v1642 = vsel %vm1058, %v1619, %v1599
      %v1643 = vsel %vm1058, %v1621, %v1601
      %v1644 = vsel %vm1058, %v1623, %v1603
      %v1645 = vsel %vm1058, %v1625, %v1605
      %s1646 = scalar_lea.vmem %s3, 5
      %v1647 = vld [vmem:[%s1646] ss:$8 sm:$0x3]
      %v1649 = vperm.slane %v1647, 0
      %v1650 = vperm.slane %v1647, 1
      %v1653 = vmul.f32 %v1626, %v1649
      %v1654 = vmul.f32 %v1636, %v1650
      %v1655 = vmul.f32 %v1627, %v1649
      %v1656 = vmul.f32 %v1637, %v1650
      %v1657 = vmul.f32 %v1628, %v1649
      %v1658 = vmul.f32 %v1638, %v1650
      %v1659 = vmul.f32 %v1629, %v1649
      %v1660 = vmul.f32 %v1639, %v1650
      %v1661 = vmul.f32 %v1630, %v1649
      %v1662 = vmul.f32 %v1640, %v1650
      %v1663 = vmul.f32 %v1631, %v1649
      %v1664 = vmul.f32 %v1641, %v1650
      %v1665 = vmul.f32 %v1632, %v1649
      %v1666 = vmul.f32 %v1642, %v1650
      %v1667 = vmul.f32 %v1633, %v1649
      %v1668 = vmul.f32 %v1643, %v1650
      %s1669 = scalar_lea.vmem %s3, 22
      %v1670 = vld [vmem:[%s1669] ss:$8 sm:$0x3]
      %v1672 = vperm.slane %v1670, 0
      %v1673 = vperm.slane %v1670, 1
      %v1676 = vmul.f32 %v1627, %v1672
      %v1677 = vmul.f32 %v1637, %v1673
      %v1678 = vmul.f32 %v1628, %v1672
      %v1679 = vmul.f32 %v1638, %v1673
      %v1680 = vmul.f32 %v1629, %v1672
      %v1681 = vmul.f32 %v1639, %v1673
      %v1682 = vmul.f32 %v1630, %v1672
      %v1683 = vmul.f32 %v1640, %v1673
      %v1684 = vmul.f32 %v1631, %v1672
      %v1685 = vmul.f32 %v1641, %v1673
      %v1686 = vmul.f32 %v1632, %v1672
      %v1687 = vmul.f32 %v1642, %v1673
      %v1688 = vmul.f32 %v1633, %v1672
      %v1689 = vmul.f32 %v1643, %v1673
      %v1690 = vmul.f32 %v1634, %v1672
      %v1691 = vmul.f32 %v1644, %v1673
      %v1692 = vadd.f32 %v1653, %v1676
      %v1693 = vadd.f32 %v1654, %v1677
      %v1694 = vadd.f32 %v1655, %v1678
      %v1695 = vadd.f32 %v1656, %v1679
      %v1696 = vadd.f32 %v1657, %v1680
      %v1697 = vadd.f32 %v1658, %v1681
      %v1698 = vadd.f32 %v1659, %v1682
      %v1699 = vadd.f32 %v1660, %v1683
      %v1700 = vadd.f32 %v1661, %v1684
      %v1701 = vadd.f32 %v1662, %v1685
      %v1702 = vadd.f32 %v1663, %v1686
      %v1703 = vadd.f32 %v1664, %v1687
      %v1704 = vadd.f32 %v1665, %v1688
      %v1705 = vadd.f32 %v1666, %v1689
      %v1706 = vadd.f32 %v1667, %v1690
      %v1707 = vadd.f32 %v1668, %v1691
      %s1708 = scalar_lea.vmem %s3, 39
      %v1709 = vld [vmem:[%s1708] ss:$8 sm:$0x3]
      %v1711 = vperm.slane %v1709, 0
      %v1712 = vperm.slane %v1709, 1
      %v1715 = vmul.f32 %v1628, %v1711
      %v1716 = vmul.f32 %v1638, %v1712
      %v1717 = vmul.f32 %v1629, %v1711
      %v1718 = vmul.f32 %v1639, %v1712
      %v1719 = vmul.f32 %v1630, %v1711
      %v1720 = vmul.f32 %v1640, %v1712
      %v1721 = vmul.f32 %v1631, %v1711
      %v1722 = vmul.f32 %v1641, %v1712
      %v1723 = vmul.f32 %v1632, %v1711
      %v1724 = vmul.f32 %v1642, %v1712
      %v1725 = vmul.f32 %v1633, %v1711
      %v1726 = vmul.f32 %v1643, %v1712
      %v1727 = vmul.f32 %v1634, %v1711
      %v1728 = vmul.f32 %v1644, %v1712
      %v1729 = vmul.f32 %v1635, %v1711
      %v1730 = vmul.f32 %v1645, %v1712
      %v1731 = vadd.f32 %v1692, %v1715
      %v1732 = vadd.f32 %v1693, %v1716
      %v1733 = vadd.f32 %v1694, %v1717
      %v1734 = vadd.f32 %v1695, %v1718
      %v1735 = vadd.f32 %v1696, %v1719
      %v1736 = vadd.f32 %v1697, %v1720
      %v1737 = vadd.f32 %v1698, %v1721
      %v1738 = vadd.f32 %v1699, %v1722
      %v1739 = vadd.f32 %v1700, %v1723
      %v1740 = vadd.f32 %v1701, %v1724
      %v1741 = vadd.f32 %v1702, %v1725
      %v1742 = vadd.f32 %v1703, %v1726
      %v1743 = vadd.f32 %v1704, %v1727
      %v1744 = vadd.f32 %v1705, %v1728
      %v1745 = vadd.f32 %v1706, %v1729
      %v1746 = vadd.f32 %v1707, %v1730
      %v1747 = vld [vmem:[#allocation2] sm:$0xff]
      %v1748 = vld [vmem:[#allocation2 + $0x8] sm:$0xff]
      %v1749 = vld [vmem:[#allocation2 + $0x10] sm:$0xff]
      %v1750 = vld [vmem:[#allocation2 + $0x18] sm:$0xff]
      %v1751 = vld [vmem:[#allocation2 + $0x20] sm:$0xff]
      %v1752 = vld [vmem:[#allocation2 + $0x28] sm:$0xff]
      %v1753 = vld [vmem:[#allocation2 + $0x30] sm:$0xff]
      %v1754 = vld [vmem:[#allocation2 + $0x38] sm:$0xff]
      %v1755 = vld [vmem:[#allocation2 + $0x40] sm:$0xff]
      %v1756 = vld [vmem:[#allocation2 + $0x48] sm:$0xff]
      %v1757 = vld [vmem:[#allocation2 + $0x50] sm:$0xff]
      %v1758 = vld [vmem:[#allocation2 + $0x58] sm:$0xff]
      %v1759 = vld [vmem:[#allocation2 + $0x60] sm:$0xff]
      %v1760 = vld [vmem:[#allocation2 + $0x68] sm:$0xff]
      %v1761 = vld [vmem:[#allocation2 + $0x70] sm:$0xff]
      %v1762 = vld [vmem:[#allocation2 + $0x78] sm:$0xff]
      %v1763 = vadd.f32 %v1747, %v1731
      %v1764 = vadd.f32 %v1748, %v1732
      %v1765 = vadd.f32 %v1749, %v1733
      %v1766 = vadd.f32 %v1750, %v1734
      %v1767 = vadd.f32 %v1751, %v1735
      %v1768 = vadd.f32 %v1752, %v1736
      %v1769 = vadd.f32 %v1753, %v1737
      %v1770 = vadd.f32 %v1754, %v1738
      %v1771 = vadd.f32 %v1755, %v1739
      %v1772 = vadd.f32 %v1756, %v1740
      %v1773 = vadd.f32 %v1757, %v1741
      %v1774 = vadd.f32 %v1758, %v1742
      %v1775 = vadd.f32 %v1759, %v1743
      %v1776 = vadd.f32 %v1760, %v1744
      %v1777 = vadd.f32 %v1761, %v1745
      %v1778 = vadd.f32 %v1762, %v1746
      %1779 = vst [vmem:[#allocation2] sm:$0xff] %v1763
      %1780 = vst [vmem:[#allocation2 + $0x8] sm:$0xff] %v1764
      %1781 = vst [vmem:[#allocation2 + $0x10] sm:$0xff] %v1765
      %1782 = vst [vmem:[#allocation2 + $0x18] sm:$0xff] %v1766
      %1783 = vst [vmem:[#allocation2 + $0x20] sm:$0xff] %v1767
      %1784 = vst [vmem:[#allocation2 + $0x28] sm:$0xff] %v1768
      %1785 = vst [vmem:[#allocation2 + $0x30] sm:$0xff] %v1769
      %1786 = vst [vmem:[#allocation2 + $0x38] sm:$0xff] %v1770
      %1787 = vst [vmem:[#allocation2 + $0x40] sm:$0xff] %v1771
      %1788 = vst [vmem:[#allocation2 + $0x48] sm:$0xff] %v1772
      %1789 = vst [vmem:[#allocation2 + $0x50] sm:$0xff] %v1773
      %1790 = vst [vmem:[#allocation2 + $0x58] sm:$0xff] %v1774
      %1791 = vst [vmem:[#allocation2 + $0x60] sm:$0xff] %v1775
      %1792 = vst [vmem:[#allocation2 + $0x68] sm:$0xff] %v1776
      %1793 = vst [vmem:[#allocation2 + $0x70] sm:$0xff] %v1777
      %1794 = vst [vmem:[#allocation2 + $0x78] sm:$0xff] %v1778
      %v1795 = vrot.slane %v428, 1
      %v1796 = vrot.slane %v429, 1
      %v1797 = vrot.slane %v406, 1
      %v1798 = vrot.slane %v407, 1
      %v1799 = vrot.slane %v408, 1
      %v1800 = vrot.slane %v409, 1
      %v1801 = vrot.slane %v410, 1
      %v1802 = vrot.slane %v411, 1
      %v1803 = vrot.slane %v412, 1
      %v1804 = vrot.slane %v413, 1
      %v1805 = vrot.slane %v414, 1
      %v1806 = vrot.slane %v415, 1
      %v1807 = vrot.slane %v416, 1
      %v1808 = vrot.slane %v417, 1
      %v1809 = vrot.slane %v418, 1
      %v1810 = vrot.slane %v419, 1
      %v1811 = vrot.slane %v420, 1
      %v1812 = vrot.slane %v421, 1
      %v1813 = vrot.slane %v436, 1
      %v1814 = vrot.slane %v437, 1
      %vm1815 = vcmp.lt.s32.totalorder %v439, 7
      %v1816 = vsel %vm1815, %v1811, %v1813
      %v1817 = vsel %vm1815, %v1812, %v1814
      %v1818 = vsel %vm1815, %v1809, %v1811
      %v1819 = vsel %vm1815, %v1810, %v1812
      %v1820 = vsel %vm1815, %v1807, %v1809
      %v1821 = vsel %vm1815, %v1808, %v1810
      %v1822 = vsel %vm1815, %v1805, %v1807
      %v1823 = vsel %vm1815, %v1806, %v1808
      %v1824 = vsel %vm1815, %v1803, %v1805
      %v1825 = vsel %vm1815, %v1804, %v1806
      %v1826 = vsel %vm1815, %v1801, %v1803
      %v1827 = vsel %vm1815, %v1802, %v1804
      %v1828 = vsel %vm1815, %v1799, %v1801
      %v1829 = vsel %vm1815, %v1800, %v1802
      %v1830 = vsel %vm1815, %v1797, %v1799
      %v1831 = vsel %vm1815, %v1798, %v1800
      %v1832 = vsel %vm1815, %v1795, %v1797
      %v1833 = vsel %vm1815, %v1796, %v1798
      %v1834 = vsel %vm1815, %v1813, %v1795
      %v1835 = vsel %vm1815, %v1814, %v1796
      %v1836 = vadd.s32 %v559, 1
      %v1837 = vadd.s32 %v560, 1
      %v1838 = vadd.s32 %v561, 1
      %v1839 = vadd.s32 %v562, 1
      %v1840 = vadd.s32 %v563, 1
      %v1841 = vadd.s32 %v564, 1
      %v1842 = vadd.s32 %v565, 1
      %v1843 = vadd.s32 %v566, 1
      %v1844 = vadd.s32 %v567, 1
      %v1845 = vadd.s32 %v568, 1
      %vm1846 = vcmp.ge.s32.totalorder %v1836, 0
      %vm1847 = vcmp.ge.s32.totalorder %v1837, 0
      %vm1848 = vcmp.ge.s32.totalorder %v1838, 0
      %vm1849 = vcmp.ge.s32.totalorder %v1839, 0
      %vm1850 = vcmp.ge.s32.totalorder %v1840, 0
      %vm1851 = vcmp.ge.s32.totalorder %v1841, 0
      %vm1852 = vcmp.ge.s32.totalorder %v1842, 0
      %vm1853 = vcmp.ge.s32.totalorder %v1843, 0
      %vm1854 = vcmp.ge.s32.totalorder %v1844, 0
      %vm1855 = vcmp.ge.s32.totalorder %v1845, 0
      %vm1856 = vcmp.lt.s32.totalorder %v1836, 8
      %vm1857 = vcmp.lt.s32.totalorder %v1837, 8
      %vm1858 = vcmp.lt.s32.totalorder %v1838, 8
      %vm1859 = vcmp.lt.s32.totalorder %v1839, 8
      %vm1860 = vcmp.lt.s32.totalorder %v1840, 8
      %vm1861 = vcmp.lt.s32.totalorder %v1841, 8
      %vm1862 = vcmp.lt.s32.totalorder %v1842, 8
      %vm1863 = vcmp.lt.s32.totalorder %v1843, 8
      %vm1864 = vcmp.lt.s32.totalorder %v1844, 8
      %vm1865 = vcmp.lt.s32.totalorder %v1845, 8
      %vm1866 = vmand %vm1846, %vm1856
      %vm1867 = vmand %vm1847, %vm1857
      %vm1868 = vmand %vm1848, %vm1858
      %vm1869 = vmand %vm1849, %vm1859
      %vm1870 = vmand %vm1850, %vm1860
      %vm1871 = vmand %vm1851, %vm1861
      %vm1872 = vmand %vm1852, %vm1862
      %vm1873 = vmand %vm1853, %vm1863
      %vm1874 = vmand %vm1854, %vm1864
      %vm1875 = vmand %vm1855, %vm1865
      %v1876 = vsel %vm1866, 1, 0
      %v1877 = vsel %vm1867, 1, 0
      %v1878 = vsel %vm1868, 1, 0
      %v1879 = vsel %vm1869, 1, 0
      %v1880 = vsel %vm1870, 1, 0
      %v1881 = vsel %vm1871, 1, 0
      %v1882 = vsel %vm1872, 1, 0
      %v1883 = vsel %vm1873, 1, 0
      %v1884 = vsel %vm1874, 1, 0
      %v1885 = vsel %vm1875, 1, 0
      %vm1886 = vcmp.eq.s32.totalorder %v1876, 1
      %vm1887 = vcmp.eq.s32.totalorder %v1877, 1
      %vm1888 = vcmp.eq.s32.totalorder %v1878, 1
      %vm1889 = vcmp.eq.s32.totalorder %v1879, 1
      %vm1890 = vcmp.eq.s32.totalorder %v1880, 1
      %vm1891 = vcmp.eq.s32.totalorder %v1881, 1
      %vm1892 = vcmp.eq.s32.totalorder %v1882, 1
      %vm1893 = vcmp.eq.s32.totalorder %v1883, 1
      %vm1894 = vcmp.eq.s32.totalorder %v1884, 1
      %vm1895 = vcmp.eq.s32.totalorder %v1885, 1
      %v1896 = vsel %vm1886, %v1832, 0.0
      %v1897 = vsel %vm1886, %v1833, 0.0
      %v1898 = vsel %vm1887, %v1830, 0.0
      %v1899 = vsel %vm1887, %v1831, 0.0
      %v1900 = vsel %vm1888, %v1828, 0.0
      %v1901 = vsel %vm1888, %v1829, 0.0
      %v1902 = vsel %vm1889, %v1826, 0.0
      %v1903 = vsel %vm1889, %v1827, 0.0
      %v1904 = vsel %vm1890, %v1824, 0.0
      %v1905 = vsel %vm1890, %v1825, 0.0
      %v1906 = vsel %vm1891, %v1822, 0.0
      %v1907 = vsel %vm1891, %v1823, 0.0
      %v1908 = vsel %vm1892, %v1820, 0.0
      %v1909 = vsel %vm1892, %v1821, 0.0
      %v1910 = vsel %vm1893, %v1818, 0.0
      %v1911 = vsel %vm1893, %v1819, 0.0
      %v1912 = vsel %vm1894, %v1816, 0.0
      %v1913 = vsel %vm1894, %v1817, 0.0
      %v1914 = vsel %vm1895, %v1834, 0.0
      %v1915 = vsel %vm1895, %v1835, 0.0
      %1916 = vrot.lane.b32.xlu0 %v1896, 32
      %v1917 = vpop.permute.xlu0 %1916
      %1918 = vrot.lane.b32.xlu0 %v1898, 32
      %v1919 = vpop.permute.xlu0 %1918
      %1920 = vrot.lane.b32.xlu0 %v1900, 32
      %v1921 = vpop.permute.xlu0 %1920
      %1922 = vrot.lane.b32.xlu0 %v1902, 32
      %v1923 = vpop.permute.xlu0 %1922
      %1924 = vrot.lane.b32.xlu0 %v1904, 32
      %v1925 = vpop.permute.xlu0 %1924
      %1926 = vrot.lane.b32.xlu0 %v1906, 32
      %v1927 = vpop.permute.xlu0 %1926
      %1928 = vrot.lane.b32.xlu0 %v1908, 32
      %v1929 = vpop.permute.xlu0 %1928
      %1930 = vrot.lane.b32.xlu0 %v1910, 32
      %v1931 = vpop.permute.xlu0 %1930
      %1932 = vrot.lane.b32.xlu0 %v1912, 32
      %v1933 = vpop.permute.xlu0 %1932
      %1934 = vrot.lane.b32.xlu0 %v1914, 32
      %v1935 = vpop.permute.xlu0 %1934
      %1936 = vrot.lane.b32.xlu0 %v1897, 32
      %v1937 = vpop.permute.xlu0 %1936
      %1938 = vrot.lane.b32.xlu0 %v1899, 32
      %v1939 = vpop.permute.xlu0 %1938
      %1940 = vrot.lane.b32.xlu0 %v1901, 32
      %v1941 = vpop.permute.xlu0 %1940
      %1942 = vrot.lane.b32.xlu0 %v1903, 32
      %v1943 = vpop.permute.xlu0 %1942
      %1944 = vrot.lane.b32.xlu0 %v1905, 32
      %v1945 = vpop.permute.xlu0 %1944
      %1946 = vrot.lane.b32.xlu0 %v1907, 32
      %v1947 = vpop.permute.xlu0 %1946
      %1948 = vrot.lane.b32.xlu0 %v1909, 32
      %v1949 = vpop.permute.xlu0 %1948
      %1950 = vrot.lane.b32.xlu0 %v1911, 32
      %v1951 = vpop.permute.xlu0 %1950
      %1952 = vrot.lane.b32.xlu0 %v1913, 32
      %v1953 = vpop.permute.xlu0 %1952
      %1954 = vrot.lane.b32.xlu0 %v1915, 32
      %v1955 = vpop.permute.xlu0 %1954
      %v1956 = vsel %vm732, %v1917, %v1937
      %v1957 = vsel %vm732, %v1919, %v1939
      %v1958 = vsel %vm732, %v1921, %v1941
      %v1959 = vsel %vm732, %v1923, %v1943
      %v1960 = vsel %vm732, %v1925, %v1945
      %v1961 = vsel %vm732, %v1927, %v1947
      %v1962 = vsel %vm732, %v1929, %v1949
      %v1963 = vsel %vm732, %v1931, %v1951
      %v1964 = vsel %vm732, %v1933, %v1953
      %v1965 = vsel %vm732, %v1935, %v1955
      %v1966 = vsel %vm732, %v1937, %v1917
      %v1967 = vsel %vm732, %v1939, %v1919
      %v1968 = vsel %vm732, %v1941, %v1921
      %v1969 = vsel %vm732, %v1943, %v1923
      %v1970 = vsel %vm732, %v1945, %v1925
      %v1971 = vsel %vm732, %v1947, %v1927
      %v1972 = vsel %vm732, %v1949, %v1929
      %v1973 = vsel %vm732, %v1951, %v1931
      %v1974 = vsel %vm732, %v1953, %v1933
      %v1975 = vsel %vm732, %v1955, %v1935
      %s1976 = scalar_lea.vmem %s3, 6
      %v1977 = vld [vmem:[%s1976] ss:$8 sm:$0x3]
      %v1979 = vperm.slane %v1977, 0
      %v1980 = vperm.slane %v1977, 1
      %v1983 = vmul.f32 %v1966, %v1979
      %v1984 = vmul.f32 %v1956, %v1980
      %v1985 = vmul.f32 %v1967, %v1979
      %v1986 = vmul.f32 %v1957, %v1980
      %v1987 = vmul.f32 %v1968, %v1979
      %v1988 = vmul.f32 %v1958, %v1980
      %v1989 = vmul.f32 %v1969, %v1979
      %v1990 = vmul.f32 %v1959, %v1980
      %v1991 = vmul.f32 %v1970, %v1979
      %v1992 = vmul.f32 %v1960, %v1980
      %v1993 = vmul.f32 %v1971, %v1979
      %v1994 = vmul.f32 %v1961, %v1980
      %v1995 = vmul.f32 %v1972, %v1979
      %v1996 = vmul.f32 %v1962, %v1980
      %v1997 = vmul.f32 %v1973, %v1979
      %v1998 = vmul.f32 %v1963, %v1980
      %s1999 = scalar_lea.vmem %s3, 23
      %v2000 = vld [vmem:[%s1999] ss:$8 sm:$0x3]
      %v2002 = vperm.slane %v2000, 0
      %v2003 = vperm.slane %v2000, 1
      %v2006 = vmul.f32 %v1967, %v2002
      %v2007 = vmul.f32 %v1957, %v2003
      %v2008 = vmul.f32 %v1968, %v2002
      %v2009 = vmul.f32 %v1958, %v2003
      %v2010 = vmul.f32 %v1969, %v2002
      %v2011 = vmul.f32 %v1959, %v2003
      %v2012 = vmul.f32 %v1970, %v2002
      %v2013 = vmul.f32 %v1960, %v2003
      %v2014 = vmul.f32 %v1971, %v2002
      %v2015 = vmul.f32 %v1961, %v2003
      %v2016 = vmul.f32 %v1972, %v2002
      %v2017 = vmul.f32 %v1962, %v2003
      %v2018 = vmul.f32 %v1973, %v2002
      %v2019 = vmul.f32 %v1963, %v2003
      %v2020 = vmul.f32 %v1974, %v2002
      %v2021 = vmul.f32 %v1964, %v2003
      %v2022 = vadd.f32 %v1983, %v2006
      %v2023 = vadd.f32 %v1984, %v2007
      %v2024 = vadd.f32 %v1985, %v2008
      %v2025 = vadd.f32 %v1986, %v2009
      %v2026 = vadd.f32 %v1987, %v2010
      %v2027 = vadd.f32 %v1988, %v2011
      %v2028 = vadd.f32 %v1989, %v2012
      %v2029 = vadd.f32 %v1990, %v2013
      %v2030 = vadd.f32 %v1991, %v2014
      %v2031 = vadd.f32 %v1992, %v2015
      %v2032 = vadd.f32 %v1993, %v2016
      %v2033 = vadd.f32 %v1994, %v2017
      %v2034 = vadd.f32 %v1995, %v2018
      %v2035 = vadd.f32 %v1996, %v2019
      %v2036 = vadd.f32 %v1997, %v2020
      %v2037 = vadd.f32 %v1998, %v2021
      %s2038 = scalar_lea.vmem %s3, 48
      %v2039 = vld [vmem:[%s2038] ss:$8 sm:$0x3]
      %v2041 = vperm.slane %v2039, 0
      %v2042 = vperm.slane %v2039, 1
      %v2045 = vmul.f32 %v1968, %v2041
      %v2046 = vmul.f32 %v1958, %v2042
      %v2047 = vmul.f32 %v1969, %v2041
      %v2048 = vmul.f32 %v1959, %v2042
      %v2049 = vmul.f32 %v1970, %v2041
      %v2050 = vmul.f32 %v1960, %v2042
      %v2051 = vmul.f32 %v1971, %v2041
      %v2052 = vmul.f32 %v1961, %v2042
      %v2053 = vmul.f32 %v1972, %v2041
      %v2054 = vmul.f32 %v1962, %v2042
      %v2055 = vmul.f32 %v1973, %v2041
      %v2056 = vmul.f32 %v1963, %v2042
      %v2057 = vmul.f32 %v1974, %v2041
      %v2058 = vmul.f32 %v1964, %v2042
      %v2059 = vmul.f32 %v1975, %v2041
      %v2060 = vmul.f32 %v1965, %v2042
      %v2061 = vadd.f32 %v2022, %v2045
      %v2062 = vadd.f32 %v2023, %v2046
      %v2063 = vadd.f32 %v2024, %v2047
      %v2064 = vadd.f32 %v2025, %v2048
      %v2065 = vadd.f32 %v2026, %v2049
      %v2066 = vadd.f32 %v2027, %v2050
      %v2067 = vadd.f32 %v2028, %v2051
      %v2068 = vadd.f32 %v2029, %v2052
      %v2069 = vadd.f32 %v2030, %v2053
      %v2070 = vadd.f32 %v2031, %v2054
      %v2071 = vadd.f32 %v2032, %v2055
      %v2072 = vadd.f32 %v2033, %v2056
      %v2073 = vadd.f32 %v2034, %v2057
      %v2074 = vadd.f32 %v2035, %v2058
      %v2075 = vadd.f32 %v2036, %v2059
      %v2076 = vadd.f32 %v2037, %v2060
      %v2077 = vld [vmem:[#allocation2] sm:$0xff]
      %v2078 = vld [vmem:[#allocation2 + $0x8] sm:$0xff]
      %v2079 = vld [vmem:[#allocation2 + $0x10] sm:$0xff]
      %v2080 = vld [vmem:[#allocation2 + $0x18] sm:$0xff]
      %v2081 = vld [vmem:[#allocation2 + $0x20] sm:$0xff]
      %v2082 = vld [vmem:[#allocation2 + $0x28] sm:$0xff]
      %v2083 = vld [vmem:[#allocation2 + $0x30] sm:$0xff]
      %v2084 = vld [vmem:[#allocation2 + $0x38] sm:$0xff]
      %v2085 = vld [vmem:[#allocation2 + $0x40] sm:$0xff]
      %v2086 = vld [vmem:[#allocation2 + $0x48] sm:$0xff]
      %v2087 = vld [vmem:[#allocation2 + $0x50] sm:$0xff]
      %v2088 = vld [vmem:[#allocation2 + $0x58] sm:$0xff]
      %v2089 = vld [vmem:[#allocation2 + $0x60] sm:$0xff]
      %v2090 = vld [vmem:[#allocation2 + $0x68] sm:$0xff]
      %v2091 = vld [vmem:[#allocation2 + $0x70] sm:$0xff]
      %v2092 = vld [vmem:[#allocation2 + $0x78] sm:$0xff]
      %v2093 = vadd.f32 %v2077, %v2061
      %v2094 = vadd.f32 %v2078, %v2062
      %v2095 = vadd.f32 %v2079, %v2063
      %v2096 = vadd.f32 %v2080, %v2064
      %v2097 = vadd.f32 %v2081, %v2065
      %v2098 = vadd.f32 %v2082, %v2066
      %v2099 = vadd.f32 %v2083, %v2067
      %v2100 = vadd.f32 %v2084, %v2068
      %v2101 = vadd.f32 %v2085, %v2069
      %v2102 = vadd.f32 %v2086, %v2070
      %v2103 = vadd.f32 %v2087, %v2071
      %v2104 = vadd.f32 %v2088, %v2072
      %v2105 = vadd.f32 %v2089, %v2073
      %v2106 = vadd.f32 %v2090, %v2074
      %v2107 = vadd.f32 %v2091, %v2075
      %v2108 = vadd.f32 %v2092, %v2076
      %2109 = vst [vmem:[#allocation2] sm:$0xff] %v2093
      %2110 = vst [vmem:[#allocation2 + $0x8] sm:$0xff] %v2094
      %2111 = vst [vmem:[#allocation2 + $0x10] sm:$0xff] %v2095
      %2112 = vst [vmem:[#allocation2 + $0x18] sm:$0xff] %v2096
      %2113 = vst [vmem:[#allocation2 + $0x20] sm:$0xff] %v2097
      %2114 = vst [vmem:[#allocation2 + $0x28] sm:$0xff] %v2098
      %2115 = vst [vmem:[#allocation2 + $0x30] sm:$0xff] %v2099
      %2116 = vst [vmem:[#allocation2 + $0x38] sm:$0xff] %v2100
      %2117 = vst [vmem:[#allocation2 + $0x40] sm:$0xff] %v2101
      %2118 = vst [vmem:[#allocation2 + $0x48] sm:$0xff] %v2102
      %2119 = vst [vmem:[#allocation2 + $0x50] sm:$0xff] %v2103
      %2120 = vst [vmem:[#allocation2 + $0x58] sm:$0xff] %v2104
      %2121 = vst [vmem:[#allocation2 + $0x60] sm:$0xff] %v2105
      %2122 = vst [vmem:[#allocation2 + $0x68] sm:$0xff] %v2106
      %2123 = vst [vmem:[#allocation2 + $0x70] sm:$0xff] %v2107
      %2124 = vst [vmem:[#allocation2 + $0x78] sm:$0xff] %v2108
      %s2125 = scalar_lea.vmem %s3, 7
      %v2126 = vld [vmem:[%s2125] ss:$8 sm:$0x3]
      %v2128 = vperm.slane %v2126, 0
      %v2129 = vperm.slane %v2126, 1
      %v2132 = vmul.f32 %v1896, %v2128
      %v2133 = vmul.f32 %v1897, %v2129
      %v2134 = vmul.f32 %v1898, %v2128
      %v2135 = vmul.f32 %v1899, %v2129
      %v2136 = vmul.f32 %v1900, %v2128
      %v2137 = vmul.f32 %v1901, %v2129
      %v2138 = vmul.f32 %v1902, %v2128
      %v2139 = vmul.f32 %v1903, %v2129
      %v2140 = vmul.f32 %v1904, %v2128
      %v2141 = vmul.f32 %v1905, %v2129
      %v2142 = vmul.f32 %v1906, %v2128
      %v2143 = vmul.f32 %v1907, %v2129
      %v2144 = vmul.f32 %v1908, %v2128
      %v2145 = vmul.f32 %v1909, %v2129
      %v2146 = vmul.f32 %v1910, %v2128
      %v2147 = vmul.f32 %v1911, %v2129
      %s2148 = scalar_lea.vmem %s3, 32
      %v2149 = vld [vmem:[%s2148] ss:$8 sm:$0x3]
      %v2151 = vperm.slane %v2149, 0
      %v2152 = vperm.slane %v2149, 1
      %v2155 = vmul.f32 %v1898, %v2151
      %v2156 = vmul.f32 %v1899, %v2152
      %v2157 = vmul.f32 %v1900, %v2151
      %v2158 = vmul.f32 %v1901, %v2152
      %v2159 = vmul.f32 %v1902, %v2151
      %v2160 = vmul.f32 %v1903, %v2152
      %v2161 = vmul.f32 %v1904, %v2151
      %v2162 = vmul.f32 %v1905, %v2152
      %v2163 = vmul.f32 %v1906, %v2151
      %v2164 = vmul.f32 %v1907, %v2152
      %v2165 = vmul.f32 %v1908, %v2151
      %v2166 = vmul.f32 %v1909, %v2152
      %v2167 = vmul.f32 %v1910, %v2151
      %v2168 = vmul.f32 %v1911, %v2152
      %v2169 = vmul.f32 %v1912, %v2151
      %v2170 = vmul.f32 %v1913, %v2152
      %v2171 = vadd.f32 %v2132, %v2155
      %v2172 = vadd.f32 %v2133, %v2156
      %v2173 = vadd.f32 %v2134, %v2157
      %v2174 = vadd.f32 %v2135, %v2158
      %v2175 = vadd.f32 %v2136, %v2159
      %v2176 = vadd.f32 %v2137, %v2160
      %v2177 = vadd.f32 %v2138, %v2161
      %v2178 = vadd.f32 %v2139, %v2162
      %v2179 = vadd.f32 %v2140, %v2163
      %v2180 = vadd.f32 %v2141, %v2164
      %v2181 = vadd.f32 %v2142, %v2165
      %v2182 = vadd.f32 %v2143, %v2166
      %v2183 = vadd.f32 %v2144, %v2167
      %v2184 = vadd.f32 %v2145, %v2168
      %v2185 = vadd.f32 %v2146, %v2169
      %v2186 = vadd.f32 %v2147, %v2170
      %s2187 = scalar_lea.vmem %s3, 49
      %v2188 = vld [vmem:[%s2187] ss:$8 sm:$0x3]
      %v2190 = vperm.slane %v2188, 0
      %v2191 = vperm.slane %v2188, 1
      %v2194 = vmul.f32 %v1900, %v2190
      %v2195 = vmul.f32 %v1901, %v2191
      %v2196 = vmul.f32 %v1902, %v2190
      %v2197 = vmul.f32 %v1903, %v2191
      %v2198 = vmul.f32 %v1904, %v2190
      %v2199 = vmul.f32 %v1905, %v2191
      %v2200 = vmul.f32 %v1906, %v2190
      %v2201 = vmul.f32 %v1907, %v2191
      %v2202 = vmul.f32 %v1908, %v2190
      %v2203 = vmul.f32 %v1909, %v2191
      %v2204 = vmul.f32 %v1910, %v2190
      %v2205 = vmul.f32 %v1911, %v2191
      %v2206 = vmul.f32 %v1912, %v2190
      %v2207 = vmul.f32 %v1913, %v2191
      %v2208 = vmul.f32 %v1914, %v2190
      %v2209 = vmul.f32 %v1915, %v2191
      %v2210 = vadd.f32 %v2171, %v2194
      %v2211 = vadd.f32 %v2172, %v2195
      %v2212 = vadd.f32 %v2173, %v2196
      %v2213 = vadd.f32 %v2174, %v2197
      %v2214 = vadd.f32 %v2175, %v2198
      %v2215 = vadd.f32 %v2176, %v2199
      %v2216 = vadd.f32 %v2177, %v2200
      %v2217 = vadd.f32 %v2178, %v2201
      %v2218 = vadd.f32 %v2179, %v2202
      %v2219 = vadd.f32 %v2180, %v2203
      %v2220 = vadd.f32 %v2181, %v2204
      %v2221 = vadd.f32 %v2182, %v2205
      %v2222 = vadd.f32 %v2183, %v2206
      %v2223 = vadd.f32 %v2184, %v2207
      %v2224 = vadd.f32 %v2185, %v2208
      %v2225 = vadd.f32 %v2186, %v2209
      %v2226 = vld [vmem:[#allocation2] sm:$0xff]
      %v2227 = vld [vmem:[#allocation2 + $0x8] sm:$0xff]
      %v2228 = vld [vmem:[#allocation2 + $0x10] sm:$0xff]
      %v2229 = vld [vmem:[#allocation2 + $0x18] sm:$0xff]
      %v2230 = vld [vmem:[#allocation2 + $0x20] sm:$0xff]
      %v2231 = vld [vmem:[#allocation2 + $0x28] sm:$0xff]
      %v2232 = vld [vmem:[#allocation2 + $0x30] sm:$0xff]
      %v2233 = vld [vmem:[#allocation2 + $0x38] sm:$0xff]
      %v2234 = vld [vmem:[#allocation2 + $0x40] sm:$0xff]
      %v2235 = vld [vmem:[#allocation2 + $0x48] sm:$0xff]
      %v2236 = vld [vmem:[#allocation2 + $0x50] sm:$0xff]
      %v2237 = vld [vmem:[#allocation2 + $0x58] sm:$0xff]
      %v2238 = vld [vmem:[#allocation2 + $0x60] sm:$0xff]
      %v2239 = vld [vmem:[#allocation2 + $0x68] sm:$0xff]
      %v2240 = vld [vmem:[#allocation2 + $0x70] sm:$0xff]
      %v2241 = vld [vmem:[#allocation2 + $0x78] sm:$0xff]
      %v2242 = vadd.f32 %v2226, %v2210
      %v2243 = vadd.f32 %v2227, %v2211
      %v2244 = vadd.f32 %v2228, %v2212
      %v2245 = vadd.f32 %v2229, %v2213
      %v2246 = vadd.f32 %v2230, %v2214
      %v2247 = vadd.f32 %v2231, %v2215
      %v2248 = vadd.f32 %v2232, %v2216
      %v2249 = vadd.f32 %v2233, %v2217
      %v2250 = vadd.f32 %v2234, %v2218
      %v2251 = vadd.f32 %v2235, %v2219
      %v2252 = vadd.f32 %v2236, %v2220
      %v2253 = vadd.f32 %v2237, %v2221
      %v2254 = vadd.f32 %v2238, %v2222
      %v2255 = vadd.f32 %v2239, %v2223
      %v2256 = vadd.f32 %v2240, %v2224
      %v2257 = vadd.f32 %v2241, %v2225
      %2258 = vst [vmem:[#allocation2] sm:$0xff] %v2242
      %2259 = vst [vmem:[#allocation2 + $0x8] sm:$0xff] %v2243
      %2260 = vst [vmem:[#allocation2 + $0x10] sm:$0xff] %v2244
      %2261 = vst [vmem:[#allocation2 + $0x18] sm:$0xff] %v2245
      %2262 = vst [vmem:[#allocation2 + $0x20] sm:$0xff] %v2246
      %2263 = vst [vmem:[#allocation2 + $0x28] sm:$0xff] %v2247
      %2264 = vst [vmem:[#allocation2 + $0x30] sm:$0xff] %v2248
      %2265 = vst [vmem:[#allocation2 + $0x38] sm:$0xff] %v2249
      %2266 = vst [vmem:[#allocation2 + $0x40] sm:$0xff] %v2250
      %2267 = vst [vmem:[#allocation2 + $0x48] sm:$0xff] %v2251
      %2268 = vst [vmem:[#allocation2 + $0x50] sm:$0xff] %v2252
      %2269 = vst [vmem:[#allocation2 + $0x58] sm:$0xff] %v2253
      %2270 = vst [vmem:[#allocation2 + $0x60] sm:$0xff] %v2254
      %2271 = vst [vmem:[#allocation2 + $0x68] sm:$0xff] %v2255
      %2272 = vst [vmem:[#allocation2 + $0x70] sm:$0xff] %v2256
      %2273 = vst [vmem:[#allocation2 + $0x78] sm:$0xff] %v2257
      %2274 = vrot.lane.b32.xlu0 %v1896, 96
      %v2275 = vpop.permute.xlu0 %2274
      %2276 = vrot.lane.b32.xlu0 %v1898, 96
      %v2277 = vpop.permute.xlu0 %2276
      %2278 = vrot.lane.b32.xlu0 %v1900, 96
      %v2279 = vpop.permute.xlu0 %2278
      %2280 = vrot.lane.b32.xlu0 %v1902, 96
      %v2281 = vpop.permute.xlu0 %2280
      %2282 = vrot.lane.b32.xlu0 %v1904, 96
      %v2283 = vpop.permute.xlu0 %2282
      %2284 = vrot.lane.b32.xlu0 %v1906, 96
      %v2285 = vpop.permute.xlu0 %2284
      %2286 = vrot.lane.b32.xlu0 %v1908, 96
      %v2287 = vpop.permute.xlu0 %2286
      %2288 = vrot.lane.b32.xlu0 %v1910, 96
      %v2289 = vpop.permute.xlu0 %2288
      %2290 = vrot.lane.b32.xlu0 %v1912, 96
      %v2291 = vpop.permute.xlu0 %2290
      %2292 = vrot.lane.b32.xlu0 %v1914, 96
      %v2293 = vpop.permute.xlu0 %2292
      %2294 = vrot.lane.b32.xlu0 %v1897, 96
      %v2295 = vpop.permute.xlu0 %2294
      %2296 = vrot.lane.b32.xlu0 %v1899, 96
      %v2297 = vpop.permute.xlu0 %2296
      %2298 = vrot.lane.b32.xlu0 %v1901, 96
      %v2299 = vpop.permute.xlu0 %2298
      %2300 = vrot.lane.b32.xlu0 %v1903, 96
      %v2301 = vpop.permute.xlu0 %2300
      %2302 = vrot.lane.b32.xlu0 %v1905, 96
      %v2303 = vpop.permute.xlu0 %2302
      %2304 = vrot.lane.b32.xlu0 %v1907, 96
      %v2305 = vpop.permute.xlu0 %2304
      %2306 = vrot.lane.b32.xlu0 %v1909, 96
      %v2307 = vpop.permute.xlu0 %2306
      %2308 = vrot.lane.b32.xlu0 %v1911, 96
      %v2309 = vpop.permute.xlu0 %2308
      %2310 = vrot.lane.b32.xlu0 %v1913, 96
      %v2311 = vpop.permute.xlu0 %2310
      %2312 = vrot.lane.b32.xlu0 %v1915, 96
      %v2313 = vpop.permute.xlu0 %2312
      %v2314 = vsel %vm1058, %v2275, %v2295
      %v2315 = vsel %vm1058, %v2277, %v2297
      %v2316 = vsel %vm1058, %v2279, %v2299
      %v2317 = vsel %vm1058, %v2281, %v2301
      %v2318 = vsel %vm1058, %v2283, %v2303
      %v2319 = vsel %vm1058, %v2285, %v2305
      %v2320 = vsel %vm1058, %v2287, %v2307
      %v2321 = vsel %vm1058, %v2289, %v2309
      %v2322 = vsel %vm1058, %v2291, %v2311
      %v2323 = vsel %vm1058, %v2293, %v2313
      %v2324 = vsel %vm1058, %v2295, %v2275
      %v2325 = vsel %vm1058, %v2297, %v2277
      %v2326 = vsel %vm1058, %v2299, %v2279
      %v2327 = vsel %vm1058, %v2301, %v2281
      %v2328 = vsel %vm1058, %v2303, %v2283
      %v2329 = vsel %vm1058, %v2305, %v2285
      %v2330 = vsel %vm1058, %v2307, %v2287
      %v2331 = vsel %vm1058, %v2309, %v2289
      %v2332 = vsel %vm1058, %v2311, %v2291
      %v2333 = vsel %vm1058, %v2313, %v2293
      %s2334 = scalar_lea.vmem %s3, 16
      %v2335 = vld [vmem:[%s2334] ss:$8 sm:$0x3]
      %v2337 = vperm.slane %v2335, 0
      %v2338 = vperm.slane %v2335, 1
      %v2341 = vmul.f32 %v2314, %v2337
      %v2342 = vmul.f32 %v2324, %v2338
      %v2343 = vmul.f32 %v2315, %v2337
      %v2344 = vmul.f32 %v2325, %v2338
      %v2345 = vmul.f32 %v2316, %v2337
      %v2346 = vmul.f32 %v2326, %v2338
      %v2347 = vmul.f32 %v2317, %v2337
      %v2348 = vmul.f32 %v2327, %v2338
      %v2349 = vmul.f32 %v2318, %v2337
      %v2350 = vmul.f32 %v2328, %v2338
      %v2351 = vmul.f32 %v2319, %v2337
      %v2352 = vmul.f32 %v2329, %v2338
      %v2353 = vmul.f32 %v2320, %v2337
      %v2354 = vmul.f32 %v2330, %v2338
      %v2355 = vmul.f32 %v2321, %v2337
      %v2356 = vmul.f32 %v2331, %v2338
      %s2357 = scalar_lea.vmem %s3, 33
      %v2358 = vld [vmem:[%s2357] ss:$8 sm:$0x3]
      %v2360 = vperm.slane %v2358, 0
      %v2361 = vperm.slane %v2358, 1
      %v2364 = vmul.f32 %v2315, %v2360
      %v2365 = vmul.f32 %v2325, %v2361
      %v2366 = vmul.f32 %v2316, %v2360
      %v2367 = vmul.f32 %v2326, %v2361
      %v2368 = vmul.f32 %v2317, %v2360
      %v2369 = vmul.f32 %v2327, %v2361
      %v2370 = vmul.f32 %v2318, %v2360
      %v2371 = vmul.f32 %v2328, %v2361
      %v2372 = vmul.f32 %v2319, %v2360
      %v2373 = vmul.f32 %v2329, %v2361
      %v2374 = vmul.f32 %v2320, %v2360
      %v2375 = vmul.f32 %v2330, %v2361
      %v2376 = vmul.f32 %v2321, %v2360
      %v2377 = vmul.f32 %v2331, %v2361
      %v2378 = vmul.f32 %v2322, %v2360
      %v2379 = vmul.f32 %v2332, %v2361
      %v2380 = vadd.f32 %v2341, %v2364
      %v2381 = vadd.f32 %v2342, %v2365
      %v2382 = vadd.f32 %v2343, %v2366
      %v2383 = vadd.f32 %v2344, %v2367
      %v2384 = vadd.f32 %v2345, %v2368
      %v2385 = vadd.f32 %v2346, %v2369
      %v2386 = vadd.f32 %v2347, %v2370
      %v2387 = vadd.f32 %v2348, %v2371
      %v2388 = vadd.f32 %v2349, %v2372
      %v2389 = vadd.f32 %v2350, %v2373
      %v2390 = vadd.f32 %v2351, %v2374
      %v2391 = vadd.f32 %v2352, %v2375
      %v2392 = vadd.f32 %v2353, %v2376
      %v2393 = vadd.f32 %v2354, %v2377
      %v2394 = vadd.f32 %v2355, %v2378
      %v2395 = vadd.f32 %v2356, %v2379
      %s2396 = scalar_lea.vmem %s3, 50
      %v2397 = vld [vmem:[%s2396] ss:$8 sm:$0x3]
      %v2399 = vperm.slane %v2397, 0
      %v2400 = vperm.slane %v2397, 1
      %v2403 = vmul.f32 %v2316, %v2399
      %v2404 = vmul.f32 %v2326, %v2400
      %v2405 = vmul.f32 %v2317, %v2399
      %v2406 = vmul.f32 %v2327, %v2400
      %v2407 = vmul.f32 %v2318, %v2399
      %v2408 = vmul.f32 %v2328, %v2400
      %v2409 = vmul.f32 %v2319, %v2399
      %v2410 = vmul.f32 %v2329, %v2400
      %v2411 = vmul.f32 %v2320, %v2399
      %v2412 = vmul.f32 %v2330, %v2400
      %v2413 = vmul.f32 %v2321, %v2399
      %v2414 = vmul.f32 %v2331, %v2400
      %v2415 = vmul.f32 %v2322, %v2399
      %v2416 = vmul.f32 %v2332, %v2400
      %v2417 = vmul.f32 %v2323, %v2399
      %v2418 = vmul.f32 %v2333, %v2400
      %v2419 = vadd.f32 %v2380, %v2403
      %v2420 = vadd.f32 %v2381, %v2404
      %v2421 = vadd.f32 %v2382, %v2405
      %v2422 = vadd.f32 %v2383, %v2406
      %v2423 = vadd.f32 %v2384, %v2407
      %v2424 = vadd.f32 %v2385, %v2408
      %v2425 = vadd.f32 %v2386, %v2409
      %v2426 = vadd.f32 %v2387, %v2410
      %v2427 = vadd.f32 %v2388, %v2411
      %v2428 = vadd.f32 %v2389, %v2412
      %v2429 = vadd.f32 %v2390, %v2413
      %v2430 = vadd.f32 %v2391, %v2414
      %v2431 = vadd.f32 %v2392, %v2415
      %v2432 = vadd.f32 %v2393, %v2416
      %v2433 = vadd.f32 %v2394, %v2417
      %v2434 = vadd.f32 %v2395, %v2418
      %v2435 = vld [vmem:[#allocation2] sm:$0xff]
      %v2436 = vld [vmem:[#allocation2 + $0x8] sm:$0xff]
      %v2437 = vld [vmem:[#allocation2 + $0x10] sm:$0xff]
      %v2438 = vld [vmem:[#allocation2 + $0x18] sm:$0xff]
      %v2439 = vld [vmem:[#allocation2 + $0x20] sm:$0xff]
      %v2440 = vld [vmem:[#allocation2 + $0x28] sm:$0xff]
      %v2441 = vld [vmem:[#allocation2 + $0x30] sm:$0xff]
      %v2442 = vld [vmem:[#allocation2 + $0x38] sm:$0xff]
      %v2443 = vld [vmem:[#allocation2 + $0x40] sm:$0xff]
      %v2444 = vld [vmem:[#allocation2 + $0x48] sm:$0xff]
      %v2445 = vld [vmem:[#allocation2 + $0x50] sm:$0xff]
      %v2446 = vld [vmem:[#allocation2 + $0x58] sm:$0xff]
      %v2447 = vld [vmem:[#allocation2 + $0x60] sm:$0xff]
      %v2448 = vld [vmem:[#allocation2 + $0x68] sm:$0xff]
      %v2449 = vld [vmem:[#allocation2 + $0x70] sm:$0xff]
      %v2450 = vld [vmem:[#allocation2 + $0x78] sm:$0xff]
      %v2451 = vadd.f32 %v2435, %v2419
      %v2452 = vadd.f32 %v2436, %v2420
      %v2453 = vadd.f32 %v2437, %v2421
      %v2454 = vadd.f32 %v2438, %v2422
      %v2455 = vadd.f32 %v2439, %v2423
      %v2456 = vadd.f32 %v2440, %v2424
      %v2457 = vadd.f32 %v2441, %v2425
      %v2458 = vadd.f32 %v2442, %v2426
      %v2459 = vadd.f32 %v2443, %v2427
      %v2460 = vadd.f32 %v2444, %v2428
      %v2461 = vadd.f32 %v2445, %v2429
      %v2462 = vadd.f32 %v2446, %v2430
      %v2463 = vadd.f32 %v2447, %v2431
      %v2464 = vadd.f32 %v2448, %v2432
      %v2465 = vadd.f32 %v2449, %v2433
      %v2466 = vadd.f32 %v2450, %v2434
      %2467 = vst [vmem:[#allocation2] sm:$0xff] %v2451
      %2468 = vst [vmem:[#allocation2 + $0x8] sm:$0xff] %v2452
      %2469 = vst [vmem:[#allocation2 + $0x10] sm:$0xff] %v2453
      %2470 = vst [vmem:[#allocation2 + $0x18] sm:$0xff] %v2454
      %2471 = vst [vmem:[#allocation2 + $0x20] sm:$0xff] %v2455
      %2472 = vst [vmem:[#allocation2 + $0x28] sm:$0xff] %v2456
      %2473 = vst [vmem:[#allocation2 + $0x30] sm:$0xff] %v2457
      %2474 = vst [vmem:[#allocation2 + $0x38] sm:$0xff] %v2458
      %2475 = vst [vmem:[#allocation2 + $0x40] sm:$0xff] %v2459
      %2476 = vst [vmem:[#allocation2 + $0x48] sm:$0xff] %v2460
      %2477 = vst [vmem:[#allocation2 + $0x50] sm:$0xff] %v2461
      %2478 = vst [vmem:[#allocation2 + $0x58] sm:$0xff] %v2462
      %2479 = vst [vmem:[#allocation2 + $0x60] sm:$0xff] %v2463
      %2480 = vst [vmem:[#allocation2 + $0x68] sm:$0xff] %v2464
      %2481 = vst [vmem:[#allocation2 + $0x70] sm:$0xff] %v2465
      %2482 = vst [vmem:[#allocation2 + $0x78] sm:$0xff] %v2466
      %v2483 = vld [vmem:[#allocation2] sm:$0xff]
      %v2484 = vld [vmem:[#allocation2 + $0x8] sm:$0xff]
      %v2485 = vld [vmem:[#allocation2 + $0x10] sm:$0xff]
      %v2486 = vld [vmem:[#allocation2 + $0x18] sm:$0xff]
      %v2487 = vld [vmem:[#allocation2 + $0x20] sm:$0xff]
      %v2488 = vld [vmem:[#allocation2 + $0x28] sm:$0xff]
      %v2489 = vld [vmem:[#allocation2 + $0x30] sm:$0xff]
      %v2490 = vld [vmem:[#allocation2 + $0x38] sm:$0xff]
      %v2491 = vld [vmem:[#allocation2 + $0x40] sm:$0xff]
      %v2492 = vld [vmem:[#allocation2 + $0x48] sm:$0xff]
      %v2493 = vld [vmem:[#allocation2 + $0x50] sm:$0xff]
      %v2494 = vld [vmem:[#allocation2 + $0x58] sm:$0xff]
      %v2495 = vld [vmem:[#allocation2 + $0x60] sm:$0xff]
      %v2496 = vld [vmem:[#allocation2 + $0x68] sm:$0xff]
      %v2497 = vld [vmem:[#allocation2 + $0x70] sm:$0xff]
      %v2498 = vld [vmem:[#allocation2 + $0x78] sm:$0xff]
      %2499 = vst [vmem:[%s399] sm:$0xff] %v2483
      %2500 = vst [vmem:[%s399 + $0x8] sm:$0xff] %v2484
      %2501 = vst [vmem:[%s399 + $0x10] sm:$0xff] %v2485
      %2502 = vst [vmem:[%s399 + $0x18] sm:$0xff] %v2486
      %2503 = vst [vmem:[%s399 + $0x20] sm:$0xff] %v2487
      %2504 = vst [vmem:[%s399 + $0x28] sm:$0xff] %v2488
      %2505 = vst [vmem:[%s399 + $0x30] sm:$0xff] %v2489
      %2506 = vst [vmem:[%s399 + $0x38] sm:$0xff] %v2490
      %2507 = vst [vmem:[%s399 + $0x40] sm:$0xff] %v2491
      %2508 = vst [vmem:[%s399 + $0x48] sm:$0xff] %v2492
      %2509 = vst [vmem:[%s399 + $0x50] sm:$0xff] %v2493
      %2510 = vst [vmem:[%s399 + $0x58] sm:$0xff] %v2494
      %2511 = vst [vmem:[%s399 + $0x60] sm:$0xff] %v2495
      %2512 = vst [vmem:[%s399 + $0x68] sm:$0xff] %v2496
      %2513 = vst [vmem:[%s399 + $0x70] sm:$0xff] %v2497
      %2514 = vst [vmem:[%s399 + $0x78] sm:$0xff] %v2498
      %v2515 = vadd.f32 %v2483, %v2485
      %v2516 = vadd.f32 %v2515, %v2487
      %v2517 = vadd.f32 %v2516, %v2489
      %v2518 = vadd.f32 %v2517, %v2491
      %v2519 = vadd.f32 %v2518, %v2493
      %v2520 = vadd.f32 %v2519, %v2495
      %v2521 = vadd.f32 %v2520, %v2497
      %v2522 = vrot.slane %v2521, 4
      %v2523 = vadd.f32 %v2521, %v2522
      %v2524 = vrot.slane %v2523, 2
      %v2525 = vadd.f32 %v2523, %v2524
      %v2526 = vrot.slane %v2525, 1
      %v2527 = vadd.f32 %v2525, %v2526
      %v2528 = vadd.f32 %v2484, %v2486
      %v2529 = vadd.f32 %v2528, %v2488
      %v2530 = vadd.f32 %v2529, %v2490
      %v2531 = vadd.f32 %v2530, %v2492
      %v2532 = vadd.f32 %v2531, %v2494
      %v2533 = vadd.f32 %v2532, %v2496
      %v2534 = vadd.f32 %v2533, %v2498
      %v2535 = vrot.slane %v2534, 4
      %v2536 = vadd.f32 %v2534, %v2535
      %v2537 = vrot.slane %v2536, 2
      %v2538 = vadd.f32 %v2536, %v2537
      %v2539 = vrot.slane %v2538, 1
      %v2540 = vadd.f32 %v2538, %v2539
      %v2541 = vmul.f32 %v2483, %v2483
      %v2542 = vmul.f32 %v2484, %v2484
      %v2543 = vmul.f32 %v2485, %v2485
      %v2544 = vmul.f32 %v2486, %v2486
      %v2545 = vmul.f32 %v2487, %v2487
      %v2546 = vmul.f32 %v2488, %v2488
      %v2547 = vmul.f32 %v2489, %v2489
      %v2548 = vmul.f32 %v2490, %v2490
      %v2549 = vmul.f32 %v2491, %v2491
      %v2550 = vmul.f32 %v2492, %v2492
      %v2551 = vmul.f32 %v2493, %v2493
      %v2552 = vmul.f32 %v2494, %v2494
      %v2553 = vmul.f32 %v2495, %v2495
      %v2554 = vmul.f32 %v2496, %v2496
      %v2555 = vmul.f32 %v2497, %v2497
      %v2556 = vmul.f32 %v2498, %v2498
      %v2557 = vadd.f32 %v2541, %v2543
      %v2558 = vadd.f32 %v2557, %v2545
      %v2559 = vadd.f32 %v2558, %v2547
      %v2560 = vadd.f32 %v2559, %v2549
      %v2561 = vadd.f32 %v2560, %v2551
      %v2562 = vadd.f32 %v2561, %v2553
      %v2563 = vadd.f32 %v2562, %v2555
      %v2564 = vrot.slane %v2563, 4
      %v2565 = vadd.f32 %v2563, %v2564
      %v2566 = vrot.slane %v2565, 2
      %v2567 = vadd.f32 %v2565, %v2566
      %v2568 = vrot.slane %v2567, 1
      %v2569 = vadd.f32 %v2567, %v2568
      %v2570 = vadd.f32 %v2542, %v2544
      %v2571 = vadd.f32 %v2570, %v2546
      %v2572 = vadd.f32 %v2571, %v2548
      %v2573 = vadd.f32 %v2572, %v2550
      %v2574 = vadd.f32 %v2573, %v2552
      %v2575 = vadd.f32 %v2574, %v2554
      %v2576 = vadd.f32 %v2575, %v2556
      %v2577 = vrot.slane %v2576, 4
      %v2578 = vadd.f32 %v2576, %v2577
      %v2579 = vrot.slane %v2578, 2
      %v2580 = vadd.f32 %v2578, %v2579
      %v2581 = vrot.slane %v2580, 1
      %v2582 = vadd.f32 %v2580, %v2581
      %vm2583 = vcmask 1040384
      %v2584 = vsel %vm2583, %v2527, %v2569
      %v2585 = vsel %vm2583, %v2540, %v2582
      %p2586 = scmp.eq.s32.totalorder %s22, 0
      // Predicated region
      $region37: #{conv_block_pallas.2} parent=35 // pred_check
        %p2587 = pneg %p2586
      $region38: #{conv_block_pallas.2} parent=35 // pred_check_branch
        %2589 = sbr.rel (%p2587) target = $region40
      $region39: #{conv_block_pallas.2} parent=35 // pred_region
        %v2592 = vrot.slane %v2585, 6
        %vm2593 = vcmask 1041408
        %v2594 = vsel %vm2593, %v2584, %v2592
        %2596 = vst [vmem:[%s405] sm:$0xf] %v2594
      $region40: #{conv_block_pallas.2} parent=35 // pred_fallthru
        _
      %p2597 = scmp.ne.s32.totalorder %s22, 0
      // Predicated region
      $region41: #{conv_block_pallas.2} parent=35 // pred_check
        %p2598 = pneg %p2597
      $region42: #{conv_block_pallas.2} parent=35 // pred_check_branch
        %2600 = sbr.rel (%p2598) target = $region44
      $region43: #{conv_block_pallas.2} parent=35 // pred_region
        %v2601 = vld [vmem:[%s405] sm:$0xf]
        %v2604 = vrot.slane %v2585, 6
        %vm2605 = vcmask 1041408
        %v2606 = vsel %vm2605, %v2584, %v2604
        %v2608 = vadd.f32 %v2601, %v2606
        %2609 = vst [vmem:[%s405] sm:$0xf] %v2608
      $region44: #{conv_block_pallas.2} parent=35 // pred_fallthru
        _
      %s2610 = smul.u32 8, %s22
      %p2611 = scmp.lt.s32.totalorder %s21, 1
      %s2612 = scalar_select %p2611, %s21, 1
      %p2613 = scmp.lt.s32.totalorder %s2610, 7
      %s2614 = scalar_select %p2613, %s2610, 7
      %s2615 = smul.addr %s2614, 2
      %s2616 = smul.addr %s2612, 16
      %s2617 = sadd.s32 %s2615, %s2616
      %s2618 = smul.addr %s2617, 8
      %s2619 = scalar_lea.vmem %s4, %s2618
      %p2620 = scmp.lt.s32.totalorder %s21, 1
      %s2621 = scalar_select %p2620, %s21, 1
      %s2622 = smul.addr %s2621, 2
      %s2623 = smul.addr %s2622, 2
      %s2624 = scalar_lea.vmem %s5, %s2623
      // Predicated region
      $region45: #{conv_block_pallas.2} parent=35 // pred_check
        %p2625 = pneg %p170
      $region46: #{conv_block_pallas.2} parent=35 // pred_check_branch
        %2627 = sbr.rel (%p2625) target = $region48
      $region47: #{conv_block_pallas.2} parent=35 // pred_region
        %s2628 = smul.u32 8, %s22
      $region48: #{conv_block_pallas.2} parent=35 // pred_fallthru
        _
      // Predicated region
      $region49: #{conv_block_pallas.2} parent=35 // pred_check
        %p2629 = pneg %p196
      $region50: #{conv_block_pallas.2} parent=35 // pred_check_branch
        %2631 = sbr.rel (%p2629) target = $region52
      $region51: #{conv_block_pallas.2} parent=35 // pred_region
        _
      $region52: #{conv_block_pallas.2} parent=35 // pred_fallthru
        _
    $region36: #{conv_block_pallas.2} parent=5 // pred_fallthru
      _
    %p2632 = scmp.le.s32.totalorder 2, %s12
    // Predicated region
    $region53: #{conv_block_pallas.2} parent=5 // pred_check
      %p2633 = pneg %p2632
    $region54: #{conv_block_pallas.2} parent=5 // pred_check_branch
      %2635 = sbr.rel (%p2633) target = $region56
    $region55: #{conv_block_pallas.2} parent=5 // pred_region
      %s2636 = ssub.s32 %s12, 2
      // Predicated region
      $region57: #{conv_block_pallas.2} parent=55 // pred_check
        %p2637 = pneg %p176
      $region58: #{conv_block_pallas.2} parent=55 // pred_check_branch
        %2639 = sbr.rel (%p2637) target = $region60
      $region59: #{conv_block_pallas.2} parent=55 // pred_region
        %s2640 = smul.u32 8, %s24
        %p2641 = scmp.lt.s32.totalorder %s23, 1
        %s2642 = scalar_select %p2641, %s23, 1
        %p2643 = scmp.lt.s32.totalorder %s2640, 7
        %s2644 = scalar_select %p2643, %s2640, 7
        %s2645 = smul.addr %s2644, 2
        %s2646 = smul.addr %s2642, 16
        %s2647 = sadd.s32 %s2645, %s2646
        %s2648 = smul.addr %s2647, 8
        %s2649 = scalar_lea.vmem %s4, %s2648
      $region60: #{conv_block_pallas.2} parent=55 // pred_fallthru
        _
      // Predicated region
      $region61: #{conv_block_pallas.2} parent=55 // pred_check
        %p2650 = pneg %p202
      $region62: #{conv_block_pallas.2} parent=55 // pred_check_branch
        %2652 = sbr.rel (%p2650) target = $region64
      $region63: #{conv_block_pallas.2} parent=55 // pred_region
        %p2653 = scmp.lt.s32.totalorder %s23, 1
        %s2654 = scalar_select %p2653, %s23, 1
        %s2655 = smul.addr %s2654, 2
        %s2656 = smul.addr %s2655, 2
        %s2657 = scalar_lea.vmem %s5, %s2656
      $region64: #{conv_block_pallas.2} parent=55 // pred_fallthru
        _
    $region56: #{conv_block_pallas.2} parent=5 // pred_fallthru
      _
  $region6: #{conv_block_pallas.2} parent=0 // loop_footer
    %s16 = sadd.s32 1, %s12
  $region7: #{conv_block_pallas.2} parent=0 // loop_footer_branch
    %11 = sbr.rel target = $region3
  $region8: #{conv_block_pallas.2} parent=0 // loop_exit
    _

// kernel: conv_block_pallas.3
$region0: #{conv_block_pallas.3}
  #allocation0 [shape = 'u32[]', space=smem, size = 0x4, offset = 0x4, fixed_abs, tag = 'smem constant byte address 0x4 - core index']
  #allocation1 [shape = 'u32[72,128]{1,0:T(1,128)}', space=vmem, size = 0x9000, scoped, tag = 'internal scratch']
  %s0 = inlined_call_operand.vmem [shape: f32[2,8,8,256], index: 0, kind: input, shape index: {}]
  %s1 = inlined_call_operand.vmem [shape: f32[2,8,8,256], index: 1, kind: input, shape index: {}]
  %s2 = inlined_call_operand.vmem [shape: f32[2,1,256], index: 2, kind: input, shape index: {}]
  %s3 = inlined_call_operand.vmem [shape: f32[2,1,256], index: 3, kind: input, shape index: {}]
  %s4 = inlined_call_operand.vmem [shape: bf16[256,512], index: 4, kind: input, shape index: {}]
  %s5 = inlined_call_operand.vmem [shape: f32[1,512], index: 5, kind: input, shape index: {}]
  %s6 = inlined_call_operand.vmem [shape: bf16[512,256], index: 6, kind: input, shape index: {}]
  %s7 = inlined_call_operand.vmem [shape: f32[1,256], index: 7, kind: input, shape index: {}]
  %s8 = inlined_call_operand.vmem [shape: f32[2,8,8,256], index: 8, kind: output, shape index: {}]
  %s9 = sld [smem:[#allocation0]]
  $region65: #{conv_block_pallas.3} parent=0
    _
  %s11 = ssub.s32 1, %s9
  %s12 = scalar_select 0, %s11, %s9
  loop: start=0, step=1, limit=4
  $region2: #{conv_block_pallas.3} parent=0 // loop_pre_header
    _
  $region3: #{conv_block_pallas.3} parent=0 // loop_header
    %s14 = sphi 0, %s18
    %p15 = scmp.ge.s32.totalorder %s14, 4
    %s21 = sphi 0, %s33
    %s22 = sphi 0, %s29
    %s23 = sphi 0, %s21
    %s24 = sphi 0, %s22
    %s25 = sphi 0, %s23
    %s26 = sphi 0, %s24
    %s38 = sphi 0, %s40
    %s41 = sphi 0, %s38
    %s42 = sphi 0, %s41
    %s58 = sphi 0, %s42
    %s66 = sphi 0, %s68
    %s69 = sphi 0, %s66
    %s70 = sphi 0, %s69
    %s86 = sphi 0, %s70
    %s92 = sphi 0, %s94
    %s95 = sphi 0, %s92
    %s96 = sphi 0, %s95
    %s112 = sphi 0, %s96
    %s118 = sphi 0, %s120
    %s121 = sphi 0, %s118
    %s122 = sphi 0, %s121
    %s138 = sphi 0, %s122
    %s142 = sphi 0, %s142
    %s144 = sphi 0, %s142
    %s145 = sphi 0, %s144
    %s159 = sphi 0, %s145
    %s163 = sphi 0, %s163
    %s165 = sphi 0, %s163
    %s166 = sphi 0, %s165
    %s180 = sphi 0, %s166
    %s184 = sphi 0, %s184
    %s186 = sphi 0, %s184
    %s187 = sphi 0, %s186
    %s201 = sphi 0, %s187
    %s205 = sphi 0, %s205
    %s207 = sphi 0, %s205
    %s208 = sphi 0, %s207
    %s222 = sphi 0, %s208
    %s230 = sphi 0, %s232
    %s233 = sphi 0, %s230
    %s234 = sphi 0, %s233
    %s250 = sphi 0, %s234
  $region4: #{conv_block_pallas.3} parent=0 // loop_header_branch
    %17 = sbr.rel (%p15) target = $region8
  $region5: #{conv_block_pallas.3} parent=0 // loop_body
    %s19 = ssub.s32 %s14, 1
    %s20 = ssub.s32 %s14, 2
    %s27 = sadd.s32 1, %s22
    %p28 = scmp.ge.s32.totalorder %s27, 1
    %s29 = scalar_select %p28, 0, %s27
    %s30 = sadd.s32 1, %s21
    %s31 = scalar_select %p28, %s30, %s21
    %p32 = scmp.ge.s32.totalorder %s31, 2
    %s33 = scalar_select %p32, 0, %s31
    %s34 = ssub.s32 %s21, %s33
    %s35 = ssub.s32 %s22, %s29
    %s36 = sor.u32 %s34, %s35
    %p37 = scmp.eq.s32.totalorder %s36, 0
    %s39 = sadd.s32 %s38, 1
    %s40 = scalar_select %p37, %s38, %s39
    %p43 = pneg %p37
    %p44 = scmp.eq.s32.totalorder %s14, 1
    %p45 = por %p43, %p44
    %p46 = scmp.ne.s32.totalorder %s38, %s41
    %p47 = scmp.eq.s32.totalorder %s14, 0
    %p48 = por %p46, %p47
    %p49 = scmp.ne.s32.totalorder %s38, %s41
    %p50 = scmp.eq.s32.totalorder %s19, 1
    %p51 = por %p49, %p50
    %p52 = scmp.ne.s32.totalorder %s41, %s42
    %p53 = scmp.eq.s32.totalorder %s19, 0
    %p54 = por %p52, %p53
    %p55 = scmp.ne.s32.totalorder %s41, %s42
    %p56 = scmp.eq.s32.totalorder %s20, 1
    %p57 = por %p55, %p56
    %p59 = scmp.ne.s32.totalorder %s42, %s58
    %p60 = scmp.eq.s32.totalorder %s20, 0
    %p61 = por %p59, %p60
    %s62 = ssub.s32 %s21, %s33
    %s63 = ssub.s32 %s22, %s29
    %s64 = sor.u32 %s62, %s63
    %p65 = scmp.eq.s32.totalorder %s64, 0
    %s67 = sadd.s32 %s66, 1
    %s68 = scalar_select %p65, %s66, %s67
    %p71 = pneg %p65
    %p72 = scmp.eq.s32.totalorder %s14, 1
    %p73 = por %p71, %p72
    %p74 = scmp.ne.s32.totalorder %s66, %s69
    %p75 = scmp.eq.s32.totalorder %s14, 0
    %p76 = por %p74, %p75
    %p77 = scmp.ne.s32.totalorder %s66, %s69
    %p78 = scmp.eq.s32.totalorder %s19, 1
    %p79 = por %p77, %p78
    %p80 = scmp.ne.s32.totalorder %s69, %s70
    %p81 = scmp.eq.s32.totalorder %s19, 0
    %p82 = por %p80, %p81
    %p83 = scmp.ne.s32.totalorder %s69, %s70
    %p84 = scmp.eq.s32.totalorder %s20, 1
    %p85 = por %p83, %p84
    %p87 = scmp.ne.s32.totalorder %s70, %s86
    %p88 = scmp.eq.s32.totalorder %s20, 0
    %p89 = por %p87, %p88
    %s90 = ssub.s32 %s21, %s33
    %p91 = scmp.eq.s32.totalorder %s90, 0
    %s93 = sadd.s32 %s92, 1
    %s94 = scalar_select %p91, %s92, %s93
    %p97 = pneg %p91
    %p98 = scmp.eq.s32.totalorder %s14, 1
    %p99 = por %p97, %p98
    %p100 = scmp.ne.s32.totalorder %s92, %s95
    %p101 = scmp.eq.s32.totalorder %s14, 0
    %p102 = por %p100, %p101
    %p103 = scmp.ne.s32.totalorder %s92, %s95
    %p104 = scmp.eq.s32.totalorder %s19, 1
    %p105 = por %p103, %p104
    %p106 = scmp.ne.s32.totalorder %s95, %s96
    %p107 = scmp.eq.s32.totalorder %s19, 0
    %p108 = por %p106, %p107
    %p109 = scmp.ne.s32.totalorder %s95, %s96
    %p110 = scmp.eq.s32.totalorder %s20, 1
    %p111 = por %p109, %p110
    %p113 = scmp.ne.s32.totalorder %s96, %s112
    %p114 = scmp.eq.s32.totalorder %s20, 0
    %p115 = por %p113, %p114
    %s116 = ssub.s32 %s21, %s33
    %p117 = scmp.eq.s32.totalorder %s116, 0
    %s119 = sadd.s32 %s118, 1
    %s120 = scalar_select %p117, %s118, %s119
    %p123 = pneg %p117
    %p124 = scmp.eq.s32.totalorder %s14, 1
    %p125 = por %p123, %p124
    %p126 = scmp.ne.s32.totalorder %s118, %s121
    %p127 = scmp.eq.s32.totalorder %s14, 0
    %p128 = por %p126, %p127
    %p129 = scmp.ne.s32.totalorder %s118, %s121
    %p130 = scmp.eq.s32.totalorder %s19, 1
    %p131 = por %p129, %p130
    %p132 = scmp.ne.s32.totalorder %s121, %s122
    %p133 = scmp.eq.s32.totalorder %s19, 0
    %p134 = por %p132, %p133
    %p135 = scmp.ne.s32.totalorder %s121, %s122
    %p136 = scmp.eq.s32.totalorder %s20, 1
    %p137 = por %p135, %p136
    %p139 = scmp.ne.s32.totalorder %s122, %s138
    %p140 = scmp.eq.s32.totalorder %s20, 0
    %p141 = por %p139, %p140
    %s143 = sadd.s32 %s142, 1
    %p146 = scmp.eq.s32.totalorder %s14, 1
    %p147 = scmp.ne.s32.totalorder %s142, %s144
    %p148 = scmp.eq.s32.totalorder %s14, 0
    %p149 = por %p147, %p148
    %p150 = scmp.ne.s32.totalorder %s142, %s144
    %p151 = scmp.eq.s32.totalorder %s19, 1
    %p152 = por %p150, %p151
    %p153 = scmp.ne.s32.totalorder %s144, %s145
    %p154 = scmp.eq.s32.totalorder %s19, 0
    %p155 = por %p153, %p154
    %p156 = scmp.ne.s32.totalorder %s144, %s145
    %p157 = scmp.eq.s32.totalorder %s20, 1
    %p158 = por %p156, %p157
    %p160 = scmp.ne.s32.totalorder %s145, %s159
    %p161 = scmp.eq.s32.totalorder %s20, 0
    %p162 = por %p160, %p161
    %s164 = sadd.s32 %s163, 1
    %p167 = scmp.eq.s32.totalorder %s14, 1
    %p168 = scmp.ne.s32.totalorder %s163, %s165
    %p169 = scmp.eq.s32.totalorder %s14, 0
    %p170 = por %p168, %p169
    %p171 = scmp.ne.s32.totalorder %s163, %s165
    %p172 = scmp.eq.s32.totalorder %s19, 1
    %p173 = por %p171, %p172
    %p174 = scmp.ne.s32.totalorder %s165, %s166
    %p175 = scmp.eq.s32.totalorder %s19, 0
    %p176 = por %p174, %p175
    %p177 = scmp.ne.s32.totalorder %s165, %s166
    %p178 = scmp.eq.s32.totalorder %s20, 1
    %p179 = por %p177, %p178
    %p181 = scmp.ne.s32.totalorder %s166, %s180
    %p182 = scmp.eq.s32.totalorder %s20, 0
    %p183 = por %p181, %p182
    %s185 = sadd.s32 %s184, 1
    %p188 = scmp.eq.s32.totalorder %s14, 1
    %p189 = scmp.ne.s32.totalorder %s184, %s186
    %p190 = scmp.eq.s32.totalorder %s14, 0
    %p191 = por %p189, %p190
    %p192 = scmp.ne.s32.totalorder %s184, %s186
    %p193 = scmp.eq.s32.totalorder %s19, 1
    %p194 = por %p192, %p193
    %p195 = scmp.ne.s32.totalorder %s186, %s187
    %p196 = scmp.eq.s32.totalorder %s19, 0
    %p197 = por %p195, %p196
    %p198 = scmp.ne.s32.totalorder %s186, %s187
    %p199 = scmp.eq.s32.totalorder %s20, 1
    %p200 = por %p198, %p199
    %p202 = scmp.ne.s32.totalorder %s187, %s201
    %p203 = scmp.eq.s32.totalorder %s20, 0
    %p204 = por %p202, %p203
    %s206 = sadd.s32 %s205, 1
    %p209 = scmp.eq.s32.totalorder %s14, 1
    %p210 = scmp.ne.s32.totalorder %s205, %s207
    %p211 = scmp.eq.s32.totalorder %s14, 0
    %p212 = por %p210, %p211
    %p213 = scmp.ne.s32.totalorder %s205, %s207
    %p214 = scmp.eq.s32.totalorder %s19, 1
    %p215 = por %p213, %p214
    %p216 = scmp.ne.s32.totalorder %s207, %s208
    %p217 = scmp.eq.s32.totalorder %s19, 0
    %p218 = por %p216, %p217
    %p219 = scmp.ne.s32.totalorder %s207, %s208
    %p220 = scmp.eq.s32.totalorder %s20, 1
    %p221 = por %p219, %p220
    %p223 = scmp.ne.s32.totalorder %s208, %s222
    %p224 = scmp.eq.s32.totalorder %s20, 0
    %p225 = por %p223, %p224
    %s226 = ssub.s32 %s21, %s33
    %s227 = ssub.s32 %s22, %s29
    %s228 = sor.u32 %s226, %s227
    %p229 = scmp.eq.s32.totalorder %s228, 0
    %s231 = sadd.s32 %s230, 1
    %s232 = scalar_select %p229, %s230, %s231
    %p235 = pneg %p229
    %p236 = scmp.eq.s32.totalorder %s14, 1
    %p237 = por %p235, %p236
    %p238 = scmp.ne.s32.totalorder %s230, %s233
    %p239 = scmp.eq.s32.totalorder %s14, 0
    %p240 = por %p238, %p239
    %p241 = scmp.ne.s32.totalorder %s230, %s233
    %p242 = scmp.eq.s32.totalorder %s19, 1
    %p243 = por %p241, %p242
    %p244 = scmp.ne.s32.totalorder %s233, %s234
    %p245 = scmp.eq.s32.totalorder %s19, 0
    %p246 = por %p244, %p245
    %p247 = scmp.ne.s32.totalorder %s233, %s234
    %p248 = scmp.eq.s32.totalorder %s20, 1
    %p249 = por %p247, %p248
    %p251 = scmp.ne.s32.totalorder %s234, %s250
    %p252 = scmp.eq.s32.totalorder %s20, 0
    %p253 = por %p251, %p252
    %p254 = scmp.le.s32.totalorder 1, %s14
    %p255 = scmp.lt.s32.totalorder %s14, 3
    %p256 = pnand %p254, %p255
    %p257 = pneg %p256
    // Predicated region
    $region9: #{conv_block_pallas.3} parent=5 // pred_check
      _
    $region10: #{conv_block_pallas.3} parent=5 // pred_check_branch
      %259 = sbr.rel (%p256) target = $region12
    $region11: #{conv_block_pallas.3} parent=5 // pred_region
      %s260 = ssub.s32 %s14, 1
      // Predicated region
      $region13: #{conv_block_pallas.3} parent=11 // pred_check
        %p261 = pneg %p155
      $region14: #{conv_block_pallas.3} parent=11 // pred_check_branch
        %263 = sbr.rel (%p261) target = $region16
      $region15: #{conv_block_pallas.3} parent=11 // pred_region
        _
      $region16: #{conv_block_pallas.3} parent=11 // pred_fallthru
        _
      // Predicated region
      $region17: #{conv_block_pallas.3} parent=11 // pred_check
        %p264 = pneg %p176
      $region18: #{conv_block_pallas.3} parent=11 // pred_check_branch
        %266 = sbr.rel (%p264) target = $region20
      $region19: #{conv_block_pallas.3} parent=11 // pred_region
        _
      $region20: #{conv_block_pallas.3} parent=11 // pred_fallthru
        _
      // Predicated region
      $region21: #{conv_block_pallas.3} parent=11 // pred_check
        %p267 = pneg %p197
      $region22: #{conv_block_pallas.3} parent=11 // pred_check_branch
        %269 = sbr.rel (%p267) target = $region24
      $region23: #{conv_block_pallas.3} parent=11 // pred_region
        _
      $region24: #{conv_block_pallas.3} parent=11 // pred_fallthru
        _
      // Predicated region
      $region25: #{conv_block_pallas.3} parent=11 // pred_check
        %p270 = pneg %p218
      $region26: #{conv_block_pallas.3} parent=11 // pred_check_branch
        %272 = sbr.rel (%p270) target = $region28
      $region27: #{conv_block_pallas.3} parent=11 // pred_region
        _
      $region28: #{conv_block_pallas.3} parent=11 // pred_fallthru
        _
    $region12: #{conv_block_pallas.3} parent=5 // pred_fallthru
      _
    %p273 = scmp.lt.s32.totalorder %s14, 2
    // Predicated region
    $region29: #{conv_block_pallas.3} parent=5 // pred_check
      %p274 = pneg %p273
    $region30: #{conv_block_pallas.3} parent=5 // pred_check_branch
      %276 = sbr.rel (%p274) target = $region32
    $region31: #{conv_block_pallas.3} parent=5 // pred_region
      // Predicated region
      $region33: #{conv_block_pallas.3} parent=31 // pred_check
        %p277 = pneg %p48
      $region34: #{conv_block_pallas.3} parent=31 // pred_check_branch
        %279 = sbr.rel (%p277) target = $region36
      $region35: #{conv_block_pallas.3} parent=31 // pred_region
        %s280 = smul.u32 8, %s22
        %p281 = scmp.lt.s32.totalorder %s21, 1
        %s282 = scalar_select %p281, %s21, 1
        %p283 = scmp.lt.s32.totalorder %s280, 7
        %s284 = scalar_select %p283, %s280, 7
        %s285 = smul.addr %s284, 2
        %s286 = smul.addr %s282, 16
        %s287 = sadd.s32 %s285, %s286
        %s288 = smul.addr %s287, 8
        %s289 = scalar_lea.vmem %s0, %s288
        %s290 = smul.u32 8, %s22
      $region36: #{conv_block_pallas.3} parent=31 // pred_fallthru
        _
      // Predicated region
      $region37: #{conv_block_pallas.3} parent=31 // pred_check
        %p291 = pneg %p76
      $region38: #{conv_block_pallas.3} parent=31 // pred_check_branch
        %293 = sbr.rel (%p291) target = $region40
      $region39: #{conv_block_pallas.3} parent=31 // pred_region
        %s294 = smul.u32 8, %s22
        %p295 = scmp.lt.s32.totalorder %s21, 1
        %s296 = scalar_select %p295, %s21, 1
        %p297 = scmp.lt.s32.totalorder %s294, 7
        %s298 = scalar_select %p297, %s294, 7
        %s299 = smul.addr %s298, 2
        %s300 = smul.addr %s296, 16
        %s301 = sadd.s32 %s299, %s300
        %s302 = smul.addr %s301, 8
        %s303 = scalar_lea.vmem %s1, %s302
        %s304 = smul.u32 8, %s22
      $region40: #{conv_block_pallas.3} parent=31 // pred_fallthru
        _
      // Predicated region
      $region41: #{conv_block_pallas.3} parent=31 // pred_check
        %p305 = pneg %p102
      $region42: #{conv_block_pallas.3} parent=31 // pred_check_branch
        %307 = sbr.rel (%p305) target = $region44
      $region43: #{conv_block_pallas.3} parent=31 // pred_region
        %p308 = scmp.lt.s32.totalorder %s21, 1
        %s309 = scalar_select %p308, %s21, 1
        %s310 = smul.addr %s309, 2
        %s311 = scalar_lea.vmem %s2, %s310
      $region44: #{conv_block_pallas.3} parent=31 // pred_fallthru
        _
      // Predicated region
      $region45: #{conv_block_pallas.3} parent=31 // pred_check
        %p312 = pneg %p128
      $region46: #{conv_block_pallas.3} parent=31 // pred_check_branch
        %314 = sbr.rel (%p312) target = $region48
      $region47: #{conv_block_pallas.3} parent=31 // pred_region
        %p315 = scmp.lt.s32.totalorder %s21, 1
        %s316 = scalar_select %p315, %s21, 1
        %s317 = smul.addr %s316, 2
        %s318 = scalar_lea.vmem %s3, %s317
      $region48: #{conv_block_pallas.3} parent=31 // pred_fallthru
        _
    $region32: #{conv_block_pallas.3} parent=5 // pred_fallthru
      _
    %p319 = scmp.le.s32.totalorder 1, %s14
    %p320 = scmp.lt.s32.totalorder %s14, 3
    %p321 = pnand %p319, %p320
    %p322 = pneg %p321
    // Predicated region
    $region49: #{conv_block_pallas.3} parent=5 // pred_check
      _
    $region50: #{conv_block_pallas.3} parent=5 // pred_check_branch
      %324 = sbr.rel (%p321) target = $region52
    $region51: #{conv_block_pallas.3} parent=5 // pred_region
      %s325 = ssub.s32 %s14, 1
      %s326 = smul.u32 8, %s24
      %p327 = scmp.lt.s32.totalorder %s23, 1
      %s328 = scalar_select %p327, %s23, 1
      %p329 = scmp.lt.s32.totalorder %s326, 7
      %s330 = scalar_select %p329, %s326, 7
      %s331 = smul.addr %s330, 2
      %s332 = smul.addr %s328, 16
      %s333 = sadd.s32 %s331, %s332
      %s334 = smul.addr %s333, 8
      %s335 = scalar_lea.vmem %s0, %s334
      %p336 = pneg %p54
      %p337 = pneg %p51
      %s338 = smul.u32 8, %s24
      %p339 = scmp.lt.s32.totalorder %s23, 1
      %s340 = scalar_select %p339, %s23, 1
      %p341 = scmp.lt.s32.totalorder %s338, 7
      %s342 = scalar_select %p341, %s338, 7
      %s343 = smul.addr %s342, 2
      %s344 = smul.addr %s340, 16
      %s345 = sadd.s32 %s343, %s344
      %s346 = smul.addr %s345, 8
      %s347 = scalar_lea.vmem %s1, %s346
      %p348 = pneg %p82
      %p349 = pneg %p79
      %p350 = scmp.lt.s32.totalorder %s23, 1
      %s351 = scalar_select %p350, %s23, 1
      %s352 = smul.addr %s351, 2
      %s353 = scalar_lea.vmem %s2, %s352
      %p354 = pneg %p108
      %p355 = pneg %p105
      %p356 = scmp.lt.s32.totalorder %s23, 1
      %s357 = scalar_select %p356, %s23, 1
      %s358 = smul.addr %s357, 2
      %s359 = scalar_lea.vmem %s3, %s358
      %p360 = pneg %p134
      %p361 = pneg %p131
      %p362 = pneg %p155
      %p363 = pneg %p152
      %p364 = pneg %p176
      %p365 = pneg %p173
      %p366 = pneg %p197
      %p367 = pneg %p194
      %p368 = pneg %p218
      %p369 = pneg %p215
      %p370 = pneg %p246
      %p371 = pneg %p243
      %s372 = smul.u32 8, %s24
      %p373 = scmp.lt.s32.totalorder %s23, 1
      %s374 = scalar_select %p373, %s23, 1
      %p375 = scmp.lt.s32.totalorder %s372, 7
      %s376 = scalar_select %p375, %s372, 7
      %s377 = smul.addr %s376, 2
      %s378 = smul.addr %s374, 16
      %s379 = sadd.s32 %s377, %s378
      %s380 = smul.addr %s379, 8
      %s381 = scalar_lea.vmem %s8, %s380
      %s382 = smul.u32 8, %s24
      %p383 = scmp.lt.s32.totalorder %s23, 1
      %s384 = scalar_select %p383, %s23, 1
      %p385 = scmp.lt.s32.totalorder %s382, 7
      %s386 = scalar_select %p385, %s382, 7
      %s387 = smul.addr %s386, 2
      %s388 = smul.addr %s384, 16
      %s389 = sadd.s32 %s387, %s388
      %s390 = smul.addr %s389, 8
      %s391 = scalar_lea.vmem %s0, %s390
      %s392 = smul.u32 8, %s24
      %s393 = smul.u32 8, %s24
      %p394 = scmp.lt.s32.totalorder %s23, 1
      %s395 = scalar_select %p394, %s23, 1
      %p396 = scmp.lt.s32.totalorder %s393, 7
      %s397 = scalar_select %p396, %s393, 7
      %s398 = smul.addr %s397, 2
      %s399 = smul.addr %s395, 16
      %s400 = sadd.s32 %s398, %s399
      %s401 = smul.addr %s400, 8
      %s402 = scalar_lea.vmem %s1, %s401
      %s403 = smul.u32 8, %s24
      %p404 = scmp.lt.s32.totalorder %s23, 1
      %s405 = scalar_select %p404, %s23, 1
      %s406 = smul.addr %s405, 2
      %s407 = scalar_lea.vmem %s2, %s406
      %p408 = scmp.lt.s32.totalorder %s23, 1
      %s409 = scalar_select %p408, %s23, 1
      %s410 = smul.addr %s409, 2
      %s411 = scalar_lea.vmem %s3, %s410
      %s412 = smul.u32 8, %s24
      %p413 = scmp.lt.s32.totalorder %s23, 1
      %s414 = scalar_select %p413, %s23, 1
      %p415 = scmp.lt.s32.totalorder %s412, 7
      %s416 = scalar_select %p415, %s412, 7
      %s417 = smul.addr %s416, 2
      %s418 = smul.addr %s414, 16
      %s419 = sadd.s32 %s417, %s418
      %s420 = smul.addr %s419, 8
      %s421 = scalar_lea.vmem %s8, %s420
      %s422 = smul.u32 8, %s24
      %v423 = vld [vmem:[%s391] sm:$0xff]
      %v424 = vld [vmem:[%s391 + $0x8] sm:$0xff]
      %v425 = vld [vmem:[%s391 + $0x10] sm:$0xff]
      %v426 = vld [vmem:[%s391 + $0x18] sm:$0xff]
      %v427 = vld [vmem:[%s391 + $0x20] sm:$0xff]
      %v428 = vld [vmem:[%s391 + $0x28] sm:$0xff]
      %v429 = vld [vmem:[%s391 + $0x30] sm:$0xff]
      %v430 = vld [vmem:[%s391 + $0x38] sm:$0xff]
      %v431 = vld [vmem:[%s391 + $0x40] sm:$0xff]
      %v432 = vld [vmem:[%s391 + $0x48] sm:$0xff]
      %v433 = vld [vmem:[%s391 + $0x50] sm:$0xff]
      %v434 = vld [vmem:[%s391 + $0x58] sm:$0xff]
      %v435 = vld [vmem:[%s391 + $0x60] sm:$0xff]
      %v436 = vld [vmem:[%s391 + $0x68] sm:$0xff]
      %v437 = vld [vmem:[%s391 + $0x70] sm:$0xff]
      %v438 = vld [vmem:[%s391 + $0x78] sm:$0xff]
      %v439 = vld [vmem:[%s407] sm:$0x3]
      %v441 = vperm.slane %v439, 0
      %v442 = vperm.slane %v439, 1
      %v445 = vmul.f32 %v423, %v441
      %v446 = vmul.f32 %v424, %v442
      %v447 = vmul.f32 %v425, %v441
      %v448 = vmul.f32 %v426, %v442
      %v449 = vmul.f32 %v427, %v441
      %v450 = vmul.f32 %v428, %v442
      %v451 = vmul.f32 %v429, %v441
      %v452 = vmul.f32 %v430, %v442
      %v453 = vmul.f32 %v431, %v441
      %v454 = vmul.f32 %v432, %v442
      %v455 = vmul.f32 %v433, %v441
      %v456 = vmul.f32 %v434, %v442
      %v457 = vmul.f32 %v435, %v441
      %v458 = vmul.f32 %v436, %v442
      %v459 = vmul.f32 %v437, %v441
      %v460 = vmul.f32 %v438, %v442
      %v461 = vld [vmem:[%s411] sm:$0x3]
      %v463 = vperm.slane %v461, 0
      %v464 = vperm.slane %v461, 1
      %v467 = vadd.f32 %v445, %v463
      %v468 = vadd.f32 %v446, %v464
      %v469 = vadd.f32 %v447, %v463
      %v470 = vadd.f32 %v448, %v464
      %v471 = vadd.f32 %v449, %v463
      %v472 = vadd.f32 %v450, %v464
      %v473 = vadd.f32 %v451, %v463
      %v474 = vadd.f32 %v452, %v464
      %v475 = vadd.f32 %v453, %v463
      %v476 = vadd.f32 %v454, %v464
      %v477 = vadd.f32 %v455, %v463
      %v478 = vadd.f32 %v456, %v464
      %v479 = vadd.f32 %v457, %v463
      %v480 = vadd.f32 %v458, %v464
      %v481 = vadd.f32 %v459, %v463
      %v482 = vadd.f32 %v460, %v464
      %v483 = vpack.c.bf16 %v469, %v467
      %v484 = vpack.c.bf16 %v470, %v468
      %v485 = vpack.c.bf16 %v473, %v471
      %v486 = vpack.c.bf16 %v474, %v472
      %v487 = vpack.c.bf16 %v477, %v475
      %v488 = vpack.c.bf16 %v478, %v476
      %v489 = vpack.c.bf16 %v481, %v479
      %v490 = vpack.c.bf16 %v482, %v480
      %v491 = vld [vmem:[%s4] sm:$0xff]
      %v492 = vld [vmem:[%s4 + $0x8] sm:$0xff]
      %v493 = vld [vmem:[%s4 + $0x10] sm:$0xff]
      %v494 = vld [vmem:[%s4 + $0x18] sm:$0xff]
      %v495 = vld [vmem:[%s4 + $0x20] sm:$0xff]
      %v496 = vld [vmem:[%s4 + $0x28] sm:$0xff]
      %v497 = vld [vmem:[%s4 + $0x30] sm:$0xff]
      %v498 = vld [vmem:[%s4 + $0x38] sm:$0xff]
      %v499 = vld [vmem:[%s4 + $0x40] sm:$0xff]
      %v500 = vld [vmem:[%s4 + $0x48] sm:$0xff]
      %v501 = vld [vmem:[%s4 + $0x50] sm:$0xff]
      %v502 = vld [vmem:[%s4 + $0x58] sm:$0xff]
      %v503 = vld [vmem:[%s4 + $0x60] sm:$0xff]
      %v504 = vld [vmem:[%s4 + $0x68] sm:$0xff]
      %v505 = vld [vmem:[%s4 + $0x70] sm:$0xff]
      %v506 = vld [vmem:[%s4 + $0x78] sm:$0xff]
      %v507 = vld [vmem:[%s4 + $0x80] sm:$0xff]
      %v508 = vld [vmem:[%s4 + $0x88] sm:$0xff]
      %v509 = vld [vmem:[%s4 + $0x90] sm:$0xff]
      %v510 = vld [vmem:[%s4 + $0x98] sm:$0xff]
      %v511 = vld [vmem:[%s4 + $0xa0] sm:$0xff]
      %v512 = vld [vmem:[%s4 + $0xa8] sm:$0xff]
      %v513 = vld [vmem:[%s4 + $0xb0] sm:$0xff]
      %v514 = vld [vmem:[%s4 + $0xb8] sm:$0xff]
      %v515 = vld [vmem:[%s4 + $0xc0] sm:$0xff]
      %v516 = vld [vmem:[%s4 + $0xc8] sm:$0xff]
      %v517 = vld [vmem:[%s4 + $0xd0] sm:$0xff]
      %v518 = vld [vmem:[%s4 + $0xd8] sm:$0xff]
      %v519 = vld [vmem:[%s4 + $0xe0] sm:$0xff]
      %v520 = vld [vmem:[%s4 + $0xe8] sm:$0xff]
      %v521 = vld [vmem:[%s4 + $0xf0] sm:$0xff]
      %v522 = vld [vmem:[%s4 + $0xf8] sm:$0xff]
      %v523 = vld [vmem:[%s4 + $0x100] sm:$0xff]
      %v524 = vld [vmem:[%s4 + $0x108] sm:$0xff]
      %v525 = vld [vmem:[%s4 + $0x110] sm:$0xff]
      %v526 = vld [vmem:[%s4 + $0x118] sm:$0xff]
      %v527 = vld [vmem:[%s4 + $0x120] sm:$0xff]
      %v528 = vld [vmem:[%s4 + $0x128] sm:$0xff]
      %v529 = vld [vmem:[%s4 + $0x130] sm:$0xff]
      %v530 = vld [vmem:[%s4 + $0x138] sm:$0xff]
      %v531 = vld [vmem:[%s4 + $0x140] sm:$0xff]
      %v532 = vld [vmem:[%s4 + $0x148] sm:$0xff]
      %v533 = vld [vmem:[%s4 + $0x150] sm:$0xff]
      %v534 = vld [vmem:[%s4 + $0x158] sm:$0xff]
      %v535 = vld [vmem:[%s4 + $0x160] sm:$0xff]
      %v536 = vld [vmem:[%s4 + $0x168] sm:$0xff]
      %v537 = vld [vmem:[%s4 + $0x170] sm:$0xff]
      %v538 = vld [vmem:[%s4 + $0x178] sm:$0xff]
      %v539 = vld [vmem:[%s4 + $0x180] sm:$0xff]
      %v540 = vld [vmem:[%s4 + $0x188] sm:$0xff]
      %v541 = vld [vmem:[%s4 + $0x190] sm:$0xff]
      %v542 = vld [vmem:[%s4 + $0x198] sm:$0xff]
      %v543 = vld [vmem:[%s4 + $0x1a0] sm:$0xff]
      %v544 = vld [vmem:[%s4 + $0x1a8] sm:$0xff]
      %v545 = vld [vmem:[%s4 + $0x1b0] sm:$0xff]
      %v546 = vld [vmem:[%s4 + $0x1b8] sm:$0xff]
      %v547 = vld [vmem:[%s4 + $0x1c0] sm:$0xff]
      %v548 = vld [vmem:[%s4 + $0x1c8] sm:$0xff]
      %v549 = vld [vmem:[%s4 + $0x1d0] sm:$0xff]
      %v550 = vld [vmem:[%s4 + $0x1d8] sm:$0xff]
      %v551 = vld [vmem:[%s4 + $0x1e0] sm:$0xff]
      %v552 = vld [vmem:[%s4 + $0x1e8] sm:$0xff]
      %v553 = vld [vmem:[%s4 + $0x1f0] sm:$0xff]
      %v554 = vld [vmem:[%s4 + $0x1f8] sm:$0xff]
      %v555 = vld [vmem:[%s5] sm:$0xf]
      %v557 = vperm.slane %v555, 0
      %v558 = vperm.slane %v555, 1
      %v559 = vperm.slane %v555, 2
      %v560 = vperm.slane %v555, 3
      %v629 = vunpack.c.l.b16 %v491
      %v630 = vunpack.c.h.b16 %v491
      %v631 = vunpack.c.l.b16 %v492
      %v632 = vunpack.c.h.b16 %v492
      %v633 = vunpack.c.l.b16 %v493
      %v634 = vunpack.c.h.b16 %v493
      %v635 = vunpack.c.l.b16 %v494
      %v636 = vunpack.c.h.b16 %v494
      %v637 = vunpack.c.l.b16 %v495
      %v638 = vunpack.c.h.b16 %v495
      %v639 = vunpack.c.l.b16 %v496
      %v640 = vunpack.c.h.b16 %v496
      %v641 = vunpack.c.l.b16 %v497
      %v642 = vunpack.c.h.b16 %v497
      %v643 = vunpack.c.l.b16 %v498
      %v644 = vunpack.c.h.b16 %v498
      %v645 = vunpack.c.l.b16 %v499
      %v646 = vunpack.c.h.b16 %v499
      %v647 = vunpack.c.l.b16 %v500
      %v648 = vunpack.c.h.b16 %v500
      %v649 = vunpack.c.l.b16 %v501
      %v650 = vunpack.c.h.b16 %v501
      %v651 = vunpack.c.l.b16 %v502
      %v652 = vunpack.c.h.b16 %v502
      %v653 = vunpack.c.l.b16 %v503
      %v654 = vunpack.c.h.b16 %v503
      %v655 = vunpack.c.l.b16 %v504
      %v656 = vunpack.c.h.b16 %v504
      %v657 = vunpack.c.l.b16 %v505
      %v658 = vunpack.c.h.b16 %v505
      %v659 = vunpack.c.l.b16 %v506
      %v660 = vunpack.c.h.b16 %v506
      %v661 = vunpack.c.l.b16 %v507
      %v662 = vunpack.c.h.b16 %v507
      %v663 = vunpack.c.l.b16 %v508
      %v664 = vunpack.c.h.b16 %v508
      %v665 = vunpack.c.l.b16 %v509
      %v666 = vunpack.c.h.b16 %v509
      %v667 = vunpack.c.l.b16 %v510
      %v668 = vunpack.c.h.b16 %v510
      %v669 = vunpack.c.l.b16 %v511
      %v670 = vunpack.c.h.b16 %v511
      %v671 = vunpack.c.l.b16 %v512
      %v672 = vunpack.c.h.b16 %v512
      %v673 = vunpack.c.l.b16 %v513
      %v674 = vunpack.c.h.b16 %v513
      %v675 = vunpack.c.l.b16 %v514
      %v676 = vunpack.c.h.b16 %v514
      %v677 = vunpack.c.l.b16 %v515
      %v678 = vunpack.c.h.b16 %v515
      %v679 = vunpack.c.l.b16 %v516
      %v680 = vunpack.c.h.b16 %v516
      %v681 = vunpack.c.l.b16 %v517
      %v682 = vunpack.c.h.b16 %v517
      %v683 = vunpack.c.l.b16 %v518
      %v684 = vunpack.c.h.b16 %v518
      %v685 = vunpack.c.l.b16 %v519
      %v686 = vunpack.c.h.b16 %v519
      %v687 = vunpack.c.l.b16 %v520
      %v688 = vunpack.c.h.b16 %v520
      %v689 = vunpack.c.l.b16 %v521
      %v690 = vunpack.c.h.b16 %v521
      %v691 = vunpack.c.l.b16 %v522
      %v692 = vunpack.c.h.b16 %v522
      %v693 = vunpack.c.l.b16 %v523
      %v694 = vunpack.c.h.b16 %v523
      %v695 = vunpack.c.l.b16 %v524
      %v696 = vunpack.c.h.b16 %v524
      %v697 = vunpack.c.l.b16 %v525
      %v698 = vunpack.c.h.b16 %v525
      %v699 = vunpack.c.l.b16 %v526
      %v700 = vunpack.c.h.b16 %v526
      %v701 = vunpack.c.l.b16 %v527
      %v702 = vunpack.c.h.b16 %v527
      %v703 = vunpack.c.l.b16 %v528
      %v704 = vunpack.c.h.b16 %v528
      %v705 = vunpack.c.l.b16 %v529
      %v706 = vunpack.c.h.b16 %v529
      %v707 = vunpack.c.l.b16 %v530
      %v708 = vunpack.c.h.b16 %v530
      %v709 = vunpack.c.l.b16 %v531
      %v710 = vunpack.c.h.b16 %v531
      %v711 = vunpack.c.l.b16 %v532
      %v712 = vunpack.c.h.b16 %v532
      %v713 = vunpack.c.l.b16 %v533
      %v714 = vunpack.c.h.b16 %v533
      %v715 = vunpack.c.l.b16 %v534
      %v716 = vunpack.c.h.b16 %v534
      %v717 = vunpack.c.l.b16 %v535
      %v718 = vunpack.c.h.b16 %v535
      %v719 = vunpack.c.l.b16 %v536
      %v720 = vunpack.c.h.b16 %v536
      %v721 = vunpack.c.l.b16 %v537
      %v722 = vunpack.c.h.b16 %v537
      %v723 = vunpack.c.l.b16 %v538
      %v724 = vunpack.c.h.b16 %v538
      %v725 = vunpack.c.l.b16 %v539
      %v726 = vunpack.c.h.b16 %v539
      %v727 = vunpack.c.l.b16 %v540
      %v728 = vunpack.c.h.b16 %v540
      %v729 = vunpack.c.l.b16 %v541
      %v730 = vunpack.c.h.b16 %v541
      %v731 = vunpack.c.l.b16 %v542
      %v732 = vunpack.c.h.b16 %v542
      %v733 = vunpack.c.l.b16 %v543
      %v734 = vunpack.c.h.b16 %v543
      %v735 = vunpack.c.l.b16 %v544
      %v736 = vunpack.c.h.b16 %v544
      %v737 = vunpack.c.l.b16 %v545
      %v738 = vunpack.c.h.b16 %v545
      %v739 = vunpack.c.l.b16 %v546
      %v740 = vunpack.c.h.b16 %v546
      %v741 = vunpack.c.l.b16 %v547
      %v742 = vunpack.c.h.b16 %v547
      %v743 = vunpack.c.l.b16 %v548
      %v744 = vunpack.c.h.b16 %v548
      %v745 = vunpack.c.l.b16 %v549
      %v746 = vunpack.c.h.b16 %v549
      %v747 = vunpack.c.l.b16 %v550
      %v748 = vunpack.c.h.b16 %v550
      %v749 = vunpack.c.l.b16 %v551
      %v750 = vunpack.c.h.b16 %v551
      %v751 = vunpack.c.l.b16 %v552
      %v752 = vunpack.c.h.b16 %v552
      %v753 = vunpack.c.l.b16 %v553
      %v754 = vunpack.c.h.b16 %v553
      %v755 = vunpack.c.l.b16 %v554
      %v756 = vunpack.c.h.b16 %v554
      %v757 = vpack.c.b16 %v633, %v629
      %v758 = vpack.c.b16 %v634, %v630
      %v759 = vpack.c.b16 %v635, %v631
      %v760 = vpack.c.b16 %v636, %v632
      %v761 = vpack.c.b16 %v641, %v637
      %v762 = vpack.c.b16 %v642, %v638
      %v763 = vpack.c.b16 %v643, %v639
      %v764 = vpack.c.b16 %v644, %v640
      %v765 = vpack.c.b16 %v649, %v645
      %v766 = vpack.c.b16 %v650, %v646
      %v767 = vpack.c.b16 %v651, %v647
      %v768 = vpack.c.b16 %v652, %v648
      %v769 = vpack.c.b16 %v657, %v653
      %v770 = vpack.c.b16 %v658, %v654
      %v771 = vpack.c.b16 %v659, %v655
      %v772 = vpack.c.b16 %v660, %v656
      %v773 = vpack.c.b16 %v665, %v661
      %v774 = vpack.c.b16 %v666, %v662
      %v775 = vpack.c.b16 %v667, %v663
      %v776 = vpack.c.b16 %v668, %v664
      %v777 = vpack.c.b16 %v673, %v669
      %v778 = vpack.c.b16 %v674, %v670
      %v779 = vpack.c.b16 %v675, %v671
      %v780 = vpack.c.b16 %v676, %v672
      %v781 = vpack.c.b16 %v681, %v677
      %v782 = vpack.c.b16 %v682, %v678
      %v783 = vpack.c.b16 %v683, %v679
      %v784 = vpack.c.b16 %v684, %v680
      %v785 = vpack.c.b16 %v689, %v685
      %v786 = vpack.c.b16 %v690, %v686
      %v787 = vpack.c.b16 %v691, %v687
      %v788 = vpack.c.b16 %v692, %v688
      %v789 = vpack.c.b16 %v697, %v693
      %v790 = vpack.c.b16 %v698, %v694
      %v791 = vpack.c.b16 %v699, %v695
      %v792 = vpack.c.b16 %v700, %v696
      %v793 = vpack.c.b16 %v705, %v701
      %v794 = vpack.c.b16 %v706, %v702
      %v795 = vpack.c.b16 %v707, %v703
      %v796 = vpack.c.b16 %v708, %v704
      %v797 = vpack.c.b16 %v713, %v709
      %v798 = vpack.c.b16 %v714, %v710
      %v799 = vpack.c.b16 %v715, %v711
      %v800 = vpack.c.b16 %v716, %v712
      %v801 = vpack.c.b16 %v721, %v717
      %v802 = vpack.c.b16 %v722, %v718
      %v803 = vpack.c.b16 %v723, %v719
      %v804 = vpack.c.b16 %v724, %v720
      %v805 = vpack.c.b16 %v729, %v725
      %v806 = vpack.c.b16 %v730, %v726
      %v807 = vpack.c.b16 %v731, %v727
      %v808 = vpack.c.b16 %v732, %v728
      %v809 = vpack.c.b16 %v737, %v733
      %v810 = vpack.c.b16 %v738, %v734
      %v811 = vpack.c.b16 %v739, %v735
      %v812 = vpack.c.b16 %v740, %v736
      %v813 = vpack.c.b16 %v745, %v741
      %v814 = vpack.c.b16 %v746, %v742
      %v815 = vpack.c.b16 %v747, %v743
      %v816 = vpack.c.b16 %v748, %v744
      %v817 = vpack.c.b16 %v753, %v749
      %v818 = vpack.c.b16 %v754, %v750
      %v819 = vpack.c.b16 %v755, %v751
      %v820 = vpack.c.b16 %v756, %v752
      %885 = vmatpush.bf16.msra.mxu0 %v785
      %886 = vmatpush.bf16.msra.mxu0 %v781
      %887 = vmatpush.bf16.msra.mxu0 %v777
      %888 = vmatpush.bf16.msra.mxu0 %v773
      %889 = vmatpush.bf16.msra.mxu0 %v769
      %890 = vmatpush.bf16.msra.mxu0 %v765
      %891 = vmatpush.bf16.msra.mxu0 %v761
      %892 = vmatpush.bf16.msra.mxu0 %v757
      %893 = vmatmul.bf16.gmra.mxu0 %v483
      %v894 = vpop.f32.mrf.mxu0
      %v895 = vadd.f32 %v557, %v894
      %v896 = vpop.f32.mrf.mxu0
      %v897 = vadd.f32 %v557, %v896
      %898 = vmatmul.bf16.gmra.mxu0 %v485
      %v899 = vpop.f32.mrf.mxu0
      %v900 = vadd.f32 %v557, %v899
      %v901 = vpop.f32.mrf.mxu0
      %v902 = vadd.f32 %v557, %v901
      %903 = vmatmul.bf16.gmra.mxu0 %v487
      %v904 = vpop.f32.mrf.mxu0
      %v905 = vadd.f32 %v557, %v904
      %v906 = vpop.f32.mrf.mxu0
      %v907 = vadd.f32 %v557, %v906
      %908 = vmatmul.bf16.gmra.mxu0 %v489
      %v909 = vpop.f32.mrf.mxu0
      %v910 = vadd.f32 %v557, %v909
      %v911 = vpop.f32.mrf.mxu0
      %v912 = vadd.f32 %v557, %v911
      %913 = vdwg.mxu0
      %914 = vmatpush.bf16.msra.mxu0 %v817
      %915 = vmatpush.bf16.msra.mxu0 %v813
      %916 = vmatpush.bf16.msra.mxu0 %v809
      %917 = vmatpush.bf16.msra.mxu0 %v805
      %918 = vmatpush.bf16.msra.mxu0 %v801
      %919 = vmatpush.bf16.msra.mxu0 %v797
      %920 = vmatpush.bf16.msra.mxu0 %v793
      %921 = vmatpush.bf16.msra.mxu0 %v789
      %922 = vmatmul.bf16.gmra.mxu0 %v484
      %v923 = vpop.f32.mrf.mxu0
      %v924 = vadd.f32 %v895, %v923
      %v925 = vpop.f32.mrf.mxu0
      %v926 = vadd.f32 %v897, %v925
      %927 = vmatmul.bf16.gmra.mxu0 %v486
      %v928 = vpop.f32.mrf.mxu0
      %v929 = vadd.f32 %v900, %v928
      %v930 = vpop.f32.mrf.mxu0
      %v931 = vadd.f32 %v902, %v930
      %932 = vmatmul.bf16.gmra.mxu0 %v488
      %v933 = vpop.f32.mrf.mxu0
      %v934 = vadd.f32 %v905, %v933
      %v935 = vpop.f32.mrf.mxu0
      %v936 = vadd.f32 %v907, %v935
      %937 = vmatmul.bf16.gmra.mxu0 %v490
      %v938 = vpop.f32.mrf.mxu0
      %v939 = vadd.f32 %v910, %v938
      %v940 = vpop.f32.mrf.mxu0
      %v941 = vadd.f32 %v912, %v940
      %942 = vdwg.mxu0
      %943 = vmatpush.bf16.msra.mxu0 %v786
      %944 = vmatpush.bf16.msra.mxu0 %v782
      %945 = vmatpush.bf16.msra.mxu0 %v778
      %946 = vmatpush.bf16.msra.mxu0 %v774
      %947 = vmatpush.bf16.msra.mxu0 %v770
      %948 = vmatpush.bf16.msra.mxu0 %v766
      %949 = vmatpush.bf16.msra.mxu0 %v762
      %950 = vmatpush.bf16.msra.mxu0 %v758
      %951 = vmatmul.bf16.gmra.mxu0 %v483
      %v952 = vpop.f32.mrf.mxu0
      %v953 = vadd.f32 %v558, %v952
      %v954 = vpop.f32.mrf.mxu0
      %v955 = vadd.f32 %v558, %v954
      %956 = vmatmul.bf16.gmra.mxu0 %v485
      %v957 = vpop.f32.mrf.mxu0
      %v958 = vadd.f32 %v558, %v957
      %v959 = vpop.f32.mrf.mxu0
      %v960 = vadd.f32 %v558, %v959
      %961 = vmatmul.bf16.gmra.mxu0 %v487
      %v962 = vpop.f32.mrf.mxu0
      %v963 = vadd.f32 %v558, %v962
      %v964 = vpop.f32.mrf.mxu0
      %v965 = vadd.f32 %v558, %v964
      %966 = vmatmul.bf16.gmra.mxu0 %v489
      %v967 = vpop.f32.mrf.mxu0
      %v968 = vadd.f32 %v558, %v967
      %v969 = vpop.f32.mrf.mxu0
      %v970 = vadd.f32 %v558, %v969
      %971 = vdwg.mxu0
      %972 = vmatpush.bf16.msra.mxu0 %v818
      %973 = vmatpush.bf16.msra.mxu0 %v814
      %974 = vmatpush.bf16.msra.mxu0 %v810
      %975 = vmatpush.bf16.msra.mxu0 %v806
      %976 = vmatpush.bf16.msra.mxu0 %v802
      %977 = vmatpush.bf16.msra.mxu0 %v798
      %978 = vmatpush.bf16.msra.mxu0 %v794
      %979 = vmatpush.bf16.msra.mxu0 %v790
      %980 = vmatmul.bf16.gmra.mxu0 %v484
      %v981 = vpop.f32.mrf.mxu0
      %v982 = vadd.f32 %v953, %v981
      %v983 = vpop.f32.mrf.mxu0
      %v984 = vadd.f32 %v955, %v983
      %985 = vmatmul.bf16.gmra.mxu0 %v486
      %v986 = vpop.f32.mrf.mxu0
      %v987 = vadd.f32 %v958, %v986
      %v988 = vpop.f32.mrf.mxu0
      %v989 = vadd.f32 %v960, %v988
      %990 = vmatmul.bf16.gmra.mxu0 %v488
      %v991 = vpop.f32.mrf.mxu0
      %v992 = vadd.f32 %v963, %v991
      %v993 = vpop.f32.mrf.mxu0
      %v994 = vadd.f32 %v965, %v993
      %995 = vmatmul.bf16.gmra.mxu0 %v490
      %v996 = vpop.f32.mrf.mxu0
      %v997 = vadd.f32 %v968, %v996
      %v998 = vpop.f32.mrf.mxu0
      %v999 = vadd.f32 %v970, %v998
      %1000 = vdwg.mxu0
      %1001 = vmatpush.bf16.msra.mxu0 %v787
      %1002 = vmatpush.bf16.msra.mxu0 %v783
      %1003 = vmatpush.bf16.msra.mxu0 %v779
      %1004 = vmatpush.bf16.msra.mxu0 %v775
      %1005 = vmatpush.bf16.msra.mxu0 %v771
      %1006 = vmatpush.bf16.msra.mxu0 %v767
      %1007 = vmatpush.bf16.msra.mxu0 %v763
      %1008 = vmatpush.bf16.msra.mxu0 %v759
      %1009 = vmatmul.bf16.gmra.mxu0 %v483
      %v1010 = vpop.f32.mrf.mxu0
      %v1011 = vadd.f32 %v559, %v1010
      %v1012 = vpop.f32.mrf.mxu0
      %v1013 = vadd.f32 %v559, %v1012
      %1014 = vmatmul.bf16.gmra.mxu0 %v485
      %v1015 = vpop.f32.mrf.mxu0
      %v1016 = vadd.f32 %v559, %v1015
      %v1017 = vpop.f32.mrf.mxu0
      %v1018 = vadd.f32 %v559, %v1017
      %1019 = vmatmul.bf16.gmra.mxu0 %v487
      %v1020 = vpop.f32.mrf.mxu0
      %v1021 = vadd.f32 %v559, %v1020
      %v1022 = vpop.f32.mrf.mxu0
      %v1023 = vadd.f32 %v559, %v1022
      %1024 = vmatmul.bf16.gmra.mxu0 %v489
      %v1025 = vpop.f32.mrf.mxu0
      %v1026 = vadd.f32 %v559, %v1025
      %v1027 = vpop.f32.mrf.mxu0
      %v1028 = vadd.f32 %v559, %v1027
      %1029 = vdwg.mxu0
      %1030 = vmatpush.bf16.msra.mxu0 %v819
      %1031 = vmatpush.bf16.msra.mxu0 %v815
      %1032 = vmatpush.bf16.msra.mxu0 %v811
      %1033 = vmatpush.bf16.msra.mxu0 %v807
      %1034 = vmatpush.bf16.msra.mxu0 %v803
      %1035 = vmatpush.bf16.msra.mxu0 %v799
      %1036 = vmatpush.bf16.msra.mxu0 %v795
      %1037 = vmatpush.bf16.msra.mxu0 %v791
      %1038 = vmatmul.bf16.gmra.mxu0 %v484
      %v1039 = vpop.f32.mrf.mxu0
      %v1040 = vadd.f32 %v1011, %v1039
      %v1041 = vpop.f32.mrf.mxu0
      %v1042 = vadd.f32 %v1013, %v1041
      %1043 = vmatmul.bf16.gmra.mxu0 %v486
      %v1044 = vpop.f32.mrf.mxu0
      %v1045 = vadd.f32 %v1016, %v1044
      %v1046 = vpop.f32.mrf.mxu0
      %v1047 = vadd.f32 %v1018, %v1046
      %1048 = vmatmul.bf16.gmra.mxu0 %v488
      %v1049 = vpop.f32.mrf.mxu0
      %v1050 = vadd.f32 %v1021, %v1049
      %v1051 = vpop.f32.mrf.mxu0
      %v1052 = vadd.f32 %v1023, %v1051
      %1053 = vmatmul.bf16.gmra.mxu0 %v490
      %v1054 = vpop.f32.mrf.mxu0
      %v1055 = vadd.f32 %v1026, %v1054
      %v1056 = vpop.f32.mrf.mxu0
      %v1057 = vadd.f32 %v1028, %v1056
      %1058 = vdwg.mxu0
      %1059 = vmatpush.bf16.msra.mxu0 %v788
      %1060 = vmatpush.bf16.msra.mxu0 %v784
      %1061 = vmatpush.bf16.msra.mxu0 %v780
      %1062 = vmatpush.bf16.msra.mxu0 %v776
      %1063 = vmatpush.bf16.msra.mxu0 %v772
      %1064 = vmatpush.bf16.msra.mxu0 %v768
      %1065 = vmatpush.bf16.msra.mxu0 %v764
      %1066 = vmatpush.bf16.msra.mxu0 %v760
      %1067 = vmatmul.bf16.gmra.mxu0 %v483
      %v1068 = vpop.f32.mrf.mxu0
      %v1069 = vadd.f32 %v560, %v1068
      %v1070 = vpop.f32.mrf.mxu0
      %v1071 = vadd.f32 %v560, %v1070
      %1072 = vmatmul.bf16.gmra.mxu0 %v485
      %v1073 = vpop.f32.mrf.mxu0
      %v1074 = vadd.f32 %v560, %v1073
      %v1075 = vpop.f32.mrf.mxu0
      %v1076 = vadd.f32 %v560, %v1075
      %1077 = vmatmul.bf16.gmra.mxu0 %v487
      %v1078 = vpop.f32.mrf.mxu0
      %v1079 = vadd.f32 %v560, %v1078
      %v1080 = vpop.f32.mrf.mxu0
      %v1081 = vadd.f32 %v560, %v1080
      %1082 = vmatmul.bf16.gmra.mxu0 %v489
      %v1083 = vpop.f32.mrf.mxu0
      %v1084 = vadd.f32 %v560, %v1083
      %v1085 = vpop.f32.mrf.mxu0
      %v1086 = vadd.f32 %v560, %v1085
      %1087 = vdwg.mxu0
      %1088 = vmatpush.bf16.msra.mxu0 %v820
      %1089 = vmatpush.bf16.msra.mxu0 %v816
      %1090 = vmatpush.bf16.msra.mxu0 %v812
      %1091 = vmatpush.bf16.msra.mxu0 %v808
      %1092 = vmatpush.bf16.msra.mxu0 %v804
      %1093 = vmatpush.bf16.msra.mxu0 %v800
      %1094 = vmatpush.bf16.msra.mxu0 %v796
      %1095 = vmatpush.bf16.msra.mxu0 %v792
      %1096 = vmatmul.bf16.gmra.mxu0 %v484
      %v1097 = vpop.f32.mrf.mxu0
      %v1098 = vadd.f32 %v1069, %v1097
      %v1099 = vpop.f32.mrf.mxu0
      %v1100 = vadd.f32 %v1071, %v1099
      %1101 = vmatmul.bf16.gmra.mxu0 %v486
      %v1102 = vpop.f32.mrf.mxu0
      %v1103 = vadd.f32 %v1074, %v1102
      %v1104 = vpop.f32.mrf.mxu0
      %v1105 = vadd.f32 %v1076, %v1104
      %1106 = vmatmul.bf16.gmra.mxu0 %v488
      %v1107 = vpop.f32.mrf.mxu0
      %v1108 = vadd.f32 %v1079, %v1107
      %v1109 = vpop.f32.mrf.mxu0
      %v1110 = vadd.f32 %v1081, %v1109
      %1111 = vmatmul.bf16.gmra.mxu0 %v490
      %v1112 = vpop.f32.mrf.mxu0
      %v1113 = vadd.f32 %v1084, %v1112
      %v1114 = vpop.f32.mrf.mxu0
      %v1115 = vadd.f32 %v1086, %v1114
      %1116 = vdwg.mxu0
      %v1117 = vmul.f32 %v924, 0.5
      %v1118 = vmul.f32 %v982, 0.5
      %v1119 = vmul.f32 %v1040, 0.5
      %v1120 = vmul.f32 %v1098, 0.5
      %v1121 = vmul.f32 %v926, 0.5
      %v1122 = vmul.f32 %v984, 0.5
      %v1123 = vmul.f32 %v1042, 0.5
      %v1124 = vmul.f32 %v1100, 0.5
      %v1125 = vmul.f32 %v929, 0.5
      %v1126 = vmul.f32 %v987, 0.5
      %v1127 = vmul.f32 %v1045, 0.5
      %v1128 = vmul.f32 %v1103, 0.5
      %v1129 = vmul.f32 %v931, 0.5
      %v1130 = vmul.f32 %v989, 0.5
      %v1131 = vmul.f32 %v1047, 0.5
      %v1132 = vmul.f32 %v1105, 0.5
      %v1133 = vmul.f32 %v934, 0.5
      %v1134 = vmul.f32 %v992, 0.5
      %v1135 = vmul.f32 %v1050, 0.5
      %v1136 = vmul.f32 %v1108, 0.5
      %v1137 = vmul.f32 %v936, 0.5
      %v1138 = vmul.f32 %v994, 0.5
      %v1139 = vmul.f32 %v1052, 0.5
      %v1140 = vmul.f32 %v1110, 0.5
      %v1141 = vmul.f32 %v939, 0.5
      %v1142 = vmul.f32 %v997, 0.5
      %v1143 = vmul.f32 %v1055, 0.5
      %v1144 = vmul.f32 %v1113, 0.5
      %v1145 = vmul.f32 %v941, 0.5
      %v1146 = vmul.f32 %v999, 0.5
      %v1147 = vmul.f32 %v1057, 0.5
      %v1148 = vmul.f32 %v1115, 0.5
      %v1149 = vmul.f32 %v924, 0.70710677
      %v1150 = vmul.f32 %v982, 0.70710677
      %v1151 = vmul.f32 %v1040, 0.70710677
      %v1152 = vmul.f32 %v1098, 0.70710677
      %v1153 = vmul.f32 %v926, 0.70710677
      %v1154 = vmul.f32 %v984, 0.70710677
      %v1155 = vmul.f32 %v1042, 0.70710677
      %v1156 = vmul.f32 %v1100, 0.70710677
      %v1157 = vmul.f32 %v929, 0.70710677
      %v1158 = vmul.f32 %v987, 0.70710677
      %v1159 = vmul.f32 %v1045, 0.70710677
      %v1160 = vmul.f32 %v1103, 0.70710677
      %v1161 = vmul.f32 %v931, 0.70710677
      %v1162 = vmul.f32 %v989, 0.70710677
      %v1163 = vmul.f32 %v1047, 0.70710677
      %v1164 = vmul.f32 %v1105, 0.70710677
      %v1165 = vmul.f32 %v934, 0.70710677
      %v1166 = vmul.f32 %v992, 0.70710677
      %v1167 = vmul.f32 %v1050, 0.70710677
      %v1168 = vmul.f32 %v1108, 0.70710677
      %v1169 = vmul.f32 %v936, 0.70710677
      %v1170 = vmul.f32 %v994, 0.70710677
      %v1171 = vmul.f32 %v1052, 0.70710677
      %v1172 = vmul.f32 %v1110, 0.70710677
      %v1173 = vmul.f32 %v939, 0.70710677
      %v1174 = vmul.f32 %v997, 0.70710677
      %v1175 = vmul.f32 %v1055, 0.70710677
      %v1176 = vmul.f32 %v1113, 0.70710677
      %v1177 = vmul.f32 %v941, 0.70710677
      %v1178 = vmul.f32 %v999, 0.70710677
      %v1179 = vmul.f32 %v1057, 0.70710677
      %v1180 = vmul.f32 %v1115, 0.70710677
      %v1181 = vmax.f32 %v1149, -3.832507
      %v1182 = vmax.f32 %v1150, -3.832507
      %v1183 = vmax.f32 %v1151, -3.832507
      %v1184 = vmax.f32 %v1152, -3.832507
      %v1185 = vmax.f32 %v1153, -3.832507
      %v1186 = vmax.f32 %v1154, -3.832507
      %v1187 = vmax.f32 %v1155, -3.832507
      %v1188 = vmax.f32 %v1156, -3.832507
      %v1189 = vmax.f32 %v1157, -3.832507
      %v1190 = vmax.f32 %v1158, -3.832507
      %v1191 = vmax.f32 %v1159, -3.832507
      %v1192 = vmax.f32 %v1160, -3.832507
      %v1193 = vmax.f32 %v1161, -3.832507
      %v1194 = vmax.f32 %v1162, -3.832507
      %v1195 = vmax.f32 %v1163, -3.832507
      %v1196 = vmax.f32 %v1164, -3.832507
      %v1197 = vmax.f32 %v1165, -3.832507
      %v1198 = vmax.f32 %v1166, -3.832507
      %v1199 = vmax.f32 %v1167, -3.832507
      %v1200 = vmax.f32 %v1168, -3.832507
      %v1201 = vmax.f32 %v1169, -3.832507
      %v1202 = vmax.f32 %v1170, -3.832507
      %v1203 = vmax.f32 %v1171, -3.832507
      %v1204 = vmax.f32 %v1172, -3.832507
      %v1205 = vmax.f32 %v1173, -3.832507
      %v1206 = vmax.f32 %v1174, -3.832507
      %v1207 = vmax.f32 %v1175, -3.832507
      %v1208 = vmax.f32 %v1176, -3.832507
      %v1209 = vmax.f32 %v1177, -3.832507
      %v1210 = vmax.f32 %v1178, -3.832507
      %v1211 = vmax.f32 %v1179, -3.832507
      %v1212 = vmax.f32 %v1180, -3.832507
      %v1213 = vmin.f32 %v1181, 3.832507
      %v1214 = vmin.f32 %v1182, 3.832507
      %v1215 = vmin.f32 %v1183, 3.832507
      %v1216 = vmin.f32 %v1184, 3.832507
      %v1217 = vmin.f32 %v1185, 3.832507
      %v1218 = vmin.f32 %v1186, 3.832507
      %v1219 = vmin.f32 %v1187, 3.832507
      %v1220 = vmin.f32 %v1188, 3.832507
      %v1221 = vmin.f32 %v1189, 3.832507
      %v1222 = vmin.f32 %v1190, 3.832507
      %v1223 = vmin.f32 %v1191, 3.832507
      %v1224 = vmin.f32 %v1192, 3.832507
      %v1225 = vmin.f32 %v1193, 3.832507
      %v1226 = vmin.f32 %v1194, 3.832507
      %v1227 = vmin.f32 %v1195, 3.832507
      %v1228 = vmin.f32 %v1196, 3.832507
      %v1229 = vmin.f32 %v1197, 3.832507
      %v1230 = vmin.f32 %v1198, 3.832507
      %v1231 = vmin.f32 %v1199, 3.832507
      %v1232 = vmin.f32 %v1200, 3.832507
      %v1233 = vmin.f32 %v1201, 3.832507
      %v1234 = vmin.f32 %v1202, 3.832507
      %v1235 = vmin.f32 %v1203, 3.832507
      %v1236 = vmin.f32 %v1204, 3.832507
      %v1237 = vmin.f32 %v1205, 3.832507
      %v1238 = vmin.f32 %v1206, 3.832507
      %v1239 = vmin.f32 %v1207, 3.832507
      %v1240 = vmin.f32 %v1208, 3.832507
      %v1241 = vmin.f32 %v1209, 3.832507
      %v1242 = vmin.f32 %v1210, 3.832507
      %v1243 = vmin.f32 %v1211, 3.832507
      %v1244 = vmin.f32 %v1212, 3.832507
      %v1245 = vmul.f32 %v1213, %v1213
      %v1246 = vmul.f32 %v1214, %v1214
      %v1247 = vmul.f32 %v1215, %v1215
      %v1248 = vmul.f32 %v1216, %v1216
      %v1249 = vmul.f32 %v1217, %v1217
      %v1250 = vmul.f32 %v1218, %v1218
      %v1251 = vmul.f32 %v1219, %v1219
      %v1252 = vmul.f32 %v1220, %v1220
      %v1253 = vmul.f32 %v1221, %v1221
      %v1254 = vmul.f32 %v1222, %v1222
      %v1255 = vmul.f32 %v1223, %v1223
      %v1256 = vmul.f32 %v1224, %v1224
      %v1257 = vmul.f32 %v1225, %v1225
      %v1258 = vmul.f32 %v1226, %v1226
      %v1259 = vmul.f32 %v1227, %v1227
      %v1260 = vmul.f32 %v1228, %v1228
      %v1261 = vmul.f32 %v1229, %v1229
      %v1262 = vmul.f32 %v1230, %v1230
      %v1263 = vmul.f32 %v1231, %v1231
      %v1264 = vmul.f32 %v1232, %v1232
      %v1265 = vmul.f32 %v1233, %v1233
      %v1266 = vmul.f32 %v1234, %v1234
      %v1267 = vmul.f32 %v1235, %v1235
      %v1268 = vmul.f32 %v1236, %v1236
      %v1269 = vmul.f32 %v1237, %v1237
      %v1270 = vmul.f32 %v1238, %v1238
      %v1271 = vmul.f32 %v1239, %v1239
      %v1272 = vmul.f32 %v1240, %v1240
      %v1273 = vmul.f32 %v1241, %v1241
      %v1274 = vmul.f32 %v1242, %v1242
      %v1275 = vmul.f32 %v1243, %v1243
      %v1276 = vmul.f32 %v1244, %v1244
      %v1277 = vmul.f32 %v1245, 0.00022905065
      %v1278 = vmul.f32 %v1246, 0.00022905065
      %v1279 = vmul.f32 %v1247, 0.00022905065
      %v1280 = vmul.f32 %v1248, 0.00022905065
      %v1281 = vmul.f32 %v1249, 0.00022905065
      %v1282 = vmul.f32 %v1250, 0.00022905065
      %v1283 = vmul.f32 %v1251, 0.00022905065
      %v1284 = vmul.f32 %v1252, 0.00022905065
      %v1285 = vmul.f32 %v1253, 0.00022905065
      %v1286 = vmul.f32 %v1254, 0.00022905065
      %v1287 = vmul.f32 %v1255, 0.00022905065
      %v1288 = vmul.f32 %v1256, 0.00022905065
      %v1289 = vmul.f32 %v1257, 0.00022905065
      %v1290 = vmul.f32 %v1258, 0.00022905065
      %v1291 = vmul.f32 %v1259, 0.00022905065
      %v1292 = vmul.f32 %v1260, 0.00022905065
      %v1293 = vmul.f32 %v1261, 0.00022905065
      %v1294 = vmul.f32 %v1262, 0.00022905065
      %v1295 = vmul.f32 %v1263, 0.00022905065
      %v1296 = vmul.f32 %v1264, 0.00022905065
      %v1297 = vmul.f32 %v1265, 0.00022905065
      %v1298 = vmul.f32 %v1266, 0.00022905065
      %v1299 = vmul.f32 %v1267, 0.00022905065
      %v1300 = vmul.f32 %v1268, 0.00022905065
      %v1301 = vmul.f32 %v1269, 0.00022905065
      %v1302 = vmul.f32 %v1270, 0.00022905065
      %v1303 = vmul.f32 %v1271, 0.00022905065
      %v1304 = vmul.f32 %v1272, 0.00022905065
      %v1305 = vmul.f32 %v1273, 0.00022905065
      %v1306 = vmul.f32 %v1274, 0.00022905065
      %v1307 = vmul.f32 %v1275, 0.00022905065
      %v1308 = vmul.f32 %v1276, 0.00022905065
      %v1309 = vadd.f32 %v1277, 0.003408291
      %v1310 = vadd.f32 %v1278, 0.003408291
      %v1311 = vadd.f32 %v1279, 0.003408291
      %v1312 = vadd.f32 %v1280, 0.003408291
      %v1313 = vadd.f32 %v1281, 0.003408291
      %v1314 = vadd.f32 %v1282, 0.003408291
      %v1315 = vadd.f32 %v1283, 0.003408291
      %v1316 = vadd.f32 %v1284, 0.003408291
      %v1317 = vadd.f32 %v1285, 0.003408291
      %v1318 = vadd.f32 %v1286, 0.003408291
      %v1319 = vadd.f32 %v1287, 0.003408291
      %v1320 = vadd.f32 %v1288, 0.003408291
      %v1321 = vadd.f32 %v1289, 0.003408291
      %v1322 = vadd.f32 %v1290, 0.003408291
      %v1323 = vadd.f32 %v1291, 0.003408291
      %v1324 = vadd.f32 %v1292, 0.003408291
      %v1325 = vadd.f32 %v1293, 0.003408291
      %v1326 = vadd.f32 %v1294, 0.003408291
      %v1327 = vadd.f32 %v1295, 0.003408291
      %v1328 = vadd.f32 %v1296, 0.003408291
      %v1329 = vadd.f32 %v1297, 0.003408291
      %v1330 = vadd.f32 %v1298, 0.003408291
      %v1331 = vadd.f32 %v1299, 0.003408291
      %v1332 = vadd.f32 %v1300, 0.003408291
      %v1333 = vadd.f32 %v1301, 0.003408291
      %v1334 = vadd.f32 %v1302, 0.003408291
      %v1335 = vadd.f32 %v1303, 0.003408291
      %v1336 = vadd.f32 %v1304, 0.003408291
      %v1337 = vadd.f32 %v1305, 0.003408291
      %v1338 = vadd.f32 %v1306, 0.003408291
      %v1339 = vadd.f32 %v1307, 0.003408291
      %v1340 = vadd.f32 %v1308, 0.003408291
      %v1341 = vmul.f32 %v1309, %v1245
      %v1342 = vmul.f32 %v1310, %v1246
      %v1343 = vmul.f32 %v1311, %v1247
      %v1344 = vmul.f32 %v1312, %v1248
      %v1345 = vmul.f32 %v1313, %v1249
      %v1346 = vmul.f32 %v1314, %v1250
      %v1347 = vmul.f32 %v1315, %v1251
      %v1348 = vmul.f32 %v1316, %v1252
      %v1349 = vmul.f32 %v1317, %v1253
      %v1350 = vmul.f32 %v1318, %v1254
      %v1351 = vmul.f32 %v1319, %v1255
      %v1352 = vmul.f32 %v1320, %v1256
      %v1353 = vmul.f32 %v1321, %v1257
      %v1354 = vmul.f32 %v1322, %v1258
      %v1355 = vmul.f32 %v1323, %v1259
      %v1356 = vmul.f32 %v1324, %v1260
      %v1357 = vmul.f32 %v1325, %v1261
      %v1358 = vmul.f32 %v1326, %v1262
      %v1359 = vmul.f32 %v1327, %v1263
      %v1360 = vmul.f32 %v1328, %v1264
      %v1361 = vmul.f32 %v1329, %v1265
      %v1362 = vmul.f32 %v1330, %v1266
      %v1363 = vmul.f32 %v1331, %v1267
      %v1364 = vmul.f32 %v1332, %v1268
      %v1365 = vmul.f32 %v1333, %v1269
      %v1366 = vmul.f32 %v1334, %v1270
      %v1367 = vmul.f32 %v1335, %v1271
      %v1368 = vmul.f32 %v1336, %v1272
      %v1369 = vmul.f32 %v1337, %v1273
      %v1370 = vmul.f32 %v1338, %v1274
      %v1371 = vmul.f32 %v1339, %v1275
      %v1372 = vmul.f32 %v1340, %v1276
      %v1373 = vadd.f32 %v1341, 0.050955694
      %v1374 = vadd.f32 %v1342, 0.050955694
      %v1375 = vadd.f32 %v1343, 0.050955694
      %v1376 = vadd.f32 %v1344, 0.050955694
      %v1377 = vadd.f32 %v1345, 0.050955694
      %v1378 = vadd.f32 %v1346, 0.050955694
      %v1379 = vadd.f32 %v1347, 0.050955694
      %v1380 = vadd.f32 %v1348, 0.050955694
      %v1381 = vadd.f32 %v1349, 0.050955694
      %v1382 = vadd.f32 %v1350, 0.050955694
      %v1383 = vadd.f32 %v1351, 0.050955694
      %v1384 = vadd.f32 %v1352, 0.050955694
      %v1385 = vadd.f32 %v1353, 0.050955694
      %v1386 = vadd.f32 %v1354, 0.050955694
      %v1387 = vadd.f32 %v1355, 0.050955694
      %v1388 = vadd.f32 %v1356, 0.050955694
      %v1389 = vadd.f32 %v1357, 0.050955694
      %v1390 = vadd.f32 %v1358, 0.050955694
      %v1391 = vadd.f32 %v1359, 0.050955694
      %v1392 = vadd.f32 %v1360, 0.050955694
      %v1393 = vadd.f32 %v1361, 0.050955694
      %v1394 = vadd.f32 %v1362, 0.050955694
      %v1395 = vadd.f32 %v1363, 0.050955694
      %v1396 = vadd.f32 %v1364, 0.050955694
      %v1397 = vadd.f32 %v1365, 0.050955694
      %v1398 = vadd.f32 %v1366, 0.050955694
      %v1399 = vadd.f32 %v1367, 0.050955694
      %v1400 = vadd.f32 %v1368, 0.050955694
      %v1401 = vadd.f32 %v1369, 0.050955694
      %v1402 = vadd.f32 %v1370, 0.050955694
      %v1403 = vadd.f32 %v1371, 0.050955694
      %v1404 = vadd.f32 %v1372, 0.050955694
      %v1405 = vmul.f32 %v1373, %v1245
      %v1406 = vmul.f32 %v1374, %v1246
      %v1407 = vmul.f32 %v1375, %v1247
      %v1408 = vmul.f32 %v1376, %v1248
      %v1409 = vmul.f32 %v1377, %v1249
      %v1410 = vmul.f32 %v1378, %v1250
      %v1411 = vmul.f32 %v1379, %v1251
      %v1412 = vmul.f32 %v1380, %v1252
      %v1413 = vmul.f32 %v1381, %v1253
      %v1414 = vmul.f32 %v1382, %v1254
      %v1415 = vmul.f32 %v1383, %v1255
      %v1416 = vmul.f32 %v1384, %v1256
      %v1417 = vmul.f32 %v1385, %v1257
      %v1418 = vmul.f32 %v1386, %v1258
      %v1419 = vmul.f32 %v1387, %v1259
      %v1420 = vmul.f32 %v1388, %v1260
      %v1421 = vmul.f32 %v1389, %v1261
      %v1422 = vmul.f32 %v1390, %v1262
      %v1423 = vmul.f32 %v1391, %v1263
      %v1424 = vmul.f32 %v1392, %v1264
      %v1425 = vmul.f32 %v1393, %v1265
      %v1426 = vmul.f32 %v1394, %v1266
      %v1427 = vmul.f32 %v1395, %v1267
      %v1428 = vmul.f32 %v1396, %v1268
      %v1429 = vmul.f32 %v1397, %v1269
      %v1430 = vmul.f32 %v1398, %v1270
      %v1431 = vmul.f32 %v1399, %v1271
      %v1432 = vmul.f32 %v1400, %v1272
      %v1433 = vmul.f32 %v1401, %v1273
      %v1434 = vmul.f32 %v1402, %v1274
      %v1435 = vmul.f32 %v1403, %v1275
      %v1436 = vmul.f32 %v1404, %v1276
      %v1437 = vadd.f32 %v1405, 0.18520832
      %v1438 = vadd.f32 %v1406, 0.18520832
      %v1439 = vadd.f32 %v1407, 0.18520832
      %v1440 = vadd.f32 %v1408, 0.18520832
      %v1441 = vadd.f32 %v1409, 0.18520832
      %v1442 = vadd.f32 %v1410, 0.18520832
      %v1443 = vadd.f32 %v1411, 0.18520832
      %v1444 = vadd.f32 %v1412, 0.18520832
      %v1445 = vadd.f32 %v1413, 0.18520832
      %v1446 = vadd.f32 %v1414, 0.18520832
      %v1447 = vadd.f32 %v1415, 0.18520832
      %v1448 = vadd.f32 %v1416, 0.18520832
      %v1449 = vadd.f32 %v1417, 0.18520832
      %v1450 = vadd.f32 %v1418, 0.18520832
      %v1451 = vadd.f32 %v1419, 0.18520832
      %v1452 = vadd.f32 %v1420, 0.18520832
      %v1453 = vadd.f32 %v1421, 0.18520832
      %v1454 = vadd.f32 %v1422, 0.18520832
      %v1455 = vadd.f32 %v1423, 0.18520832
      %v1456 = vadd.f32 %v1424, 0.18520832
      %v1457 = vadd.f32 %v1425, 0.18520832
      %v1458 = vadd.f32 %v1426, 0.18520832
      %v1459 = vadd.f32 %v1427, 0.18520832
      %v1460 = vadd.f32 %v1428, 0.18520832
      %v1461 = vadd.f32 %v1429, 0.18520832
      %v1462 = vadd.f32 %v1430, 0.18520832
      %v1463 = vadd.f32 %v1431, 0.18520832
      %v1464 = vadd.f32 %v1432, 0.18520832
      %v1465 = vadd.f32 %v1433, 0.18520832
      %v1466 = vadd.f32 %v1434, 0.18520832
      %v1467 = vadd.f32 %v1435, 0.18520832
      %v1468 = vadd.f32 %v1436, 0.18520832
      %v1469 = vmul.f32 %v1437, %v1245
      %v1470 = vmul.f32 %v1438, %v1246
      %v1471 = vmul.f32 %v1439, %v1247
      %v1472 = vmul.f32 %v1440, %v1248
      %v1473 = vmul.f32 %v1441, %v1249
      %v1474 = vmul.f32 %v1442, %v1250
      %v1475 = vmul.f32 %v1443, %v1251
      %v1476 = vmul.f32 %v1444, %v1252
      %v1477 = vmul.f32 %v1445, %v1253
      %v1478 = vmul.f32 %v1446, %v1254
      %v1479 = vmul.f32 %v1447, %v1255
      %v1480 = vmul.f32 %v1448, %v1256
      %v1481 = vmul.f32 %v1449, %v1257
      %v1482 = vmul.f32 %v1450, %v1258
      %v1483 = vmul.f32 %v1451, %v1259
      %v1484 = vmul.f32 %v1452, %v1260
      %v1485 = vmul.f32 %v1453, %v1261
      %v1486 = vmul.f32 %v1454, %v1262
      %v1487 = vmul.f32 %v1455, %v1263
      %v1488 = vmul.f32 %v1456, %v1264
      %v1489 = vmul.f32 %v1457, %v1265
      %v1490 = vmul.f32 %v1458, %v1266
      %v1491 = vmul.f32 %v1459, %v1267
      %v1492 = vmul.f32 %v1460, %v1268
      %v1493 = vmul.f32 %v1461, %v1269
      %v1494 = vmul.f32 %v1462, %v1270
      %v1495 = vmul.f32 %v1463, %v1271
      %v1496 = vmul.f32 %v1464, %v1272
      %v1497 = vmul.f32 %v1465, %v1273
      %v1498 = vmul.f32 %v1466, %v1274
      %v1499 = vmul.f32 %v1467, %v1275
      %v1500 = vmul.f32 %v1468, %v1276
      %v1501 = vadd.f32 %v1469, 1.1283791
      %v1502 = vadd.f32 %v1470, 1.1283791
      %v1503 = vadd.f32 %v1471, 1.1283791
      %v1504 = vadd.f32 %v1472, 1.1283791
      %v1505 = vadd.f32 %v1473, 1.1283791
      %v1506 = vadd.f32 %v1474, 1.1283791
      %v1507 = vadd.f32 %v1475, 1.1283791
      %v1508 = vadd.f32 %v1476, 1.1283791
      %v1509 = vadd.f32 %v1477, 1.1283791
      %v1510 = vadd.f32 %v1478, 1.1283791
      %v1511 = vadd.f32 %v1479, 1.1283791
      %v1512 = vadd.f32 %v1480, 1.1283791
      %v1513 = vadd.f32 %v1481, 1.1283791
      %v1514 = vadd.f32 %v1482, 1.1283791
      %v1515 = vadd.f32 %v1483, 1.1283791
      %v1516 = vadd.f32 %v1484, 1.1283791
      %v1517 = vadd.f32 %v1485, 1.1283791
      %v1518 = vadd.f32 %v1486, 1.1283791
      %v1519 = vadd.f32 %v1487, 1.1283791
      %v1520 = vadd.f32 %v1488, 1.1283791
      %v1521 = vadd.f32 %v1489, 1.1283791
      %v1522 = vadd.f32 %v1490, 1.1283791
      %v1523 = vadd.f32 %v1491, 1.1283791
      %v1524 = vadd.f32 %v1492, 1.1283791
      %v1525 = vadd.f32 %v1493, 1.1283791
      %v1526 = vadd.f32 %v1494, 1.1283791
      %v1527 = vadd.f32 %v1495, 1.1283791
      %v1528 = vadd.f32 %v1496, 1.1283791
      %v1529 = vadd.f32 %v1497, 1.1283791
      %v1530 = vadd.f32 %v1498, 1.1283791
      %v1531 = vadd.f32 %v1499, 1.1283791
      %v1532 = vadd.f32 %v1500, 1.1283791
      %v1533 = vmul.f32 %v1245, -1.1791603e-07
      %v1534 = vmul.f32 %v1246, -1.1791603e-07
      %v1535 = vmul.f32 %v1247, -1.1791603e-07
      %v1536 = vmul.f32 %v1248, -1.1791603e-07
      %v1537 = vmul.f32 %v1249, -1.1791603e-07
      %v1538 = vmul.f32 %v1250, -1.1791603e-07
      %v1539 = vmul.f32 %v1251, -1.1791603e-07
      %v1540 = vmul.f32 %v1252, -1.1791603e-07
      %v1541 = vmul.f32 %v1253, -1.1791603e-07
      %v1542 = vmul.f32 %v1254, -1.1791603e-07
      %v1543 = vmul.f32 %v1255, -1.1791603e-07
      %v1544 = vmul.f32 %v1256, -1.1791603e-07
      %v1545 = vmul.f32 %v1257, -1.1791603e-07
      %v1546 = vmul.f32 %v1258, -1.1791603e-07
      %v1547 = vmul.f32 %v1259, -1.1791603e-07
      %v1548 = vmul.f32 %v1260, -1.1791603e-07
      %v1549 = vmul.f32 %v1261, -1.1791603e-07
      %v1550 = vmul.f32 %v1262, -1.1791603e-07
      %v1551 = vmul.f32 %v1263, -1.1791603e-07
      %v1552 = vmul.f32 %v1264, -1.1791603e-07
      %v1553 = vmul.f32 %v1265, -1.1791603e-07
      %v1554 = vmul.f32 %v1266, -1.1791603e-07
      %v1555 = vmul.f32 %v1267, -1.1791603e-07
      %v1556 = vmul.f32 %v1268, -1.1791603e-07
      %v1557 = vmul.f32 %v1269, -1.1791603e-07
      %v1558 = vmul.f32 %v1270, -1.1791603e-07
      %v1559 = vmul.f32 %v1271, -1.1791603e-07
      %v1560 = vmul.f32 %v1272, -1.1791603e-07
      %v1561 = vmul.f32 %v1273, -1.1791603e-07
      %v1562 = vmul.f32 %v1274, -1.1791603e-07
      %v1563 = vmul.f32 %v1275, -1.1791603e-07
      %v1564 = vmul.f32 %v1276, -1.1791603e-07
      %v1565 = vadd.f32 %v1533, 2.3547966e-05
      %v1566 = vadd.f32 %v1534, 2.3547966e-05
      %v1567 = vadd.f32 %v1535, 2.3547966e-05
      %v1568 = vadd.f32 %v1536, 2.3547966e-05
      %v1569 = vadd.f32 %v1537, 2.3547966e-05
      %v1570 = vadd.f32 %v1538, 2.3547966e-05
      %v1571 = vadd.f32 %v1539, 2.3547966e-05
      %v1572 = vadd.f32 %v1540, 2.3547966e-05
      %v1573 = vadd.f32 %v1541, 2.3547966e-05
      %v1574 = vadd.f32 %v1542, 2.3547966e-05
      %v1575 = vadd.f32 %v1543, 2.3547966e-05
      %v1576 = vadd.f32 %v1544, 2.3547966e-05
      %v1577 = vadd.f32 %v1545, 2.3547966e-05
      %v1578 = vadd.f32 %v1546, 2.3547966e-05
      %v1579 = vadd.f32 %v1547, 2.3547966e-05
      %v1580 = vadd.f32 %v1548, 2.3547966e-05
      %v1581 = vadd.f32 %v1549, 2.3547966e-05
      %v1582 = vadd.f32 %v1550, 2.3547966e-05
      %v1583 = vadd.f32 %v1551, 2.3547966e-05
      %v1584 = vadd.f32 %v1552, 2.3547966e-05
      %v1585 = vadd.f32 %v1553, 2.3547966e-05
      %v1586 = vadd.f32 %v1554, 2.3547966e-05
      %v1587 = vadd.f32 %v1555, 2.3547966e-05
      %v1588 = vadd.f32 %v1556, 2.3547966e-05
      %v1589 = vadd.f32 %v1557, 2.3547966e-05
      %v1590 = vadd.f32 %v1558, 2.3547966e-05
      %v1591 = vadd.f32 %v1559, 2.3547966e-05
      %v1592 = vadd.f32 %v1560, 2.3547966e-05
      %v1593 = vadd.f32 %v1561, 2.3547966e-05
      %v1594 = vadd.f32 %v1562, 2.3547966e-05
      %v1595 = vadd.f32 %v1563, 2.3547966e-05
      %v1596 = vadd.f32 %v1564, 2.3547966e-05
      %v1597 = vmul.f32 %v1565, %v1245
      %v1598 = vmul.f32 %v1566, %v1246
      %v1599 = vmul.f32 %v1567, %v1247
      %v1600 = vmul.f32 %v1568, %v1248
      %v1601 = vmul.f32 %v1569, %v1249
      %v1602 = vmul.f32 %v1570, %v1250
      %v1603 = vmul.f32 %v1571, %v1251
      %v1604 = vmul.f32 %v1572, %v1252
      %v1605 = vmul.f32 %v1573, %v1253
      %v1606 = vmul.f32 %v1574, %v1254
      %v1607 = vmul.f32 %v1575, %v1255
      %v1608 = vmul.f32 %v1576, %v1256
      %v1609 = vmul.f32 %v1577, %v1257
      %v1610 = vmul.f32 %v1578, %v1258
      %v1611 = vmul.f32 %v1579, %v1259
      %v1612 = vmul.f32 %v1580, %v1260
      %v1613 = vmul.f32 %v1581, %v1261
      %v1614 = vmul.f32 %v1582, %v1262
      %v1615 = vmul.f32 %v1583, %v1263
      %v1616 = vmul.f32 %v1584, %v1264
      %v1617 = vmul.f32 %v1585, %v1265
      %v1618 = vmul.f32 %v1586, %v1266
      %v1619 = vmul.f32 %v1587, %v1267
      %v1620 = vmul.f32 %v1588, %v1268
      %v1621 = vmul.f32 %v1589, %v1269
      %v1622 = vmul.f32 %v1590, %v1270
      %v1623 = vmul.f32 %v1591, %v1271
      %v1624 = vmul.f32 %v1592, %v1272
      %v1625 = vmul.f32 %v1593, %v1273
      %v1626 = vmul.f32 %v1594, %v1274
      %v1627 = vmul.f32 %v1595, %v1275
      %v1628 = vmul.f32 %v1596, %v1276
      %v1629 = vadd.f32 %v1597, 0.0010179626
      %v1630 = vadd.f32 %v1598, 0.0010179626
      %v1631 = vadd.f32 %v1599, 0.0010179626
      %v1632 = vadd.f32 %v1600, 0.0010179626
      %v1633 = vadd.f32 %v1601, 0.0010179626
      %v1634 = vadd.f32 %v1602, 0.0010179626
      %v1635 = vadd.f32 %v1603, 0.0010179626
      %v1636 = vadd.f32 %v1604, 0.0010179626
      %v1637 = vadd.f32 %v1605, 0.0010179626
      %v1638 = vadd.f32 %v1606, 0.0010179626
      %v1639 = vadd.f32 %v1607, 0.0010179626
      %v1640 = vadd.f32 %v1608, 0.0010179626
      %v1641 = vadd.f32 %v1609, 0.0010179626
      %v1642 = vadd.f32 %v1610, 0.0010179626
      %v1643 = vadd.f32 %v1611, 0.0010179626
      %v1644 = vadd.f32 %v1612, 0.0010179626
      %v1645 = vadd.f32 %v1613, 0.0010179626
      %v1646 = vadd.f32 %v1614, 0.0010179626
      %v1647 = vadd.f32 %v1615, 0.0010179626
      %v1648 = vadd.f32 %v1616, 0.0010179626
      %v1649 = vadd.f32 %v1617, 0.0010179626
      %v1650 = vadd.f32 %v1618, 0.0010179626
      %v1651 = vadd.f32 %v1619, 0.0010179626
      %v1652 = vadd.f32 %v1620, 0.0010179626
      %v1653 = vadd.f32 %v1621, 0.0010179626
      %v1654 = vadd.f32 %v1622, 0.0010179626
      %v1655 = vadd.f32 %v1623, 0.0010179626
      %v1656 = vadd.f32 %v1624, 0.0010179626
      %v1657 = vadd.f32 %v1625, 0.0010179626
      %v1658 = vadd.f32 %v1626, 0.0010179626
      %v1659 = vadd.f32 %v1627, 0.0010179626
      %v1660 = vadd.f32 %v1628, 0.0010179626
      %v1661 = vmul.f32 %v1629, %v1245
      %v1662 = vmul.f32 %v1630, %v1246
      %v1663 = vmul.f32 %v1631, %v1247
      %v1664 = vmul.f32 %v1632, %v1248
      %v1665 = vmul.f32 %v1633, %v1249
      %v1666 = vmul.f32 %v1634, %v1250
      %v1667 = vmul.f32 %v1635, %v1251
      %v1668 = vmul.f32 %v1636, %v1252
      %v1669 = vmul.f32 %v1637, %v1253
      %v1670 = vmul.f32 %v1638, %v1254
      %v1671 = vmul.f32 %v1639, %v1255
      %v1672 = vmul.f32 %v1640, %v1256
      %v1673 = vmul.f32 %v1641, %v1257
      %v1674 = vmul.f32 %v1642, %v1258
      %v1675 = vmul.f32 %v1643, %v1259
      %v1676 = vmul.f32 %v1644, %v1260
      %v1677 = vmul.f32 %v1645, %v1261
      %v1678 = vmul.f32 %v1646, %v1262
      %v1679 = vmul.f32 %v1647, %v1263
      %v1680 = vmul.f32 %v1648, %v1264
      %v1681 = vmul.f32 %v1649, %v1265
      %v1682 = vmul.f32 %v1650, %v1266
      %v1683 = vmul.f32 %v1651, %v1267
      %v1684 = vmul.f32 %v1652, %v1268
      %v1685 = vmul.f32 %v1653, %v1269
      %v1686 = vmul.f32 %v1654, %v1270
      %v1687 = vmul.f32 %v1655, %v1271
      %v1688 = vmul.f32 %v1656, %v1272
      %v1689 = vmul.f32 %v1657, %v1273
      %v1690 = vmul.f32 %v1658, %v1274
      %v1691 = vmul.f32 %v1659, %v1275
      %v1692 = vmul.f32 %v1660, %v1276
      %v1693 = vadd.f32 %v1661, 0.01407047
      %v1694 = vadd.f32 %v1662, 0.01407047
      %v1695 = vadd.f32 %v1663, 0.01407047
      %v1696 = vadd.f32 %v1664, 0.01407047
      %v1697 = vadd.f32 %v1665, 0.01407047
      %v1698 = vadd.f32 %v1666, 0.01407047
      %v1699 = vadd.f32 %v1667, 0.01407047
      %v1700 = vadd.f32 %v1668, 0.01407047
      %v1701 = vadd.f32 %v1669, 0.01407047
      %v1702 = vadd.f32 %v1670, 0.01407047
      %v1703 = vadd.f32 %v1671, 0.01407047
      %v1704 = vadd.f32 %v1672, 0.01407047
      %v1705 = vadd.f32 %v1673, 0.01407047
      %v1706 = vadd.f32 %v1674, 0.01407047
      %v1707 = vadd.f32 %v1675, 0.01407047
      %v1708 = vadd.f32 %v1676, 0.01407047
      %v1709 = vadd.f32 %v1677, 0.01407047
      %v1710 = vadd.f32 %v1678, 0.01407047
      %v1711 = vadd.f32 %v1679, 0.01407047
      %v1712 = vadd.f32 %v1680, 0.01407047
      %v1713 = vadd.f32 %v1681, 0.01407047
      %v1714 = vadd.f32 %v1682, 0.01407047
      %v1715 = vadd.f32 %v1683, 0.01407047
      %v1716 = vadd.f32 %v1684, 0.01407047
      %v1717 = vadd.f32 %v1685, 0.01407047
      %v1718 = vadd.f32 %v1686, 0.01407047
      %v1719 = vadd.f32 %v1687, 0.01407047
      %v1720 = vadd.f32 %v1688, 0.01407047
      %v1721 = vadd.f32 %v1689, 0.01407047
      %v1722 = vadd.f32 %v1690, 0.01407047
      %v1723 = vadd.f32 %v1691, 0.01407047
      %v1724 = vadd.f32 %v1692, 0.01407047
      %v1725 = vmul.f32 %v1693, %v1245
      %v1726 = vmul.f32 %v1694, %v1246
      %v1727 = vmul.f32 %v1695, %v1247
      %v1728 = vmul.f32 %v1696, %v1248
      %v1729 = vmul.f32 %v1697, %v1249
      %v1730 = vmul.f32 %v1698, %v1250
      %v1731 = vmul.f32 %v1699, %v1251
      %v1732 = vmul.f32 %v1700, %v1252
      %v1733 = vmul.f32 %v1701, %v1253
      %v1734 = vmul.f32 %v1702, %v1254
      %v1735 = vmul.f32 %v1703, %v1255
      %v1736 = vmul.f32 %v1704, %v1256
      %v1737 = vmul.f32 %v1705, %v1257
      %v1738 = vmul.f32 %v1706, %v1258
      %v1739 = vmul.f32 %v1707, %v1259
      %v1740 = vmul.f32 %v1708, %v1260
      %v1741 = vmul.f32 %v1709, %v1261
      %v1742 = vmul.f32 %v1710, %v1262
      %v1743 = vmul.f32 %v1711, %v1263
      %v1744 = vmul.f32 %v1712, %v1264
      %v1745 = vmul.f32 %v1713, %v1265
      %v1746 = vmul.f32 %v1714, %v1266
      %v1747 = vmul.f32 %v1715, %v1267
      %v1748 = vmul.f32 %v1716, %v1268
      %v1749 = vmul.f32 %v1717, %v1269
      %v1750 = vmul.f32 %v1718, %v1270
      %v1751 = vmul.f32 %v1719, %v1271
      %v1752 = vmul.f32 %v1720, %v1272
      %v1753 = vmul.f32 %v1721, %v1273
      %v1754 = vmul.f32 %v1722, %v1274
      %v1755 = vmul.f32 %v1723, %v1275
      %v1756 = vmul.f32 %v1724, %v1276
      %v1757 = vadd.f32 %v1725, 0.11098505
      %v1758 = vadd.f32 %v1726, 0.11098505
      %v1759 = vadd.f32 %v1727, 0.11098505
      %v1760 = vadd.f32 %v1728, 0.11098505
      %v1761 = vadd.f32 %v1729, 0.11098505
      %v1762 = vadd.f32 %v1730, 0.11098505
      %v1763 = vadd.f32 %v1731, 0.11098505
      %v1764 = vadd.f32 %v1732, 0.11098505
      %v1765 = vadd.f32 %v1733, 0.11098505
      %v1766 = vadd.f32 %v1734, 0.11098505
      %v1767 = vadd.f32 %v1735, 0.11098505
      %v1768 = vadd.f32 %v1736, 0.11098505
      %v1769 = vadd.f32 %v1737, 0.11098505
      %v1770 = vadd.f32 %v1738, 0.11098505
      %v1771 = vadd.f32 %v1739, 0.11098505
      %v1772 = vadd.f32 %v1740, 0.11098505
      %v1773 = vadd.f32 %v1741, 0.11098505
      %v1774 = vadd.f32 %v1742, 0.11098505
      %v1775 = vadd.f32 %v1743, 0.11098505
      %v1776 = vadd.f32 %v1744, 0.11098505
      %v1777 = vadd.f32 %v1745, 0.11098505
      %v1778 = vadd.f32 %v1746, 0.11098505
      %v1779 = vadd.f32 %v1747, 0.11098505
      %v1780 = vadd.f32 %v1748, 0.11098505
      %v1781 = vadd.f32 %v1749, 0.11098505
      %v1782 = vadd.f32 %v1750, 0.11098505
      %v1783 = vadd.f32 %v1751, 0.11098505
      %v1784 = vadd.f32 %v1752, 0.11098505
      %v1785 = vadd.f32 %v1753, 0.11098505
      %v1786 = vadd.f32 %v1754, 0.11098505
      %v1787 = vadd.f32 %v1755, 0.11098505
      %v1788 = vadd.f32 %v1756, 0.11098505
      %v1789 = vmul.f32 %v1757, %v1245
      %v1790 = vmul.f32 %v1758, %v1246
      %v1791 = vmul.f32 %v1759, %v1247
      %v1792 = vmul.f32 %v1760, %v1248
      %v1793 = vmul.f32 %v1761, %v1249
      %v1794 = vmul.f32 %v1762, %v1250
      %v1795 = vmul.f32 %v1763, %v1251
      %v1796 = vmul.f32 %v1764, %v1252
      %v1797 = vmul.f32 %v1765, %v1253
      %v1798 = vmul.f32 %v1766, %v1254
      %v1799 = vmul.f32 %v1767, %v1255
      %v1800 = vmul.f32 %v1768, %v1256
      %v1801 = vmul.f32 %v1769, %v1257
      %v1802 = vmul.f32 %v1770, %v1258
      %v1803 = vmul.f32 %v1771, %v1259
      %v1804 = vmul.f32 %v1772, %v1260
      %v1805 = vmul.f32 %v1773, %v1261
      %v1806 = vmul.f32 %v1774, %v1262
      %v1807 = vmul.f32 %v1775, %v1263
      %v1808 = vmul.f32 %v1776, %v1264
      %v1809 = vmul.f32 %v1777, %v1265
      %v1810 = vmul.f32 %v1778, %v1266
      %v1811 = vmul.f32 %v1779, %v1267
      %v1812 = vmul.f32 %v1780, %v1268
      %v1813 = vmul.f32 %v1781, %v1269
      %v1814 = vmul.f32 %v1782, %v1270
      %v1815 = vmul.f32 %v1783, %v1271
      %v1816 = vmul.f32 %v1784, %v1272
      %v1817 = vmul.f32 %v1785, %v1273
      %v1818 = vmul.f32 %v1786, %v1274
      %v1819 = vmul.f32 %v1787, %v1275
      %v1820 = vmul.f32 %v1788, %v1276
      %v1821 = vadd.f32 %v1789, 0.49746925
      %v1822 = vadd.f32 %v1790, 0.49746925
      %v1823 = vadd.f32 %v1791, 0.49746925
      %v1824 = vadd.f32 %v1792, 0.49746925
      %v1825 = vadd.f32 %v1793, 0.49746925
      %v1826 = vadd.f32 %v1794, 0.49746925
      %v1827 = vadd.f32 %v1795, 0.49746925
      %v1828 = vadd.f32 %v1796, 0.49746925
      %v1829 = vadd.f32 %v1797, 0.49746925
      %v1830 = vadd.f32 %v1798, 0.49746925
      %v1831 = vadd.f32 %v1799, 0.49746925
      %v1832 = vadd.f32 %v1800, 0.49746925
      %v1833 = vadd.f32 %v1801, 0.49746925
      %v1834 = vadd.f32 %v1802, 0.49746925
      %v1835 = vadd.f32 %v1803, 0.49746925
      %v1836 = vadd.f32 %v1804, 0.49746925
      %v1837 = vadd.f32 %v1805, 0.49746925
      %v1838 = vadd.f32 %v1806, 0.49746925
      %v1839 = vadd.f32 %v1807, 0.49746925
      %v1840 = vadd.f32 %v1808, 0.49746925
      %v1841 = vadd.f32 %v1809, 0.49746925
      %v1842 = vadd.f32 %v1810, 0.49746925
      %v1843 = vadd.f32 %v1811, 0.49746925
      %v1844 = vadd.f32 %v1812, 0.49746925
      %v1845 = vadd.f32 %v1813, 0.49746925
      %v1846 = vadd.f32 %v1814, 0.49746925
      %v1847 = vadd.f32 %v1815, 0.49746925
      %v1848 = vadd.f32 %v1816, 0.49746925
      %v1849 = vadd.f32 %v1817, 0.49746925
      %v1850 = vadd.f32 %v1818, 0.49746925
      %v1851 = vadd.f32 %v1819, 0.49746925
      %v1852 = vadd.f32 %v1820, 0.49746925
      %v1853 = vmul.f32 %v1821, %v1245
      %v1854 = vmul.f32 %v1822, %v1246
      %v1855 = vmul.f32 %v1823, %v1247
      %v1856 = vmul.f32 %v1824, %v1248
      %v1857 = vmul.f32 %v1825, %v1249
      %v1858 = vmul.f32 %v1826, %v1250
      %v1859 = vmul.f32 %v1827, %v1251
      %v1860 = vmul.f32 %v1828, %v1252
      %v1861 = vmul.f32 %v1829, %v1253
      %v1862 = vmul.f32 %v1830, %v1254
      %v1863 = vmul.f32 %v1831, %v1255
      %v1864 = vmul.f32 %v1832, %v1256
      %v1865 = vmul.f32 %v1833, %v1257
      %v1866 = vmul.f32 %v1834, %v1258
      %v1867 = vmul.f32 %v1835, %v1259
      %v1868 = vmul.f32 %v1836, %v1260
      %v1869 = vmul.f32 %v1837, %v1261
      %v1870 = vmul.f32 %v1838, %v1262
      %v1871 = vmul.f32 %v1839, %v1263
      %v1872 = vmul.f32 %v1840, %v1264
      %v1873 = vmul.f32 %v1841, %v1265
      %v1874 = vmul.f32 %v1842, %v1266
      %v1875 = vmul.f32 %v1843, %v1267
      %v1876 = vmul.f32 %v1844, %v1268
      %v1877 = vmul.f32 %v1845, %v1269
      %v1878 = vmul.f32 %v1846, %v1270
      %v1879 = vmul.f32 %v1847, %v1271
      %v1880 = vmul.f32 %v1848, %v1272
      %v1881 = vmul.f32 %v1849, %v1273
      %v1882 = vmul.f32 %v1850, %v1274
      %v1883 = vmul.f32 %v1851, %v1275
      %v1884 = vmul.f32 %v1852, %v1276
      %v1885 = vadd.f32 %v1853, 1.0
      %v1886 = vadd.f32 %v1854, 1.0
      %v1887 = vadd.f32 %v1855, 1.0
      %v1888 = vadd.f32 %v1856, 1.0
      %v1889 = vadd.f32 %v1857, 1.0
      %v1890 = vadd.f32 %v1858, 1.0
      %v1891 = vadd.f32 %v1859, 1.0
      %v1892 = vadd.f32 %v1860, 1.0
      %v1893 = vadd.f32 %v1861, 1.0
      %v1894 = vadd.f32 %v1862, 1.0
      %v1895 = vadd.f32 %v1863, 1.0
      %v1896 = vadd.f32 %v1864, 1.0
      %v1897 = vadd.f32 %v1865, 1.0
      %v1898 = vadd.f32 %v1866, 1.0
      %v1899 = vadd.f32 %v1867, 1.0
      %v1900 = vadd.f32 %v1868, 1.0
      %v1901 = vadd.f32 %v1869, 1.0
      %v1902 = vadd.f32 %v1870, 1.0
      %v1903 = vadd.f32 %v1871, 1.0
      %v1904 = vadd.f32 %v1872, 1.0
      %v1905 = vadd.f32 %v1873, 1.0
      %v1906 = vadd.f32 %v1874, 1.0
      %v1907 = vadd.f32 %v1875, 1.0
      %v1908 = vadd.f32 %v1876, 1.0
      %v1909 = vadd.f32 %v1877, 1.0
      %v1910 = vadd.f32 %v1878, 1.0
      %v1911 = vadd.f32 %v1879, 1.0
      %v1912 = vadd.f32 %v1880, 1.0
      %v1913 = vadd.f32 %v1881, 1.0
      %v1914 = vadd.f32 %v1882, 1.0
      %v1915 = vadd.f32 %v1883, 1.0
      %v1916 = vadd.f32 %v1884, 1.0
      %v1917 = vrcp.pop %v1885
      %v1918 = vrcp.pop %v1886
      %v1919 = vrcp.pop %v1887
      %v1920 = vrcp.pop %v1888
      %v1921 = vrcp.pop %v1889
      %v1922 = vrcp.pop %v1890
      %v1923 = vrcp.pop %v1891
      %v1924 = vrcp.pop %v1892
      %v1925 = vrcp.pop %v1893
      %v1926 = vrcp.pop %v1894
      %v1927 = vrcp.pop %v1895
      %v1928 = vrcp.pop %v1896
      %v1929 = vrcp.pop %v1897
      %v1930 = vrcp.pop %v1898
      %v1931 = vrcp.pop %v1899
      %v1932 = vrcp.pop %v1900
      %v1933 = vrcp.pop %v1901
      %v1934 = vrcp.pop %v1902
      %v1935 = vrcp.pop %v1903
      %v1936 = vrcp.pop %v1904
      %v1937 = vrcp.pop %v1905
      %v1938 = vrcp.pop %v1906
      %v1939 = vrcp.pop %v1907
      %v1940 = vrcp.pop %v1908
      %v1941 = vrcp.pop %v1909
      %v1942 = vrcp.pop %v1910
      %v1943 = vrcp.pop %v1911
      %v1944 = vrcp.pop %v1912
      %v1945 = vrcp.pop %v1913
      %v1946 = vrcp.pop %v1914
      %v1947 = vrcp.pop %v1915
      %v1948 = vrcp.pop %v1916
      %v1949 = vmul.f32 %v1885, %v1917
      %v1950 = vmul.f32 %v1886, %v1918
      %v1951 = vmul.f32 %v1887, %v1919
      %v1952 = vmul.f32 %v1888, %v1920
      %v1953 = vmul.f32 %v1889, %v1921
      %v1954 = vmul.f32 %v1890, %v1922
      %v1955 = vmul.f32 %v1891, %v1923
      %v1956 = vmul.f32 %v1892, %v1924
      %v1957 = vmul.f32 %v1893, %v1925
      %v1958 = vmul.f32 %v1894, %v1926
      %v1959 = vmul.f32 %v1895, %v1927
      %v1960 = vmul.f32 %v1896, %v1928
      %v1961 = vmul.f32 %v1897, %v1929
      %v1962 = vmul.f32 %v1898, %v1930
      %v1963 = vmul.f32 %v1899, %v1931
      %v1964 = vmul.f32 %v1900, %v1932
      %v1965 = vmul.f32 %v1901, %v1933
      %v1966 = vmul.f32 %v1902, %v1934
      %v1967 = vmul.f32 %v1903, %v1935
      %v1968 = vmul.f32 %v1904, %v1936
      %v1969 = vmul.f32 %v1905, %v1937
      %v1970 = vmul.f32 %v1906, %v1938
      %v1971 = vmul.f32 %v1907, %v1939
      %v1972 = vmul.f32 %v1908, %v1940
      %v1973 = vmul.f32 %v1909, %v1941
      %v1974 = vmul.f32 %v1910, %v1942
      %v1975 = vmul.f32 %v1911, %v1943
      %v1976 = vmul.f32 %v1912, %v1944
      %v1977 = vmul.f32 %v1913, %v1945
      %v1978 = vmul.f32 %v1914, %v1946
      %v1979 = vmul.f32 %v1915, %v1947
      %v1980 = vmul.f32 %v1916, %v1948
      %v1981 = vsub.f32 2.0, %v1949
      %v1982 = vsub.f32 2.0, %v1950
      %v1983 = vsub.f32 2.0, %v1951
      %v1984 = vsub.f32 2.0, %v1952
      %v1985 = vsub.f32 2.0, %v1953
      %v1986 = vsub.f32 2.0, %v1954
      %v1987 = vsub.f32 2.0, %v1955
      %v1988 = vsub.f32 2.0, %v1956
      %v1989 = vsub.f32 2.0, %v1957
      %v1990 = vsub.f32 2.0, %v1958
      %v1991 = vsub.f32 2.0, %v1959
      %v1992 = vsub.f32 2.0, %v1960
      %v1993 = vsub.f32 2.0, %v1961
      %v1994 = vsub.f32 2.0, %v1962
      %v1995 = vsub.f32 2.0, %v1963
      %v1996 = vsub.f32 2.0, %v1964
      %v1997 = vsub.f32 2.0, %v1965
      %v1998 = vsub.f32 2.0, %v1966
      %v1999 = vsub.f32 2.0, %v1967
      %v2000 = vsub.f32 2.0, %v1968
      %v2001 = vsub.f32 2.0, %v1969
      %v2002 = vsub.f32 2.0, %v1970
      %v2003 = vsub.f32 2.0, %v1971
      %v2004 = vsub.f32 2.0, %v1972
      %v2005 = vsub.f32 2.0, %v1973
      %v2006 = vsub.f32 2.0, %v1974
      %v2007 = vsub.f32 2.0, %v1975
      %v2008 = vsub.f32 2.0, %v1976
      %v2009 = vsub.f32 2.0, %v1977
      %v2010 = vsub.f32 2.0, %v1978
      %v2011 = vsub.f32 2.0, %v1979
      %v2012 = vsub.f32 2.0, %v1980
      %v2013 = vmul.f32 %v1917, %v1981
      %v2014 = vmul.f32 %v1918, %v1982
      %v2015 = vmul.f32 %v1919, %v1983
      %v2016 = vmul.f32 %v1920, %v1984
      %v2017 = vmul.f32 %v1921, %v1985
      %v2018 = vmul.f32 %v1922, %v1986
      %v2019 = vmul.f32 %v1923, %v1987
      %v2020 = vmul.f32 %v1924, %v1988
      %v2021 = vmul.f32 %v1925, %v1989
      %v2022 = vmul.f32 %v1926, %v1990
      %v2023 = vmul.f32 %v1927, %v1991
      %v2024 = vmul.f32 %v1928, %v1992
      %v2025 = vmul.f32 %v1929, %v1993
      %v2026 = vmul.f32 %v1930, %v1994
      %v2027 = vmul.f32 %v1931, %v1995
      %v2028 = vmul.f32 %v1932, %v1996
      %v2029 = vmul.f32 %v1933, %v1997
      %v2030 = vmul.f32 %v1934, %v1998
      %v2031 = vmul.f32 %v1935, %v1999
      %v2032 = vmul.f32 %v1936, %v2000
      %v2033 = vmul.f32 %v1937, %v2001
      %v2034 = vmul.f32 %v1938, %v2002
      %v2035 = vmul.f32 %v1939, %v2003
      %v2036 = vmul.f32 %v1940, %v2004
      %v2037 = vmul.f32 %v1941, %v2005
      %v2038 = vmul.f32 %v1942, %v2006
      %v2039 = vmul.f32 %v1943, %v2007
      %v2040 = vmul.f32 %v1944, %v2008
      %v2041 = vmul.f32 %v1945, %v2009
      %v2042 = vmul.f32 %v1946, %v2010
      %v2043 = vmul.f32 %v1947, %v2011
      %v2044 = vmul.f32 %v1948, %v2012
      %v2045 = vmul.f32 %v1213, %v1501
      %v2046 = vmul.f32 %v1214, %v1502
      %v2047 = vmul.f32 %v1215, %v1503
      %v2048 = vmul.f32 %v1216, %v1504
      %v2049 = vmul.f32 %v1217, %v1505
      %v2050 = vmul.f32 %v1218, %v1506
      %v2051 = vmul.f32 %v1219, %v1507
      %v2052 = vmul.f32 %v1220, %v1508
      %v2053 = vmul.f32 %v1221, %v1509
      %v2054 = vmul.f32 %v1222, %v1510
      %v2055 = vmul.f32 %v1223, %v1511
      %v2056 = vmul.f32 %v1224, %v1512
      %v2057 = vmul.f32 %v1225, %v1513
      %v2058 = vmul.f32 %v1226, %v1514
      %v2059 = vmul.f32 %v1227, %v1515
      %v2060 = vmul.f32 %v1228, %v1516
      %v2061 = vmul.f32 %v1229, %v1517
      %v2062 = vmul.f32 %v1230, %v1518
      %v2063 = vmul.f32 %v1231, %v1519
      %v2064 = vmul.f32 %v1232, %v1520
      %v2065 = vmul.f32 %v1233, %v1521
      %v2066 = vmul.f32 %v1234, %v1522
      %v2067 = vmul.f32 %v1235, %v1523
      %v2068 = vmul.f32 %v1236, %v1524
      %v2069 = vmul.f32 %v1237, %v1525
      %v2070 = vmul.f32 %v1238, %v1526
      %v2071 = vmul.f32 %v1239, %v1527
      %v2072 = vmul.f32 %v1240, %v1528
      %v2073 = vmul.f32 %v1241, %v1529
      %v2074 = vmul.f32 %v1242, %v1530
      %v2075 = vmul.f32 %v1243, %v1531
      %v2076 = vmul.f32 %v1244, %v1532
      %v2077 = vmul.f32 %v2045, %v2013
      %v2078 = vmul.f32 %v2046, %v2014
      %v2079 = vmul.f32 %v2047, %v2015
      %v2080 = vmul.f32 %v2048, %v2016
      %v2081 = vmul.f32 %v2049, %v2017
      %v2082 = vmul.f32 %v2050, %v2018
      %v2083 = vmul.f32 %v2051, %v2019
      %v2084 = vmul.f32 %v2052, %v2020
      %v2085 = vmul.f32 %v2053, %v2021
      %v2086 = vmul.f32 %v2054, %v2022
      %v2087 = vmul.f32 %v2055, %v2023
      %v2088 = vmul.f32 %v2056, %v2024
      %v2089 = vmul.f32 %v2057, %v2025
      %v2090 = vmul.f32 %v2058, %v2026
      %v2091 = vmul.f32 %v2059, %v2027
      %v2092 = vmul.f32 %v2060, %v2028
      %v2093 = vmul.f32 %v2061, %v2029
      %v2094 = vmul.f32 %v2062, %v2030
      %v2095 = vmul.f32 %v2063, %v2031
      %v2096 = vmul.f32 %v2064, %v2032
      %v2097 = vmul.f32 %v2065, %v2033
      %v2098 = vmul.f32 %v2066, %v2034
      %v2099 = vmul.f32 %v2067, %v2035
      %v2100 = vmul.f32 %v2068, %v2036
      %v2101 = vmul.f32 %v2069, %v2037
      %v2102 = vmul.f32 %v2070, %v2038
      %v2103 = vmul.f32 %v2071, %v2039
      %v2104 = vmul.f32 %v2072, %v2040
      %v2105 = vmul.f32 %v2073, %v2041
      %v2106 = vmul.f32 %v2074, %v2042
      %v2107 = vmul.f32 %v2075, %v2043
      %v2108 = vmul.f32 %v2076, %v2044
      %v2109 = vadd.f32 %v2077, 1.0
      %v2110 = vadd.f32 %v2078, 1.0
      %v2111 = vadd.f32 %v2079, 1.0
      %v2112 = vadd.f32 %v2080, 1.0
      %v2113 = vadd.f32 %v2081, 1.0
      %v2114 = vadd.f32 %v2082, 1.0
      %v2115 = vadd.f32 %v2083, 1.0
      %v2116 = vadd.f32 %v2084, 1.0
      %v2117 = vadd.f32 %v2085, 1.0
      %v2118 = vadd.f32 %v2086, 1.0
      %v2119 = vadd.f32 %v2087, 1.0
      %v2120 = vadd.f32 %v2088, 1.0
      %v2121 = vadd.f32 %v2089, 1.0
      %v2122 = vadd.f32 %v2090, 1.0
      %v2123 = vadd.f32 %v2091, 1.0
      %v2124 = vadd.f32 %v2092, 1.0
      %v2125 = vadd.f32 %v2093, 1.0
      %v2126 = vadd.f32 %v2094, 1.0
      %v2127 = vadd.f32 %v2095, 1.0
      %v2128 = vadd.f32 %v2096, 1.0
      %v2129 = vadd.f32 %v2097, 1.0
      %v2130 = vadd.f32 %v2098, 1.0
      %v2131 = vadd.f32 %v2099, 1.0
      %v2132 = vadd.f32 %v2100, 1.0
      %v2133 = vadd.f32 %v2101, 1.0
      %v2134 = vadd.f32 %v2102, 1.0
      %v2135 = vadd.f32 %v2103, 1.0
      %v2136 = vadd.f32 %v2104, 1.0
      %v2137 = vadd.f32 %v2105, 1.0
      %v2138 = vadd.f32 %v2106, 1.0
      %v2139 = vadd.f32 %v2107, 1.0
      %v2140 = vadd.f32 %v2108, 1.0
      %v2141 = vmul.f32 %v1117, %v2109
      %v2142 = vmul.f32 %v1118, %v2110
      %v2143 = vmul.f32 %v1119, %v2111
      %v2144 = vmul.f32 %v1120, %v2112
      %v2145 = vmul.f32 %v1121, %v2113
      %v2146 = vmul.f32 %v1122, %v2114
      %v2147 = vmul.f32 %v1123, %v2115
      %v2148 = vmul.f32 %v1124, %v2116
      %v2149 = vmul.f32 %v1125, %v2117
      %v2150 = vmul.f32 %v1126, %v2118
      %v2151 = vmul.f32 %v1127, %v2119
      %v2152 = vmul.f32 %v1128, %v2120
      %v2153 = vmul.f32 %v1129, %v2121
      %v2154 = vmul.f32 %v1130, %v2122
      %v2155 = vmul.f32 %v1131, %v2123
      %v2156 = vmul.f32 %v1132, %v2124
      %v2157 = vmul.f32 %v1133, %v2125
      %v2158 = vmul.f32 %v1134, %v2126
      %v2159 = vmul.f32 %v1135, %v2127
      %v2160 = vmul.f32 %v1136, %v2128
      %v2161 = vmul.f32 %v1137, %v2129
      %v2162 = vmul.f32 %v1138, %v2130
      %v2163 = vmul.f32 %v1139, %v2131
      %v2164 = vmul.f32 %v1140, %v2132
      %v2165 = vmul.f32 %v1141, %v2133
      %v2166 = vmul.f32 %v1142, %v2134
      %v2167 = vmul.f32 %v1143, %v2135
      %v2168 = vmul.f32 %v1144, %v2136
      %v2169 = vmul.f32 %v1145, %v2137
      %v2170 = vmul.f32 %v1146, %v2138
      %v2171 = vmul.f32 %v1147, %v2139
      %v2172 = vmul.f32 %v1148, %v2140
      %v2173 = vpack.c.bf16 %v2145, %v2141
      %v2174 = vpack.c.bf16 %v2146, %v2142
      %v2175 = vpack.c.bf16 %v2147, %v2143
      %v2176 = vpack.c.bf16 %v2148, %v2144
      %v2177 = vpack.c.bf16 %v2153, %v2149
      %v2178 = vpack.c.bf16 %v2154, %v2150
      %v2179 = vpack.c.bf16 %v2155, %v2151
      %v2180 = vpack.c.bf16 %v2156, %v2152
      %v2181 = vpack.c.bf16 %v2161, %v2157
      %v2182 = vpack.c.bf16 %v2162, %v2158
      %v2183 = vpack.c.bf16 %v2163, %v2159
      %v2184 = vpack.c.bf16 %v2164, %v2160
      %v2185 = vpack.c.bf16 %v2169, %v2165
      %v2186 = vpack.c.bf16 %v2170, %v2166
      %v2187 = vpack.c.bf16 %v2171, %v2167
      %v2188 = vpack.c.bf16 %v2172, %v2168
      %v2189 = vld [vmem:[%s6] sm:$0xff]
      %v2190 = vld [vmem:[%s6 + $0x8] sm:$0xff]
      %v2191 = vld [vmem:[%s6 + $0x10] sm:$0xff]
      %v2192 = vld [vmem:[%s6 + $0x18] sm:$0xff]
      %v2193 = vld [vmem:[%s6 + $0x20] sm:$0xff]
      %v2194 = vld [vmem:[%s6 + $0x28] sm:$0xff]
      %v2195 = vld [vmem:[%s6 + $0x30] sm:$0xff]
      %v2196 = vld [vmem:[%s6 + $0x38] sm:$0xff]
      %v2197 = vld [vmem:[%s6 + $0x40] sm:$0xff]
      %v2198 = vld [vmem:[%s6 + $0x48] sm:$0xff]
      %v2199 = vld [vmem:[%s6 + $0x50] sm:$0xff]
      %v2200 = vld [vmem:[%s6 + $0x58] sm:$0xff]
      %v2201 = vld [vmem:[%s6 + $0x60] sm:$0xff]
      %v2202 = vld [vmem:[%s6 + $0x68] sm:$0xff]
      %v2203 = vld [vmem:[%s6 + $0x70] sm:$0xff]
      %v2204 = vld [vmem:[%s6 + $0x78] sm:$0xff]
      %v2205 = vld [vmem:[%s6 + $0x80] sm:$0xff]
      %v2206 = vld [vmem:[%s6 + $0x88] sm:$0xff]
      %v2207 = vld [vmem:[%s6 + $0x90] sm:$0xff]
      %v2208 = vld [vmem:[%s6 + $0x98] sm:$0xff]
      %v2209 = vld [vmem:[%s6 + $0xa0] sm:$0xff]
      %v2210 = vld [vmem:[%s6 + $0xa8] sm:$0xff]
      %v2211 = vld [vmem:[%s6 + $0xb0] sm:$0xff]
      %v2212 = vld [vmem:[%s6 + $0xb8] sm:$0xff]
      %v2213 = vld [vmem:[%s6 + $0xc0] sm:$0xff]
      %v2214 = vld [vmem:[%s6 + $0xc8] sm:$0xff]
      %v2215 = vld [vmem:[%s6 + $0xd0] sm:$0xff]
      %v2216 = vld [vmem:[%s6 + $0xd8] sm:$0xff]
      %v2217 = vld [vmem:[%s6 + $0xe0] sm:$0xff]
      %v2218 = vld [vmem:[%s6 + $0xe8] sm:$0xff]
      %v2219 = vld [vmem:[%s6 + $0xf0] sm:$0xff]
      %v2220 = vld [vmem:[%s6 + $0xf8] sm:$0xff]
      %v2221 = vld [vmem:[%s6 + $0x100] sm:$0xff]
      %v2222 = vld [vmem:[%s6 + $0x108] sm:$0xff]
      %v2223 = vld [vmem:[%s6 + $0x110] sm:$0xff]
      %v2224 = vld [vmem:[%s6 + $0x118] sm:$0xff]
      %v2225 = vld [vmem:[%s6 + $0x120] sm:$0xff]
      %v2226 = vld [vmem:[%s6 + $0x128] sm:$0xff]
      %v2227 = vld [vmem:[%s6 + $0x130] sm:$0xff]
      %v2228 = vld [vmem:[%s6 + $0x138] sm:$0xff]
      %v2229 = vld [vmem:[%s6 + $0x140] sm:$0xff]
      %v2230 = vld [vmem:[%s6 + $0x148] sm:$0xff]
      %v2231 = vld [vmem:[%s6 + $0x150] sm:$0xff]
      %v2232 = vld [vmem:[%s6 + $0x158] sm:$0xff]
      %v2233 = vld [vmem:[%s6 + $0x160] sm:$0xff]
      %v2234 = vld [vmem:[%s6 + $0x168] sm:$0xff]
      %v2235 = vld [vmem:[%s6 + $0x170] sm:$0xff]
      %v2236 = vld [vmem:[%s6 + $0x178] sm:$0xff]
      %v2237 = vld [vmem:[%s6 + $0x180] sm:$0xff]
      %v2238 = vld [vmem:[%s6 + $0x188] sm:$0xff]
      %v2239 = vld [vmem:[%s6 + $0x190] sm:$0xff]
      %v2240 = vld [vmem:[%s6 + $0x198] sm:$0xff]
      %v2241 = vld [vmem:[%s6 + $0x1a0] sm:$0xff]
      %v2242 = vld [vmem:[%s6 + $0x1a8] sm:$0xff]
      %v2243 = vld [vmem:[%s6 + $0x1b0] sm:$0xff]
      %v2244 = vld [vmem:[%s6 + $0x1b8] sm:$0xff]
      %v2245 = vld [vmem:[%s6 + $0x1c0] sm:$0xff]
      %v2246 = vld [vmem:[%s6 + $0x1c8] sm:$0xff]
      %v2247 = vld [vmem:[%s6 + $0x1d0] sm:$0xff]
      %v2248 = vld [vmem:[%s6 + $0x1d8] sm:$0xff]
      %v2249 = vld [vmem:[%s6 + $0x1e0] sm:$0xff]
      %v2250 = vld [vmem:[%s6 + $0x1e8] sm:$0xff]
      %v2251 = vld [vmem:[%s6 + $0x1f0] sm:$0xff]
      %v2252 = vld [vmem:[%s6 + $0x1f8] sm:$0xff]
      %v2253 = vld [vmem:[%s7] sm:$0x3]
      %v2255 = vperm.slane %v2253, 0
      %v2256 = vperm.slane %v2253, 1
      %v2323 = vunpack.c.l.b16 %v2189
      %v2324 = vunpack.c.h.b16 %v2189
      %v2325 = vunpack.c.l.b16 %v2190
      %v2326 = vunpack.c.h.b16 %v2190
      %v2327 = vunpack.c.l.b16 %v2191
      %v2328 = vunpack.c.h.b16 %v2191
      %v2329 = vunpack.c.l.b16 %v2192
      %v2330 = vunpack.c.h.b16 %v2192
      %v2331 = vunpack.c.l.b16 %v2193
      %v2332 = vunpack.c.h.b16 %v2193
      %v2333 = vunpack.c.l.b16 %v2194
      %v2334 = vunpack.c.h.b16 %v2194
      %v2335 = vunpack.c.l.b16 %v2195
      %v2336 = vunpack.c.h.b16 %v2195
      %v2337 = vunpack.c.l.b16 %v2196
      %v2338 = vunpack.c.h.b16 %v2196
      %v2339 = vunpack.c.l.b16 %v2197
      %v2340 = vunpack.c.h.b16 %v2197
      %v2341 = vunpack.c.l.b16 %v2198
      %v2342 = vunpack.c.h.b16 %v2198
      %v2343 = vunpack.c.l.b16 %v2199
      %v2344 = vunpack.c.h.b16 %v2199
      %v2345 = vunpack.c.l.b16 %v2200
      %v2346 = vunpack.c.h.b16 %v2200
      %v2347 = vunpack.c.l.b16 %v2201
      %v2348 = vunpack.c.h.b16 %v2201
      %v2349 = vunpack.c.l.b16 %v2202
      %v2350 = vunpack.c.h.b16 %v2202
      %v2351 = vunpack.c.l.b16 %v2203
      %v2352 = vunpack.c.h.b16 %v2203
      %v2353 = vunpack.c.l.b16 %v2204
      %v2354 = vunpack.c.h.b16 %v2204
      %v2355 = vunpack.c.l.b16 %v2205
      %v2356 = vunpack.c.h.b16 %v2205
      %v2357 = vunpack.c.l.b16 %v2206
      %v2358 = vunpack.c.h.b16 %v2206
      %v2359 = vunpack.c.l.b16 %v2207
      %v2360 = vunpack.c.h.b16 %v2207
      %v2361 = vunpack.c.l.b16 %v2208
      %v2362 = vunpack.c.h.b16 %v2208
      %v2363 = vunpack.c.l.b16 %v2209
      %v2364 = vunpack.c.h.b16 %v2209
      %v2365 = vunpack.c.l.b16 %v2210
      %v2366 = vunpack.c.h.b16 %v2210
      %v2367 = vunpack.c.l.b16 %v2211
      %v2368 = vunpack.c.h.b16 %v2211
      %v2369 = vunpack.c.l.b16 %v2212
      %v2370 = vunpack.c.h.b16 %v2212
      %v2371 = vunpack.c.l.b16 %v2213
      %v2372 = vunpack.c.h.b16 %v2213
      %v2373 = vunpack.c.l.b16 %v2214
      %v2374 = vunpack.c.h.b16 %v2214
      %v2375 = vunpack.c.l.b16 %v2215
      %v2376 = vunpack.c.h.b16 %v2215
      %v2377 = vunpack.c.l.b16 %v2216
      %v2378 = vunpack.c.h.b16 %v2216
      %v2379 = vunpack.c.l.b16 %v2217
      %v2380 = vunpack.c.h.b16 %v2217
      %v2381 = vunpack.c.l.b16 %v2218
      %v2382 = vunpack.c.h.b16 %v2218
      %v2383 = vunpack.c.l.b16 %v2219
      %v2384 = vunpack.c.h.b16 %v2219
      %v2385 = vunpack.c.l.b16 %v2220
      %v2386 = vunpack.c.h.b16 %v2220
      %v2387 = vunpack.c.l.b16 %v2221
      %v2388 = vunpack.c.h.b16 %v2221
      %v2389 = vunpack.c.l.b16 %v2222
      %v2390 = vunpack.c.h.b16 %v2222
      %v2391 = vunpack.c.l.b16 %v2223
      %v2392 = vunpack.c.h.b16 %v2223
      %v2393 = vunpack.c.l.b16 %v2224
      %v2394 = vunpack.c.h.b16 %v2224
      %v2395 = vunpack.c.l.b16 %v2225
      %v2396 = vunpack.c.h.b16 %v2225
      %v2397 = vunpack.c.l.b16 %v2226
      %v2398 = vunpack.c.h.b16 %v2226
      %v2399 = vunpack.c.l.b16 %v2227
      %v2400 = vunpack.c.h.b16 %v2227
      %v2401 = vunpack.c.l.b16 %v2228
      %v2402 = vunpack.c.h.b16 %v2228
      %v2403 = vunpack.c.l.b16 %v2229
      %v2404 = vunpack.c.h.b16 %v2229
      %v2405 = vunpack.c.l.b16 %v2230
      %v2406 = vunpack.c.h.b16 %v2230
      %v2407 = vunpack.c.l.b16 %v2231
      %v2408 = vunpack.c.h.b16 %v2231
      %v2409 = vunpack.c.l.b16 %v2232
      %v2410 = vunpack.c.h.b16 %v2232
      %v2411 = vunpack.c.l.b16 %v2233
      %v2412 = vunpack.c.h.b16 %v2233
      %v2413 = vunpack.c.l.b16 %v2234
      %v2414 = vunpack.c.h.b16 %v2234
      %v2415 = vunpack.c.l.b16 %v2235
      %v2416 = vunpack.c.h.b16 %v2235
      %v2417 = vunpack.c.l.b16 %v2236
      %v2418 = vunpack.c.h.b16 %v2236
      %v2419 = vunpack.c.l.b16 %v2237
      %v2420 = vunpack.c.h.b16 %v2237
      %v2421 = vunpack.c.l.b16 %v2238
      %v2422 = vunpack.c.h.b16 %v2238
      %v2423 = vunpack.c.l.b16 %v2239
      %v2424 = vunpack.c.h.b16 %v2239
      %v2425 = vunpack.c.l.b16 %v2240
      %v2426 = vunpack.c.h.b16 %v2240
      %v2427 = vunpack.c.l.b16 %v2241
      %v2428 = vunpack.c.h.b16 %v2241
      %v2429 = vunpack.c.l.b16 %v2242
      %v2430 = vunpack.c.h.b16 %v2242
      %v2431 = vunpack.c.l.b16 %v2243
      %v2432 = vunpack.c.h.b16 %v2243
      %v2433 = vunpack.c.l.b16 %v2244
      %v2434 = vunpack.c.h.b16 %v2244
      %v2435 = vunpack.c.l.b16 %v2245
      %v2436 = vunpack.c.h.b16 %v2245
      %v2437 = vunpack.c.l.b16 %v2246
      %v2438 = vunpack.c.h.b16 %v2246
      %v2439 = vunpack.c.l.b16 %v2247
      %v2440 = vunpack.c.h.b16 %v2247
      %v2441 = vunpack.c.l.b16 %v2248
      %v2442 = vunpack.c.h.b16 %v2248
      %v2443 = vunpack.c.l.b16 %v2249
      %v2444 = vunpack.c.h.b16 %v2249
      %v2445 = vunpack.c.l.b16 %v2250
      %v2446 = vunpack.c.h.b16 %v2250
      %v2447 = vunpack.c.l.b16 %v2251
      %v2448 = vunpack.c.h.b16 %v2251
      %v2449 = vunpack.c.l.b16 %v2252
      %v2450 = vunpack.c.h.b16 %v2252
      %v2451 = vpack.c.b16 %v2325, %v2323
      %v2452 = vpack.c.b16 %v2326, %v2324
      %v2453 = vpack.c.b16 %v2329, %v2327
      %v2454 = vpack.c.b16 %v2330, %v2328
      %v2455 = vpack.c.b16 %v2333, %v2331
      %v2456 = vpack.c.b16 %v2334, %v2332
      %v2457 = vpack.c.b16 %v2337, %v2335
      %v2458 = vpack.c.b16 %v2338, %v2336
      %v2459 = vpack.c.b16 %v2341, %v2339
      %v2460 = vpack.c.b16 %v2342, %v2340
      %v2461 = vpack.c.b16 %v2345, %v2343
      %v2462 = vpack.c.b16 %v2346, %v2344
      %v2463 = vpack.c.b16 %v2349, %v2347
      %v2464 = vpack.c.b16 %v2350, %v2348
      %v2465 = vpack.c.b16 %v2353, %v2351
      %v2466 = vpack.c.b16 %v2354, %v2352
      %v2467 = vpack.c.b16 %v2357, %v2355
      %v2468 = vpack.c.b16 %v2358, %v2356
      %v2469 = vpack.c.b16 %v2361, %v2359
      %v2470 = vpack.c.b16 %v2362, %v2360
      %v2471 = vpack.c.b16 %v2365, %v2363
      %v2472 = vpack.c.b16 %v2366, %v2364
      %v2473 = vpack.c.b16 %v2369, %v2367
      %v2474 = vpack.c.b16 %v2370, %v2368
      %v2475 = vpack.c.b16 %v2373, %v2371
      %v2476 = vpack.c.b16 %v2374, %v2372
      %v2477 = vpack.c.b16 %v2377, %v2375
      %v2478 = vpack.c.b16 %v2378, %v2376
      %v2479 = vpack.c.b16 %v2381, %v2379
      %v2480 = vpack.c.b16 %v2382, %v2380
      %v2481 = vpack.c.b16 %v2385, %v2383
      %v2482 = vpack.c.b16 %v2386, %v2384
      %v2483 = vpack.c.b16 %v2389, %v2387
      %v2484 = vpack.c.b16 %v2390, %v2388
      %v2485 = vpack.c.b16 %v2393, %v2391
      %v2486 = vpack.c.b16 %v2394, %v2392
      %v2487 = vpack.c.b16 %v2397, %v2395
      %v2488 = vpack.c.b16 %v2398, %v2396
      %v2489 = vpack.c.b16 %v2401, %v2399
      %v2490 = vpack.c.b16 %v2402, %v2400
      %v2491 = vpack.c.b16 %v2405, %v2403
      %v2492 = vpack.c.b16 %v2406, %v2404
      %v2493 = vpack.c.b16 %v2409, %v2407
      %v2494 = vpack.c.b16 %v2410, %v2408
      %v2495 = vpack.c.b16 %v2413, %v2411
      %v2496 = vpack.c.b16 %v2414, %v2412
      %v2497 = vpack.c.b16 %v2417, %v2415
      %v2498 = vpack.c.b16 %v2418, %v2416
      %v2499 = vpack.c.b16 %v2421, %v2419
      %v2500 = vpack.c.b16 %v2422, %v2420
      %v2501 = vpack.c.b16 %v2425, %v2423
      %v2502 = vpack.c.b16 %v2426, %v2424
      %v2503 = vpack.c.b16 %v2429, %v2427
      %v2504 = vpack.c.b16 %v2430, %v2428
      %v2505 = vpack.c.b16 %v2433, %v2431
      %v2506 = vpack.c.b16 %v2434, %v2432
      %v2507 = vpack.c.b16 %v2437, %v2435
      %v2508 = vpack.c.b16 %v2438, %v2436
      %v2509 = vpack.c.b16 %v2441, %v2439
      %v2510 = vpack.c.b16 %v2442, %v2440
      %v2511 = vpack.c.b16 %v2445, %v2443
      %v2512 = vpack.c.b16 %v2446, %v2444
      %v2513 = vpack.c.b16 %v2449, %v2447
      %v2514 = vpack.c.b16 %v2450, %v2448
      %2579 = vmatpush.bf16.msra.mxu0 %v2465
      %2580 = vmatpush.bf16.msra.mxu0 %v2463
      %2581 = vmatpush.bf16.msra.mxu0 %v2461
      %2582 = vmatpush.bf16.msra.mxu0 %v2459
      %2583 = vmatpush.bf16.msra.mxu0 %v2457
      %2584 = vmatpush.bf16.msra.mxu0 %v2455
      %2585 = vmatpush.bf16.msra.mxu0 %v2453
      %2586 = vmatpush.bf16.msra.mxu0 %v2451
      %2587 = vmatmul.bf16.gmra.mxu0 %v2173
      %v2588 = vpop.f32.mrf.mxu0
      %v2589 = vadd.f32 %v2255, %v2588
      %v2590 = vpop.f32.mrf.mxu0
      %v2591 = vadd.f32 %v2255, %v2590
      %2592 = vmatmul.bf16.gmra.mxu0 %v2177
      %v2593 = vpop.f32.mrf.mxu0
      %v2594 = vadd.f32 %v2255, %v2593
      %v2595 = vpop.f32.mrf.mxu0
      %v2596 = vadd.f32 %v2255, %v2595
      %2597 = vmatmul.bf16.gmra.mxu0 %v2181
      %v2598 = vpop.f32.mrf.mxu0
      %v2599 = vadd.f32 %v2255, %v2598
      %v2600 = vpop.f32.mrf.mxu0
      %v2601 = vadd.f32 %v2255, %v2600
      %2602 = vmatmul.bf16.gmra.mxu0 %v2185
      %v2603 = vpop.f32.mrf.mxu0
      %v2604 = vadd.f32 %v2255, %v2603
      %v2605 = vpop.f32.mrf.mxu0
      %v2606 = vadd.f32 %v2255, %v2605
      %2607 = vdwg.mxu0
      %2608 = vmatpush.bf16.msra.mxu0 %v2481
      %2609 = vmatpush.bf16.msra.mxu0 %v2479
      %2610 = vmatpush.bf16.msra.mxu0 %v2477
      %2611 = vmatpush.bf16.msra.mxu0 %v2475
      %2612 = vmatpush.bf16.msra.mxu0 %v2473
      %2613 = vmatpush.bf16.msra.mxu0 %v2471
      %2614 = vmatpush.bf16.msra.mxu0 %v2469
      %2615 = vmatpush.bf16.msra.mxu0 %v2467
      %2616 = vmatmul.bf16.gmra.mxu0 %v2174
      %v2617 = vpop.f32.mrf.mxu0
      %v2618 = vadd.f32 %v2589, %v2617
      %v2619 = vpop.f32.mrf.mxu0
      %v2620 = vadd.f32 %v2591, %v2619
      %2621 = vmatmul.bf16.gmra.mxu0 %v2178
      %v2622 = vpop.f32.mrf.mxu0
      %v2623 = vadd.f32 %v2594, %v2622
      %v2624 = vpop.f32.mrf.mxu0
      %v2625 = vadd.f32 %v2596, %v2624
      %2626 = vmatmul.bf16.gmra.mxu0 %v2182
      %v2627 = vpop.f32.mrf.mxu0
      %v2628 = vadd.f32 %v2599, %v2627
      %v2629 = vpop.f32.mrf.mxu0
      %v2630 = vadd.f32 %v2601, %v2629
      %2631 = vmatmul.bf16.gmra.mxu0 %v2186
      %v2632 = vpop.f32.mrf.mxu0
      %v2633 = vadd.f32 %v2604, %v2632
      %v2634 = vpop.f32.mrf.mxu0
      %v2635 = vadd.f32 %v2606, %v2634
      %2636 = vdwg.mxu0
      %2637 = vmatpush.bf16.msra.mxu0 %v2497
      %2638 = vmatpush.bf16.msra.mxu0 %v2495
      %2639 = vmatpush.bf16.msra.mxu0 %v2493
      %2640 = vmatpush.bf16.msra.mxu0 %v2491
      %2641 = vmatpush.bf16.msra.mxu0 %v2489
      %2642 = vmatpush.bf16.msra.mxu0 %v2487
      %2643 = vmatpush.bf16.msra.mxu0 %v2485
      %2644 = vmatpush.bf16.msra.mxu0 %v2483
      %2645 = vmatmul.bf16.gmra.mxu0 %v2175
      %v2646 = vpop.f32.mrf.mxu0
      %v2647 = vadd.f32 %v2618, %v2646
      %v2648 = vpop.f32.mrf.mxu0
      %v2649 = vadd.f32 %v2620, %v2648
      %2650 = vmatmul.bf16.gmra.mxu0 %v2179
      %v2651 = vpop.f32.mrf.mxu0
      %v2652 = vadd.f32 %v2623, %v2651
      %v2653 = vpop.f32.mrf.mxu0
      %v2654 = vadd.f32 %v2625, %v2653
      %2655 = vmatmul.bf16.gmra.mxu0 %v2183
      %v2656 = vpop.f32.mrf.mxu0
      %v2657 = vadd.f32 %v2628, %v2656
      %v2658 = vpop.f32.mrf.mxu0
      %v2659 = vadd.f32 %v2630, %v2658
      %2660 = vmatmul.bf16.gmra.mxu0 %v2187
      %v2661 = vpop.f32.mrf.mxu0
      %v2662 = vadd.f32 %v2633, %v2661
      %v2663 = vpop.f32.mrf.mxu0
      %v2664 = vadd.f32 %v2635, %v2663
      %2665 = vdwg.mxu0
      %2666 = vmatpush.bf16.msra.mxu0 %v2513
      %2667 = vmatpush.bf16.msra.mxu0 %v2511
      %2668 = vmatpush.bf16.msra.mxu0 %v2509
      %2669 = vmatpush.bf16.msra.mxu0 %v2507
      %2670 = vmatpush.bf16.msra.mxu0 %v2505
      %2671 = vmatpush.bf16.msra.mxu0 %v2503
      %2672 = vmatpush.bf16.msra.mxu0 %v2501
      %2673 = vmatpush.bf16.msra.mxu0 %v2499
      %2674 = vmatmul.bf16.gmra.mxu0 %v2176
      %v2675 = vpop.f32.mrf.mxu0
      %v2676 = vadd.f32 %v2647, %v2675
      %v2677 = vpop.f32.mrf.mxu0
      %v2678 = vadd.f32 %v2649, %v2677
      %2679 = vmatmul.bf16.gmra.mxu0 %v2180
      %v2680 = vpop.f32.mrf.mxu0
      %v2681 = vadd.f32 %v2652, %v2680
      %v2682 = vpop.f32.mrf.mxu0
      %v2683 = vadd.f32 %v2654, %v2682
      %2684 = vmatmul.bf16.gmra.mxu0 %v2184
      %v2685 = vpop.f32.mrf.mxu0
      %v2686 = vadd.f32 %v2657, %v2685
      %v2687 = vpop.f32.mrf.mxu0
      %v2688 = vadd.f32 %v2659, %v2687
      %2689 = vmatmul.bf16.gmra.mxu0 %v2188
      %v2690 = vpop.f32.mrf.mxu0
      %v2691 = vadd.f32 %v2662, %v2690
      %v2692 = vpop.f32.mrf.mxu0
      %v2693 = vadd.f32 %v2664, %v2692
      %2694 = vdwg.mxu0
      %2695 = vmatpush.bf16.msra.mxu0 %v2466
      %2696 = vmatpush.bf16.msra.mxu0 %v2464
      %2697 = vmatpush.bf16.msra.mxu0 %v2462
      %2698 = vmatpush.bf16.msra.mxu0 %v2460
      %2699 = vmatpush.bf16.msra.mxu0 %v2458
      %2700 = vmatpush.bf16.msra.mxu0 %v2456
      %2701 = vmatpush.bf16.msra.mxu0 %v2454
      %2702 = vmatpush.bf16.msra.mxu0 %v2452
      %2703 = vmatmul.bf16.gmra.mxu0 %v2173
      %v2704 = vpop.f32.mrf.mxu0
      %v2705 = vadd.f32 %v2256, %v2704
      %v2706 = vpop.f32.mrf.mxu0
      %v2707 = vadd.f32 %v2256, %v2706
      %2708 = vmatmul.bf16.gmra.mxu0 %v2177
      %v2709 = vpop.f32.mrf.mxu0
      %v2710 = vadd.f32 %v2256, %v2709
      %v2711 = vpop.f32.mrf.mxu0
      %v2712 = vadd.f32 %v2256, %v2711
      %2713 = vmatmul.bf16.gmra.mxu0 %v2181
      %v2714 = vpop.f32.mrf.mxu0
      %v2715 = vadd.f32 %v2256, %v2714
      %v2716 = vpop.f32.mrf.mxu0
      %v2717 = vadd.f32 %v2256, %v2716
      %2718 = vmatmul.bf16.gmra.mxu0 %v2185
      %v2719 = vpop.f32.mrf.mxu0
      %v2720 = vadd.f32 %v2256, %v2719
      %v2721 = vpop.f32.mrf.mxu0
      %v2722 = vadd.f32 %v2256, %v2721
      %2723 = vdwg.mxu0
      %2724 = vmatpush.bf16.msra.mxu0 %v2482
      %2725 = vmatpush.bf16.msra.mxu0 %v2480
      %2726 = vmatpush.bf16.msra.mxu0 %v2478
      %2727 = vmatpush.bf16.msra.mxu0 %v2476
      %2728 = vmatpush.bf16.msra.mxu0 %v2474
      %2729 = vmatpush.bf16.msra.mxu0 %v2472
      %2730 = vmatpush.bf16.msra.mxu0 %v2470
      %2731 = vmatpush.bf16.msra.mxu0 %v2468
      %2732 = vmatmul.bf16.gmra.mxu0 %v2174
      %v2733 = vpop.f32.mrf.mxu0
      %v2734 = vadd.f32 %v2705, %v2733
      %v2735 = vpop.f32.mrf.mxu0
      %v2736 = vadd.f32 %v2707, %v2735
      %2737 = vmatmul.bf16.gmra.mxu0 %v2178
      %v2738 = vpop.f32.mrf.mxu0
      %v2739 = vadd.f32 %v2710, %v2738
      %v2740 = vpop.f32.mrf.mxu0
      %v2741 = vadd.f32 %v2712, %v2740
      %2742 = vmatmul.bf16.gmra.mxu0 %v2182
      %v2743 = vpop.f32.mrf.mxu0
      %v2744 = vadd.f32 %v2715, %v2743
      %v2745 = vpop.f32.mrf.mxu0
      %v2746 = vadd.f32 %v2717, %v2745
      %2747 = vmatmul.bf16.gmra.mxu0 %v2186
      %v2748 = vpop.f32.mrf.mxu0
      %v2749 = vadd.f32 %v2720, %v2748
      %v2750 = vpop.f32.mrf.mxu0
      %v2751 = vadd.f32 %v2722, %v2750
      %2752 = vdwg.mxu0
      %2753 = vmatpush.bf16.msra.mxu0 %v2498
      %2754 = vmatpush.bf16.msra.mxu0 %v2496
      %2755 = vmatpush.bf16.msra.mxu0 %v2494
      %2756 = vmatpush.bf16.msra.mxu0 %v2492
      %2757 = vmatpush.bf16.msra.mxu0 %v2490
      %2758 = vmatpush.bf16.msra.mxu0 %v2488
      %2759 = vmatpush.bf16.msra.mxu0 %v2486
      %2760 = vmatpush.bf16.msra.mxu0 %v2484
      %2761 = vmatmul.bf16.gmra.mxu0 %v2175
      %v2762 = vpop.f32.mrf.mxu0
      %v2763 = vadd.f32 %v2734, %v2762
      %v2764 = vpop.f32.mrf.mxu0
      %v2765 = vadd.f32 %v2736, %v2764
      %2766 = vmatmul.bf16.gmra.mxu0 %v2179
      %v2767 = vpop.f32.mrf.mxu0
      %v2768 = vadd.f32 %v2739, %v2767
      %v2769 = vpop.f32.mrf.mxu0
      %v2770 = vadd.f32 %v2741, %v2769
      %2771 = vmatmul.bf16.gmra.mxu0 %v2183
      %v2772 = vpop.f32.mrf.mxu0
      %v2773 = vadd.f32 %v2744, %v2772
      %v2774 = vpop.f32.mrf.mxu0
      %v2775 = vadd.f32 %v2746, %v2774
      %2776 = vmatmul.bf16.gmra.mxu0 %v2187
      %v2777 = vpop.f32.mrf.mxu0
      %v2778 = vadd.f32 %v2749, %v2777
      %v2779 = vpop.f32.mrf.mxu0
      %v2780 = vadd.f32 %v2751, %v2779
      %2781 = vdwg.mxu0
      %2782 = vmatpush.bf16.msra.mxu0 %v2514
      %2783 = vmatpush.bf16.msra.mxu0 %v2512
      %2784 = vmatpush.bf16.msra.mxu0 %v2510
      %2785 = vmatpush.bf16.msra.mxu0 %v2508
      %2786 = vmatpush.bf16.msra.mxu0 %v2506
      %2787 = vmatpush.bf16.msra.mxu0 %v2504
      %2788 = vmatpush.bf16.msra.mxu0 %v2502
      %2789 = vmatpush.bf16.msra.mxu0 %v2500
      %2790 = vmatmul.bf16.gmra.mxu0 %v2176
      %v2791 = vpop.f32.mrf.mxu0
      %v2792 = vadd.f32 %v2763, %v2791
      %v2793 = vpop.f32.mrf.mxu0
      %v2794 = vadd.f32 %v2765, %v2793
      %2795 = vmatmul.bf16.gmra.mxu0 %v2180
      %v2796 = vpop.f32.mrf.mxu0
      %v2797 = vadd.f32 %v2768, %v2796
      %v2798 = vpop.f32.mrf.mxu0
      %v2799 = vadd.f32 %v2770, %v2798
      %2800 = vmatmul.bf16.gmra.mxu0 %v2184
      %v2801 = vpop.f32.mrf.mxu0
      %v2802 = vadd.f32 %v2773, %v2801
      %v2803 = vpop.f32.mrf.mxu0
      %v2804 = vadd.f32 %v2775, %v2803
      %2805 = vmatmul.bf16.gmra.mxu0 %v2188
      %v2806 = vpop.f32.mrf.mxu0
      %v2807 = vadd.f32 %v2778, %v2806
      %v2808 = vpop.f32.mrf.mxu0
      %v2809 = vadd.f32 %v2780, %v2808
      %2810 = vdwg.mxu0
      %v2811 = vld [vmem:[%s402] sm:$0xff]
      %v2812 = vld [vmem:[%s402 + $0x8] sm:$0xff]
      %v2813 = vld [vmem:[%s402 + $0x10] sm:$0xff]
      %v2814 = vld [vmem:[%s402 + $0x18] sm:$0xff]
      %v2815 = vld [vmem:[%s402 + $0x20] sm:$0xff]
      %v2816 = vld [vmem:[%s402 + $0x28] sm:$0xff]
      %v2817 = vld [vmem:[%s402 + $0x30] sm:$0xff]
      %v2818 = vld [vmem:[%s402 + $0x38] sm:$0xff]
      %v2819 = vld [vmem:[%s402 + $0x40] sm:$0xff]
      %v2820 = vld [vmem:[%s402 + $0x48] sm:$0xff]
      %v2821 = vld [vmem:[%s402 + $0x50] sm:$0xff]
      %v2822 = vld [vmem:[%s402 + $0x58] sm:$0xff]
      %v2823 = vld [vmem:[%s402 + $0x60] sm:$0xff]
      %v2824 = vld [vmem:[%s402 + $0x68] sm:$0xff]
      %v2825 = vld [vmem:[%s402 + $0x70] sm:$0xff]
      %v2826 = vld [vmem:[%s402 + $0x78] sm:$0xff]
      %v2827 = vadd.f32 %v2676, %v2811
      %v2828 = vadd.f32 %v2792, %v2812
      %v2829 = vadd.f32 %v2678, %v2813
      %v2830 = vadd.f32 %v2794, %v2814
      %v2831 = vadd.f32 %v2681, %v2815
      %v2832 = vadd.f32 %v2797, %v2816
      %v2833 = vadd.f32 %v2683, %v2817
      %v2834 = vadd.f32 %v2799, %v2818
      %v2835 = vadd.f32 %v2686, %v2819
      %v2836 = vadd.f32 %v2802, %v2820
      %v2837 = vadd.f32 %v2688, %v2821
      %v2838 = vadd.f32 %v2804, %v2822
      %v2839 = vadd.f32 %v2691, %v2823
      %v2840 = vadd.f32 %v2807, %v2824
      %v2841 = vadd.f32 %v2693, %v2825
      %v2842 = vadd.f32 %v2809, %v2826
      %2843 = vst [vmem:[%s421] sm:$0xff] %v2827
      %2844 = vst [vmem:[%s421 + $0x8] sm:$0xff] %v2828
      %2845 = vst [vmem:[%s421 + $0x10] sm:$0xff] %v2829
      %2846 = vst [vmem:[%s421 + $0x18] sm:$0xff] %v2830
      %2847 = vst [vmem:[%s421 + $0x20] sm:$0xff] %v2831
      %2848 = vst [vmem:[%s421 + $0x28] sm:$0xff] %v2832
      %2849 = vst [vmem:[%s421 + $0x30] sm:$0xff] %v2833
      %2850 = vst [vmem:[%s421 + $0x38] sm:$0xff] %v2834
      %2851 = vst [vmem:[%s421 + $0x40] sm:$0xff] %v2835
      %2852 = vst [vmem:[%s421 + $0x48] sm:$0xff] %v2836
      %2853 = vst [vmem:[%s421 + $0x50] sm:$0xff] %v2837
      %2854 = vst [vmem:[%s421 + $0x58] sm:$0xff] %v2838
      %2855 = vst [vmem:[%s421 + $0x60] sm:$0xff] %v2839
      %2856 = vst [vmem:[%s421 + $0x68] sm:$0xff] %v2840
      %2857 = vst [vmem:[%s421 + $0x70] sm:$0xff] %v2841
      %2858 = vst [vmem:[%s421 + $0x78] sm:$0xff] %v2842
      %s2859 = smul.u32 8, %s24
      %p2860 = scmp.lt.s32.totalorder %s23, 1
      %s2861 = scalar_select %p2860, %s23, 1
      %p2862 = scmp.lt.s32.totalorder %s2859, 7
      %s2863 = scalar_select %p2862, %s2859, 7
      %s2864 = smul.addr %s2863, 2
      %s2865 = smul.addr %s2861, 16
      %s2866 = sadd.s32 %s2864, %s2865
      %s2867 = smul.addr %s2866, 8
      %s2868 = scalar_lea.vmem %s8, %s2867
      // Predicated region
      $region53: #{conv_block_pallas.3} parent=51 // pred_check
        %p2869 = pneg %p243
      $region54: #{conv_block_pallas.3} parent=51 // pred_check_branch
        %2871 = sbr.rel (%p2869) target = $region56
      $region55: #{conv_block_pallas.3} parent=51 // pred_region
        %s2872 = smul.u32 8, %s24
      $region56: #{conv_block_pallas.3} parent=51 // pred_fallthru
        _
    $region52: #{conv_block_pallas.3} parent=5 // pred_fallthru
      _
    %p2873 = scmp.le.s32.totalorder 2, %s14
    // Predicated region
    $region57: #{conv_block_pallas.3} parent=5 // pred_check
      %p2874 = pneg %p2873
    $region58: #{conv_block_pallas.3} parent=5 // pred_check_branch
      %2876 = sbr.rel (%p2874) target = $region60
    $region59: #{conv_block_pallas.3} parent=5 // pred_region
      %s2877 = ssub.s32 %s14, 2
      // Predicated region
      $region61: #{conv_block_pallas.3} parent=59 // pred_check
        %p2878 = pneg %p249
      $region62: #{conv_block_pallas.3} parent=59 // pred_check_branch
        %2880 = sbr.rel (%p2878) target = $region64
      $region63: #{conv_block_pallas.3} parent=59 // pred_region
        %s2881 = smul.u32 8, %s26
        %p2882 = scmp.lt.s32.totalorder %s25, 1
        %s2883 = scalar_select %p2882, %s25, 1
        %p2884 = scmp.lt.s32.totalorder %s2881, 7
        %s2885 = scalar_select %p2884, %s2881, 7
        %s2886 = smul.addr %s2885, 2
        %s2887 = smul.addr %s2883, 16
        %s2888 = sadd.s32 %s2886, %s2887
        %s2889 = smul.addr %s2888, 8
        %s2890 = scalar_lea.vmem %s8, %s2889
      $region64: #{conv_block_pallas.3} parent=59 // pred_fallthru
        _
    $region60: #{conv_block_pallas.3} parent=5 // pred_fallthru
      _
  $region6: #{conv_block_pallas.3} parent=0 // loop_footer
    %s18 = sadd.s32 1, %s14
  $region7: #{conv_block_pallas.3} parent=0 // loop_footer_branch
    %13 = sbr.rel target = $region3
  $region8: #{conv_block_pallas.3} parent=0 // loop_exit
    _

</llo_original>
